<compile_context>
chip_gen: v7x
topology: tpu7x:2x2x1
jax: 0.10.0
libtpu: 0.0.40
codegen_flags: <defaults>
</compile_context>

<pallas_src>
import functools

import jax
import jax.numpy as jnp
from jax.experimental import pallas as pl
from jax.experimental.pallas import tpu as pltpu

EPS = 1e-5
LANE = 128                      # internal channel dims are padded to lane width


# ----------------------------------------------------------------------------
# Fused kernel
# ----------------------------------------------------------------------------
def _bottleneck_kernel(x_ref, w1_ref, b1_ref, w2_ref, b2_ref, w3_ref, b3_ref,
                       res_ref, o_ref, y1_ref, *, n_row_tiles):
    """One (image, row-band) step of the fused bottleneck.

    x_ref  : (H, W, Cin)        bf16 full image (same block for every row tile)
    w1_ref : (Cin, C1p)         bf16, bn1 scale folded in
    b1_ref : (1, C1p)           f32 folded bn1 bias
    w2_ref : (3, 3*C1p, C2p)    bf16, bn2 scale folded in (per-ky, kx-major rows)
    b2_ref : (1, C2p)           f32
    w3_ref : (C2p, C3)          bf16, bn3 scale folded in
    b3_ref : (1, C3)            f32
    res_ref: (TH, W, C3)        bf16 identity row band
    o_ref  : (TH, W, C3)        bf16 output row band
    y1_ref : (TH+2, W+2, C1p)   bf16 scratch: conv1 out + zero halo (= 3x3 pad)
    """
    _, _, Cin = x_ref.shape
    TH, W, C3 = o_ref.shape
    C1p = y1_ref.shape[-1]
    t = pl.program_id(1)

    # ---- Zero ONLY the padding border of the conv1 scratch; the interior is
    #      fully overwritten below (full-tile zeroing burned the vst slot).
    zcol = jnp.zeros((TH + 2, 1, C1p), jnp.bfloat16)
    y1_ref[:, 0:1, :] = zcol                           # left pad column
    y1_ref[:, W + 1:W + 2, :] = zcol                   # right pad column

    @pl.when(t == 0)                                   # top "padding=1" row
    def _():
        y1_ref[0:1, :, :] = jnp.zeros((1, W + 2, C1p), jnp.bfloat16)

    @pl.when(t == n_row_tiles - 1)                     # bottom padding row
    def _():
        y1_ref[TH + 1:TH + 2, :, :] = jnp.zeros((1, W + 2, C1p), jnp.bfloat16)

    # ---- Stage 1: 1x1 conv + folded-BN bias + ReLU.  One 2-D matmul per step
    #      covering the owned rows plus the 3x3 halo rows (merged).
    def conv1_band(src_row, nrows, dst_row):
        xin = x_ref[pl.ds(src_row, nrows)].reshape(nrows * W, Cin)
        a = jnp.dot(xin, w1_ref[...], preferred_element_type=jnp.float32)
        a = jnp.maximum(a + b1_ref[...], 0.0)
        y1_ref[dst_row:dst_row + nrows, 1:1 + W, :] = (
            a.reshape(nrows, W, C1p).astype(jnp.bfloat16))

    if n_row_tiles == 1:
        conv1_band(0, TH, 1)
    else:
        @pl.when(t == 0)
        def _():
            conv1_band(0, TH + 1, 1)                   # owned rows + bottom halo

        @pl.when(t == n_row_tiles - 1)
        def _():
            conv1_band(t * TH - 1, TH + 1, 0)          # top halo + owned rows

        if n_row_tiles > 2:
            @pl.when(jnp.logical_and(t > 0, t < n_row_tiles - 1))
            def _():
                conv1_band(t * TH - 1, TH + 2, 0)      # both halos + owned rows

    # ---- Stage 2: 3x3 conv (pad=1, stride=1) as kx-im2col: ONE sublane-shifted
    #      copy per kx (reused by all ky), then 3 matmuls with K = 3*C1p.
    #      Partial sums stay in f32 values -> no scratch read-modify-writes.
    # TODO(synk): on v7x this could instead accumulate in the MXU result buffer
    #             via pltpu.matmul_push_rhs / matmul_acc_lhs / matmul_pop.
    slab = jnp.concatenate(
        [y1_ref[:, 0:W, :], y1_ref[:, 1:1 + W, :], y1_ref[:, 2:2 + W, :]],
        axis=-1)                                       # (TH+2, W, 3*C1p) bf16
    acc = None
    for ky in range(3):
        rows = slab[ky:ky + TH].reshape(TH * W, slab.shape[-1])
        part = jnp.dot(rows, w2_ref[ky, :, :], preferred_element_type=jnp.float32)
        acc = part if acc is None else acc + part
    y2 = jnp.maximum(acc + b2_ref[...], 0.0).astype(jnp.bfloat16)   # (TH*W, C2p)

    # ---- Stage 3: 1x1 conv + folded-BN bias + residual + ReLU (f32 epilogue).
    y3 = jnp.dot(y2, w3_ref[...], preferred_element_type=jnp.float32)
    y3 = y3 + b3_ref[...] + res_ref[...].astype(jnp.float32).reshape(TH * W, C3)
    o_ref[...] = jnp.maximum(y3, 0.0).astype(o_ref.dtype).reshape(TH, W, C3)


# ----------------------------------------------------------------------------
# Wrapper helpers
# ----------------------------------------------------------------------------
def _bn_fold(gamma, beta, mean, var, eps=EPS):
    scale = gamma / jnp.sqrt(var + eps)
    return scale, beta - mean * scale


def _pad_axis(a, axis, new_size):
    if a.shape[axis] == new_size:
        return a
    pad = [(0, 0)] * a.ndim
    pad[axis] = (0, new_size - a.shape[axis])
    return jnp.pad(a, pad)


def _round_up(v, m):
    return ((v + m - 1) // m) * m


def _vmem_limits():
    """(explicit-accounting budget, vmem_limit_bytes), sized per TPU generation."""
    try:
        cap = int(getattr(pltpu.get_tpu_info(), "vmem_capacity_bytes",
                          64 * 1024 * 1024))
    except Exception:                       # interpret mode / old runtimes
        cap = 64 * 1024 * 1024
    limit = min(int(cap * 0.75), 100 * 1024 * 1024)   # ~96 MiB v5e/v6e, ~48 MiB v7x
    return int(limit * 0.8), limit


def _choose_row_tile(N, H, W, c_in, c1, c2, c3, budget_bytes):
    """Largest divisor of H whose per-step VMEM footprint (including the
    double-buffered weights) fits the budget.  Only when N == 1 do we force
    >=2 row tiles so the v7x megacore has a grid axis to shard."""
    bf16, f32 = 2, 4
    weights = (2 * (c_in * c1 + 9 * c1 * c2 + c2 * c3) * bf16
               + 2 * (c1 + c2 + c3) * f32)             # double-buffered input specs
    x_block = 2 * H * W * c_in * bf16                  # full-image input block

    def tile_bytes(th):
        y1 = (th + 2) * (W + 2) * c1 * bf16            # conv1 scratch (+halo)
        slab = (th + 2) * W * 3 * c1 * bf16            # kx-im2col temporary
        s2 = 2 * th * W * c2 * f32 + th * W * c2 * bf16  # f32 acc/part + bf16 y2
        s3 = 2 * th * W * c3 * f32                     # f32 result + f32 residual
        io = 2 * th * W * c3 * bf16 * 2                # dbl-buffered bf16 out + identity
        return weights + x_block + y1 + slab + s2 + s3 + io

    divisors = [d for d in range(1, H + 1) if H % d == 0]
    fitting = [d for d in divisors if tile_bytes(d) <= budget_bytes] or [1]
    if N == 1:
        fitting = [d for d in fitting if d <= max(H // 2, 1)] or fitting
    return max(fitting)


# ----------------------------------------------------------------------------
# Public entry points
# ----------------------------------------------------------------------------
def bottleneck_forward_nhwc(x, params, identity=None, row_tile=None):
    """Fused Pallas Bottleneck forward.  NHWC in / NHWC out (bf16), eval-mode BN."""
    x = x.astype(jnp.bfloat16)
    identity = x if identity is None else identity.astype(jnp.bfloat16)

    N, H, W, Cin = x.shape
    C1 = params["conv1_w"].shape[1]
    C2 = params["conv2_w"].shape[-1]
    C3 = params["conv3_w"].shape[-1]
    assert identity.shape == (N, H, W, C3), "identity must match conv3 output"

    # Internal channel dims padded to lane width; Cin/C3 (HBM streams) untouched.
    C1p, C2p = _round_up(C1, LANE), _round_up(C2, LANE)

    # Fold each BN scale into its conv weights; every epilogue is bias + ReLU.
    s1, b1 = _bn_fold(*params["bn1"])
    s2, b2 = _bn_fold(*params["bn2"])
    s3, b3 = _bn_fold(*params["bn3"])
    w1 = _pad_axis((params["conv1_w"] * s1[None, :]).astype(jnp.bfloat16), 1, C1p)
    w2 = (params["conv2_w"] * s2[None, None, None, :]).astype(jnp.bfloat16)
    w2 = _pad_axis(_pad_axis(w2, 2, C1p), 3, C2p).reshape(3, 3 * C1p, C2p)
    w3 = _pad_axis((params["conv3_w"] * s3[None, :]).astype(jnp.bfloat16), 0, C2p)
    b1 = _pad_axis(b1.reshape(1, C1).astype(jnp.float32), 1, C1p)
    b2 = _pad_axis(b2.reshape(1, C2).astype(jnp.float32), 1, C2p)
    b3 = b3.reshape(1, C3).astype(jnp.float32)

    budget, vmem_limit = _vmem_limits()
    TH = row_tile if row_tile is not None else _choose_row_tile(
        N, H, W, Cin, C1p, C2p, C3, budget)
    assert H % TH == 0, "row_tile must divide H"
    n_row_tiles = H // TH

    kernel = functools.partial(_bottleneck_kernel, n_row_tiles=n_row_tiles)
    return pl.pallas_call(
        kernel,
        out_shape=jax.ShapeDtypeStruct((N, H, W, C3), jnp.bfloat16),
        grid=(N, n_row_tiles),
        in_specs=[
            # Full image; block index constant over t -> fetched once per image.
            pl.BlockSpec((None, H, W, Cin), lambda n, t: (n, 0, 0, 0)),
            # TODO(synk): pipeline_mode=pl.Buffered(1) on these constant-index
            # weight specs would halve their VMEM; default kept for portability
            # (their footprint is counted x2 in _choose_row_tile instead).
            pl.BlockSpec((Cin, C1p), lambda n, t: (0, 0)),
            pl.BlockSpec((1, C1p), lambda n, t: (0, 0)),
            pl.BlockSpec((3, 3 * C1p, C2p), lambda n, t: (0, 0, 0)),
            pl.BlockSpec((1, C2p), lambda n, t: (0, 0)),
            pl.BlockSpec((C2p, C3), lambda n, t: (0, 0)),
            pl.BlockSpec((1, C3), lambda n, t: (0, 0)),
            pl.BlockSpec((None, TH, W, C3), lambda n, t: (n, t, 0, 0)),  # identity
        ],
        out_specs=pl.BlockSpec((None, TH, W, C3), lambda n, t: (n, t, 0, 0)),
        scratch_shapes=[pltpu.VMEM((TH + 2, W + 2, C1p), jnp.bfloat16)],
        compiler_params=pltpu.CompilerParams(
            dimension_semantics=("parallel", "parallel"),
            vmem_limit_bytes=vmem_limit),
    )(x, w1, b1, w2, b2, w3, b3, identity)


def bottleneck_forward(x_nchw, params, stride=1, downsample=None, row_tile=None):
    """NCHW-facing wrapper matching the PyTorch module (eval-mode BN, bf16 out).

    The NCHW<->NHWC transposes are pure layout plumbing; in an end-to-end NHWC
    model call bottleneck_forward_nhwc directly and they disappear.
    """
    if stride != 1:
        # TODO(synk): the original module applies stride in conv2 AND conv3 with
        # mismatched BN sizes, which cannot compose with the residual add; only
        # the stride=1 path is implemented here.
        raise NotImplementedError("only stride=1 is supported by the fused kernel")
    identity_nchw = x_nchw if downsample is None else downsample(x_nchw)
    x = jnp.transpose(x_nchw, (0, 2, 3, 1))
    identity = jnp.transpose(identity_nchw, (0, 2, 3, 1))
    out = bottleneck_forward_nhwc(x, params, identity=identity, row_tile=row_tile)
    return jnp.transpose(out, (0, 3, 1, 2))


# ----------------------------------------------------------------------------
# Pure-JAX reference (f32) for a sanity check
# ----------------------------------------------------------------------------
def reference_forward(x_nchw, params):
    x = jnp.transpose(x_nchw, (0, 2, 3, 1)).astype(jnp.float32)

    def bn(y, p):
        g, b, m, v = p
        return (y - m) / jnp.sqrt(v + EPS) * g + b

    out = jnp.einsum("nhwc,cd->nhwd", x, params["conv1_w"])
    out = jax.nn.relu(bn(out, params["bn1"]))
    out = jax.lax.conv_general_dilated(
        out, params["conv2_w"], window_strides=(1, 1),
        padding=((1, 1), (1, 1)), dimension_numbers=("NHWC", "HWIO", "NHWC"))
    out = jax.nn.relu(bn(out, params["bn2"]))
    out = jnp.einsum("nhwc,cd->nhwd", out, params["conv3_w"])
    out = jax.nn.relu(bn(out, params["bn3"]) + x)
    return jnp.transpose(out, (0, 3, 1, 2))


# ----------------------------------------------------------------------------
# Deterministic parameter construction
# ----------------------------------------------------------------------------
def make_params(key, in_c, out_c, expansion=4):
    ks = jax.random.split(key, 8)

    def bn_params(k, c):
        k1, k2, k3, k4 = jax.random.split(k, 4)
        gamma = jax.random.uniform(k1, (c,), jnp.float32, 0.5, 1.5)
        beta = jax.random.normal(k2, (c,), jnp.float32) * 0.1
        mean = jax.random.normal(k3, (c,), jnp.float32) * 0.1
        var = jax.random.uniform(k4, (c,), jnp.float32, 0.5, 1.5)
        return (gamma, beta, mean, var)

    return dict(
        conv1_w=jax.random.normal(ks[0], (in_c, out_c), jnp.float32) * 0.1,
        conv2_w=jax.random.normal(ks[1], (3, 3, out_c, out_c * expansion),
                                  jnp.float32) * 0.1,
        # TODO(synk): original module declares Conv2d(out_channel, out_channel)
        # for conv3 even though its input carries out_channel*4 channels.
        conv3_w=jax.random.normal(ks[2], (out_c * expansion, out_c),
                                  jnp.float32) * 0.1,
        bn1=bn_params(ks[3], out_c),
        # TODO(synk): original module declares BatchNorm2d(out_channel) for bn2
        # even though conv2 emits out_channel*4 channels.
        bn2=bn_params(ks[4], out_c * expansion),
        # TODO(synk): original module declares BatchNorm2d(out_channel*4) for
        # bn3 even though conv3 emits out_channel channels.
        bn3=bn_params(ks[5], out_c),
    )


if __name__ == "__main__":
    key = jax.random.PRNGKey(0)
    k_params, k_x = jax.random.split(key)

    N, in_c, H, W = 2, 8, 16, 16
    out_c = 8                       # in_c == out_c, stride=1 -> identity add works
    params = make_params(k_params, in_c, out_c)

    x = jax.random.normal(k_x, (N, in_c, H, W), jnp.float32)
    # The kernel runs its matmuls / residual in bf16; quantize the input once so
    # the f32 reference sees exactly the same residual values.
    x = x.astype(jnp.bfloat16).astype(jnp.float32)

    y_ref = reference_forward(x, params)

    # Default tiling (single row tile at this size).
    fwd = jax.jit(functools.partial(bottleneck_forward, stride=1, downsample=None))
    y = jax.block_until_ready(fwd(x, params)).astype(jnp.float32)
    assert y.shape == y_ref.shape == (N, out_c, H, W)
    assert jnp.allclose(y, y_ref, atol=5e-2, rtol=5e-2), (
        float(jnp.max(jnp.abs(y - y_ref))))

    # Forced multi-row-tile run to exercise the halo / border paths.
    fwd_tiled = jax.jit(functools.partial(bottleneck_forward, stride=1,
                                          downsample=None, row_tile=4))
    y_t = jax.block_until_ready(fwd_tiled(x, params)).astype(jnp.float32)
    assert jnp.allclose(y_t, y_ref, atol=5e-2, rtol=5e-2), (
        float(jnp.max(jnp.abs(y_t - y_ref))))

    print("KERNEL_OK")
</pallas_src>

<mosaic_0001>
module attributes {stable_mosaic.version = 11 : i64} {
  func.func @_bottleneck_kernel(%arg0: i32, %arg1: i32, %arg2: memref<1x16x16x8xbf16, #tpu.memory_space<vmem>>, %arg3: memref<8x128xbf16, #tpu.memory_space<vmem>>, %arg4: memref<1x128xf32, #tpu.memory_space<vmem>>, %arg5: memref<3x384x128xbf16, #tpu.memory_space<vmem>>, %arg6: memref<1x128xf32, #tpu.memory_space<vmem>>, %arg7: memref<128x8xbf16, #tpu.memory_space<vmem>>, %arg8: memref<1x8xf32, #tpu.memory_space<vmem>>, %arg9: memref<1x16x16x8xbf16, #tpu.memory_space<vmem>>, %arg10: memref<1x16x16x8xbf16, #tpu.memory_space<vmem>>, %arg11: memref<18x18x128xbf16, #tpu.memory_space<vmem>>) attributes {dimension_semantics = [#tpu.dimension_semantics<parallel>, #tpu.dimension_semantics<parallel>], iteration_bounds = array<i64: 2, 1>, scalar_prefetch = 0 : i64, scratch_operands = 1 : i64, tpu.core_type = #tpu.core_type<tc>, window_params = [{transform_indices = @transform_0, window_bounds = array<i64: 1, 16, 16, 8>}, {pipeline_mode = #tpu.pipeline_mode<synchronous>, transform_indices = @transform_1, window_bounds = array<i64: 8, 128>}, {pipeline_mode = #tpu.pipeline_mode<synchronous>, transform_indices = @transform_2, window_bounds = array<i64: 1, 128>}, {pipeline_mode = #tpu.pipeline_mode<synchronous>, transform_indices = @transform_3, window_bounds = array<i64: 3, 384, 128>}, {pipeline_mode = #tpu.pipeline_mode<synchronous>, transform_indices = @transform_4, window_bounds = array<i64: 1, 128>}, {pipeline_mode = #tpu.pipeline_mode<synchronous>, transform_indices = @transform_5, window_bounds = array<i64: 128, 8>}, {pipeline_mode = #tpu.pipeline_mode<synchronous>, transform_indices = @transform_6, window_bounds = array<i64: 1, 8>}, {transform_indices = @transform_7, window_bounds = array<i64: 1, 16, 16, 8>}, {transform_indices = @transform_8, window_bounds = array<i64: 1, 16, 16, 8>}]} {
    %cst = arith.constant 0.000000e+00 : bf16
    %0 = vector.broadcast %cst : bf16 to vector<18x1x128xbf16>
    %c0 = arith.constant 0 : index
    %c0_0 = arith.constant 0 : index
    %c0_1 = arith.constant 0 : index
    %1 = vector.load %arg11[%c0, %c0_0, %c0_1] : memref<18x18x128xbf16, #tpu.memory_space<vmem>>, vector<18x1x128xbf16>
    tpu.vector_store %arg11[%c0, %c0_0, %c0_1], %0 {strides = array<i32>} : memref<18x18x128xbf16, #tpu.memory_space<vmem>>, vector<18x1x128xbf16>,
    %c0_2 = arith.constant 0 : index
    %c17 = arith.constant 17 : index
    %c0_3 = arith.constant 0 : index
    %2 = vector.load %arg11[%c0_2, %c17, %c0_3] : memref<18x18x128xbf16, #tpu.memory_space<vmem>>, vector<18x1x128xbf16>
    tpu.vector_store %arg11[%c0_2, %c17, %c0_3], %0 {strides = array<i32>} : memref<18x18x128xbf16, #tpu.memory_space<vmem>>, vector<18x1x128xbf16>,
    %c0_i32 = arith.constant 0 : i32
    %3 = arith.cmpi eq, %arg1, %c0_i32 : i32
    %4 = arith.extui %3 : i1 to i32
    %c0_i32_4 = arith.constant 0 : i32
    %5 = arith.cmpi ne, %4, %c0_i32_4 : i32
    scf.if %5 {
      %cst_56 = arith.constant 0.000000e+00 : bf16
      %66 = vector.broadcast %cst_56 : bf16 to vector<1x18x128xbf16>
      %c0_57 = arith.constant 0 : index
      %c0_58 = arith.constant 0 : index
      %c0_59 = arith.constant 0 : index
      %67 = vector.load %arg11[%c0_57, %c0_58, %c0_59] : memref<18x18x128xbf16, #tpu.memory_space<vmem>>, vector<1x18x128xbf16>
      tpu.vector_store %arg11[%c0_57, %c0_58, %c0_59], %66 {strides = array<i32>} : memref<18x18x128xbf16, #tpu.memory_space<vmem>>, vector<1x18x128xbf16>,
    } else {
    }
    %c0_i32_5 = arith.constant 0 : i32
    %6 = arith.cmpi eq, %arg1, %c0_i32_5 : i32
    %7 = arith.extui %6 : i1 to i32
    %c0_i32_6 = arith.constant 0 : i32
    %8 = arith.cmpi ne, %7, %c0_i32_6 : i32
    scf.if %8 {
      %cst_56 = arith.constant 0.000000e+00 : bf16
      %66 = vector.broadcast %cst_56 : bf16 to vector<1x18x128xbf16>
      %c17_57 = arith.constant 17 : index
      %c0_58 = arith.constant 0 : index
      %c0_59 = arith.constant 0 : index
      %67 = vector.load %arg11[%c17_57, %c0_58, %c0_59] : memref<18x18x128xbf16, #tpu.memory_space<vmem>>, vector<1x18x128xbf16>
      tpu.vector_store %arg11[%c17_57, %c0_58, %c0_59], %66 {strides = array<i32>} : memref<18x18x128xbf16, #tpu.memory_space<vmem>>, vector<1x18x128xbf16>,
    } else {
    }
    %c0_7 = arith.constant 0 : index
    %c0_8 = arith.constant 0 : index
    %c0_9 = arith.constant 0 : index
    %c0_10 = arith.constant 0 : index
    %9 = vector.load %arg2[%c0_7, %c0_8, %c0_9, %c0_10] : memref<1x16x16x8xbf16, #tpu.memory_space<vmem>>, vector<1x16x16x8xbf16>
    %10 = vector.shape_cast %9 : vector<1x16x16x8xbf16> to vector<16x16x8xbf16>
    %11 = vector.shape_cast %10 : vector<16x16x8xbf16> to vector<256x8xbf16>
    %c0_11 = arith.constant 0 : index
    %c0_12 = arith.constant 0 : index
    %12 = vector.load %arg3[%c0_11, %c0_12] : memref<8x128xbf16, #tpu.memory_space<vmem>>, vector<8x128xbf16>
    %cst_13 = arith.constant dense<0.000000e+00> : vector<256x128xf32>
    %13 = tpu.matmul %11, %12, %cst_13 {dimension_numbers = #tpu.dot_dimension_numbers<[1], [0], [0], [1], [0, 0, 1, 1], [], []>} : vector<256x8xbf16>, vector<8x128xbf16>, vector<256x128xf32> -> vector<256x128xf32>
    %c0_14 = arith.constant 0 : index
    %c0_15 = arith.constant 0 : index
    %14 = vector.load %arg4[%c0_14, %c0_15] : memref<1x128xf32, #tpu.memory_space<vmem>>, vector<1x128xf32>
    %15 = vector.broadcast %14 : vector<1x128xf32> to vector<256x128xf32>
    %16 = arith.addf %13, %15 : vector<256x128xf32>
    %cst_16 = arith.constant 0.000000e+00 : f32
    %17 = vector.broadcast %cst_16 : f32 to vector<256x128xf32>
    %18 = arith.maximumf %16, %17 : vector<256x128xf32>
    %19 = vector.shape_cast %18 : vector<256x128xf32> to vector<16x16x128xf32>
    %20 = arith.truncf %19 : vector<16x16x128xf32> to vector<16x16x128xbf16>
    %c1 = arith.constant 1 : index
    %c1_17 = arith.constant 1 : index
    %c0_18 = arith.constant 0 : index
    %21 = vector.load %arg11[%c1, %c1_17, %c0_18] : memref<18x18x128xbf16, #tpu.memory_space<vmem>>, vector<16x16x128xbf16>
    tpu.vector_store %arg11[%c1, %c1_17, %c0_18], %20 {strides = array<i32>} : memref<18x18x128xbf16, #tpu.memory_space<vmem>>, vector<16x16x128xbf16>,
    %c0_19 = arith.constant 0 : index
    %c0_20 = arith.constant 0 : index
    %c0_21 = arith.constant 0 : index
    %22 = vector.load %arg11[%c0_19, %c0_20, %c0_21] : memref<18x18x128xbf16, #tpu.memory_space<vmem>>, vector<18x16x128xbf16>
    %c0_22 = arith.constant 0 : index
    %c1_23 = arith.constant 1 : index
    %c0_24 = arith.constant 0 : index
    %23 = vector.load %arg11[%c0_22, %c1_23, %c0_24] : memref<18x18x128xbf16, #tpu.memory_space<vmem>>, vector<18x16x128xbf16>
    %c0_25 = arith.constant 0 : index
    %c2 = arith.constant 2 : index
    %c0_26 = arith.constant 0 : index
    %24 = vector.load %arg11[%c0_25, %c2, %c0_26] : memref<18x18x128xbf16, #tpu.memory_space<vmem>>, vector<18x16x128xbf16>
    %25 = tpu.concatenate %22, %23, %24 in 2 : vector<18x16x128xbf16>, vector<18x16x128xbf16>, vector<18x16x128xbf16> -> vector<18x16x384xbf16>
    %26 = vector.extract_strided_slice %25 {offsets = [0, 0, 0], sizes = [16, 16, 384], strides = [1, 1, 1]} : vector<18x16x384xbf16> to vector<16x16x384xbf16>
    %27 = vector.shape_cast %26 : vector<16x16x384xbf16> to vector<256x384xbf16>
    %c0_27 = arith.constant 0 : index
    %c0_28 = arith.constant 0 : index
    %c0_29 = arith.constant 0 : index
    %28 = vector.load %arg5[%c0_27, %c0_28, %c0_29] : memref<3x384x128xbf16, #tpu.memory_space<vmem>>, vector<1x384x128xbf16>
    %29 = vector.shape_cast %28 : vector<1x384x128xbf16> to vector<384x128xbf16>
    %cst_30 = arith.constant dense<0.000000e+00> : vector<256x128xf32>
    %30 = tpu.matmul %27, %29, %cst_30 {dimension_numbers = #tpu.dot_dimension_numbers<[1], [0], [0], [1], [0, 0, 1, 1], [], []>} : vector<256x384xbf16>, vector<384x128xbf16>, vector<256x128xf32> -> vector<256x128xf32>
    %31 = vector.extract_strided_slice %25 {offsets = [1, 0, 0], sizes = [16, 16, 384], strides = [1, 1, 1]} : vector<18x16x384xbf16> to vector<16x16x384xbf16>
    %32 = vector.shape_cast %31 : vector<16x16x384xbf16> to vector<256x384xbf16>
    %c1_31 = arith.constant 1 : index
    %c0_32 = arith.constant 0 : index
    %c0_33 = arith.constant 0 : index
    %33 = vector.load %arg5[%c1_31, %c0_32, %c0_33] : memref<3x384x128xbf16, #tpu.memory_space<vmem>>, vector<1x384x128xbf16>
    %34 = vector.shape_cast %33 : vector<1x384x128xbf16> to vector<384x128xbf16>
    %cst_34 = arith.constant dense<0.000000e+00> : vector<256x128xf32>
    %35 = tpu.matmul %32, %34, %cst_34 {dimension_numbers = #tpu.dot_dimension_numbers<[1], [0], [0], [1], [0, 0, 1, 1], [], []>} : vector<256x384xbf16>, vector<384x128xbf16>, vector<256x128xf32> -> vector<256x128xf32>
    %36 = arith.addf %30, %35 : vector<256x128xf32>
    %37 = vector.extract_strided_slice %25 {offsets = [2, 0, 0], sizes = [16, 16, 384], strides = [1, 1, 1]} : vector<18x16x384xbf16> to vector<16x16x384xbf16>
    %38 = vector.shape_cast %37 : vector<16x16x384xbf16> to vector<256x384xbf16>
    %c2_35 = arith.constant 2 : index
    %c0_36 = arith.constant 0 : index
    %c0_37 = arith.constant 0 : index
    %39 = vector.load %arg5[%c2_35, %c0_36, %c0_37] : memref<3x384x128xbf16, #tpu.memory_space<vmem>>, vector<1x384x128xbf16>
    %40 = vector.shape_cast %39 : vector<1x384x128xbf16> to vector<384x128xbf16>
    %cst_38 = arith.constant dense<0.000000e+00> : vector<256x128xf32>
    %41 = tpu.matmul %38, %40, %cst_38 {dimension_numbers = #tpu.dot_dimension_numbers<[1], [0], [0], [1], [0, 0, 1, 1], [], []>} : vector<256x384xbf16>, vector<384x128xbf16>, vector<256x128xf32> -> vector<256x128xf32>
    %42 = arith.addf %36, %41 : vector<256x128xf32>
    %c0_39 = arith.constant 0 : index
    %c0_40 = arith.constant 0 : index
    %43 = vector.load %arg6[%c0_39, %c0_40] : memref<1x128xf32, #tpu.memory_space<vmem>>, vector<1x128xf32>
    %44 = vector.broadcast %43 : vector<1x128xf32> to vector<256x128xf32>
    %45 = arith.addf %42, %44 : vector<256x128xf32>
    %cst_41 = arith.constant 0.000000e+00 : f32
    %46 = vector.broadcast %cst_41 : f32 to vector<256x128xf32>
    %47 = arith.maximumf %45, %46 : vector<256x128xf32>
    %48 = arith.truncf %47 : vector<256x128xf32> to vector<256x128xbf16>
    %c0_42 = arith.constant 0 : index
    %c0_43 = arith.constant 0 : index
    %49 = vector.load %arg7[%c0_42, %c0_43] : memref<128x8xbf16, #tpu.memory_space<vmem>>, vector<128x8xbf16>
    %cst_44 = arith.constant dense<0.000000e+00> : vector<256x8xf32>
    %50 = tpu.matmul %48, %49, %cst_44 {dimension_numbers = #tpu.dot_dimension_numbers<[1], [0], [0], [1], [0, 0, 1, 1], [], []>} : vector<256x128xbf16>, vector<128x8xbf16>, vector<256x8xf32> -> vector<256x8xf32>
    %c0_45 = arith.constant 0 : index
    %c0_46 = arith.constant 0 : index
    %51 = vector.load %arg8[%c0_45, %c0_46] : memref<1x8xf32, #tpu.memory_space<vmem>>, vector<1x8xf32>
    %52 = vector.broadcast %51 : vector<1x8xf32> to vector<256x8xf32>
    %53 = arith.addf %50, %52 : vector<256x8xf32>
    %c0_47 = arith.constant 0 : index
    %c0_48 = arith.constant 0 : index
    %c0_49 = arith.constant 0 : index
    %c0_50 = arith.constant 0 : index
    %54 = vector.load %arg9[%c0_47, %c0_48, %c0_49, %c0_50] : memref<1x16x16x8xbf16, #tpu.memory_space<vmem>>, vector<1x16x16x8xbf16>
    %55 = vector.shape_cast %54 : vector<1x16x16x8xbf16> to vector<16x16x8xbf16>
    %56 = arith.extf %55 : vector<16x16x8xbf16> to vector<16x16x8xf32>
    %57 = vector.shape_cast %56 : vector<16x16x8xf32> to vector<256x8xf32>
    %58 = arith.addf %53, %57 : vector<256x8xf32>
    %cst_51 = arith.constant 0.000000e+00 : f32
    %59 = vector.broadcast %cst_51 : f32 to vector<256x8xf32>
    %60 = arith.maximumf %58, %59 : vector<256x8xf32>
    %61 = arith.truncf %60 : vector<256x8xf32> to vector<256x8xbf16>
    %62 = vector.shape_cast %61 : vector<256x8xbf16> to vector<16x16x8xbf16>
    %c0_52 = arith.constant 0 : index
    %c0_53 = arith.constant 0 : index
    %c0_54 = arith.constant 0 : index
    %c0_55 = arith.constant 0 : index
    %63 = vector.load %arg10[%c0_52, %c0_53, %c0_54, %c0_55] : memref<1x16x16x8xbf16, #tpu.memory_space<vmem>>, vector<1x16x16x8xbf16>
    %64 = vector.shape_cast %63 : vector<1x16x16x8xbf16> to vector<16x16x8xbf16>
    %65 = vector.shape_cast %62 : vector<16x16x8xbf16> to vector<1x16x16x8xbf16>
    tpu.vector_store %arg10[%c0_52, %c0_53, %c0_54, %c0_55], %65 {strides = array<i32>} : memref<1x16x16x8xbf16, #tpu.memory_space<vmem>>, vector<1x16x16x8xbf16>,
    return
  }
  func.func @transform_0(%arg0: i32, %arg1: i32) -> (i32, i32, i32, i32) {
    %c0_i32 = arith.constant 0 : i32
    %c0_i32_0 = arith.constant 0 : i32
    %c0_i32_1 = arith.constant 0 : i32
    %c0_i32_2 = arith.constant 0 : i32
    return %arg0, %c0_i32, %c0_i32_0, %c0_i32_1 : i32, i32, i32, i32
  }
  func.func @transform_1(%arg0: i32, %arg1: i32) -> (i32, i32) {
    %c0_i32 = arith.constant 0 : i32
    %c0_i32_0 = arith.constant 0 : i32
    %c0_i32_1 = arith.constant 0 : i32
    return %c0_i32, %c0_i32_0 : i32, i32
  }
  func.func @transform_2(%arg0: i32, %arg1: i32) -> (i32, i32) {
    %c0_i32 = arith.constant 0 : i32
    %c0_i32_0 = arith.constant 0 : i32
    %c0_i32_1 = arith.constant 0 : i32
    return %c0_i32, %c0_i32_0 : i32, i32
  }
  func.func @transform_3(%arg0: i32, %arg1: i32) -> (i32, i32, i32) {
    %c0_i32 = arith.constant 0 : i32
    %c0_i32_0 = arith.constant 0 : i32
    %c0_i32_1 = arith.constant 0 : i32
    %c0_i32_2 = arith.constant 0 : i32
    return %c0_i32, %c0_i32_0, %c0_i32_1 : i32, i32, i32
  }
  func.func @transform_4(%arg0: i32, %arg1: i32) -> (i32, i32) {
    %c0_i32 = arith.constant 0 : i32
    %c0_i32_0 = arith.constant 0 : i32
    %c0_i32_1 = arith.constant 0 : i32
    return %c0_i32, %c0_i32_0 : i32, i32
  }
  func.func @transform_5(%arg0: i32, %arg1: i32) -> (i32, i32) {
    %c0_i32 = arith.constant 0 : i32
    %c0_i32_0 = arith.constant 0 : i32
    %c0_i32_1 = arith.constant 0 : i32
    return %c0_i32, %c0_i32_0 : i32, i32
  }
  func.func @transform_6(%arg0: i32, %arg1: i32) -> (i32, i32) {
    %c0_i32 = arith.constant 0 : i32
    %c0_i32_0 = arith.constant 0 : i32
    %c0_i32_1 = arith.constant 0 : i32
    return %c0_i32, %c0_i32_0 : i32, i32
  }
  func.func @transform_7(%arg0: i32, %arg1: i32) -> (i32, i32, i32, i32) {
    %c0_i32 = arith.constant 0 : i32
    %c0_i32_0 = arith.constant 0 : i32
    %c0_i32_1 = arith.constant 0 : i32
    return %arg0, %arg1, %c0_i32, %c0_i32_0 : i32, i32, i32, i32
  }
  func.func @transform_8(%arg0: i32, %arg1: i32) -> (i32, i32, i32, i32) {
    %c0_i32 = arith.constant 0 : i32
    %c0_i32_0 = arith.constant 0 : i32
    %c0_i32_1 = arith.constant 0 : i32
    return %arg0, %arg1, %c0_i32, %c0_i32_0 : i32, i32, i32, i32
  }
}

</mosaic_0001>

<llo_original>
// kernel: bottleneck_forward.1
$region0: #{bottleneck_forward.1}
  #allocation0 [shape = 'u32[]', space=smem, size = 0x4, offset = 0x4, fixed_abs, tag = 'smem constant byte address 0x4 - core index']
  #allocation1 [shape = 'u32[144,128]{1,0:T(1,128)}', space=vmem, size = 0x12000, scoped, tag = 'internal scratch']
  #allocation2 [shape = 'bf16[18,18,128]{2,1,0:T(8,128)(2,1)}', space=vmem, size = 0x1b000, scoped, tag = 'scratch operand']
  %s0 = inlined_call_operand.vmem [shape: bf16[2,16,16,8], index: 0, kind: input, shape index: {}, may-alias: {0,7}]
  %s1 = inlined_call_operand.vmem [shape: bf16[8,128], index: 1, kind: input, shape index: {}]
  %s2 = inlined_call_operand.vmem [shape: f32[1,128], index: 2, kind: input, shape index: {}]
  %s3 = inlined_call_operand.vmem [shape: bf16[3,384,128], index: 3, kind: input, shape index: {}]
  %s4 = inlined_call_operand.vmem [shape: f32[1,128], index: 4, kind: input, shape index: {}]
  %s5 = inlined_call_operand.vmem [shape: bf16[128,8], index: 5, kind: input, shape index: {}]
  %s6 = inlined_call_operand.vmem [shape: f32[1,8], index: 6, kind: input, shape index: {}]
  %s7 = inlined_call_operand.vmem [shape: bf16[2,16,16,8], index: 7, kind: input, shape index: {}, may-alias: {0,7}]
  %s8 = inlined_call_operand.vmem [shape: bf16[2,16,16,8], index: 8, kind: output, shape index: {}]
  %s9 = sld [smem:[#allocation0]]
  $region69: #{bottleneck_forward.1} parent=0
    _
  %s11 = ssub.s32 1, %s9
  %s12 = scalar_select 0, %s11, %s9
  loop: start=0, step=1, limit=4
  $region2: #{bottleneck_forward.1} parent=0 // loop_pre_header
    _
  $region3: #{bottleneck_forward.1} parent=0 // loop_header
    %s14 = sphi 0, %s18
    %p15 = scmp.ge.s32.totalorder %s14, 4
    %s21 = sphi 0, %s33
    %s22 = sphi 0, %s29
    %s23 = sphi 0, %s21
    %s24 = sphi 0, %s22
    %s25 = sphi 0, %s23
    %s26 = sphi 0, %s24
    %s36 = sphi 0, %s38
    %s39 = sphi 0, %s36
    %s40 = sphi 0, %s39
    %s56 = sphi 0, %s40
    %s60 = sphi 0, %s60
    %s62 = sphi 0, %s60
    %s63 = sphi 0, %s62
    %s77 = sphi 0, %s63
    %s81 = sphi 0, %s81
    %s83 = sphi 0, %s81
    %s84 = sphi 0, %s83
    %s98 = sphi 0, %s84
    %s102 = sphi 0, %s102
    %s104 = sphi 0, %s102
    %s105 = sphi 0, %s104
    %s119 = sphi 0, %s105
    %s123 = sphi 0, %s123
    %s125 = sphi 0, %s123
    %s126 = sphi 0, %s125
    %s140 = sphi 0, %s126
    %s144 = sphi 0, %s144
    %s146 = sphi 0, %s144
    %s147 = sphi 0, %s146
    %s161 = sphi 0, %s147
    %s165 = sphi 0, %s165
    %s167 = sphi 0, %s165
    %s168 = sphi 0, %s167
    %s182 = sphi 0, %s168
    %s190 = sphi 0, %s192
    %s193 = sphi 0, %s190
    %s194 = sphi 0, %s193
    %s210 = sphi 0, %s194
    %s218 = sphi 0, %s220
    %s221 = sphi 0, %s218
    %s222 = sphi 0, %s221
    %s238 = sphi 0, %s222
  $region4: #{bottleneck_forward.1} parent=0 // loop_header_branch
    %17 = sbr.rel (%p15) target = $region8
  $region5: #{bottleneck_forward.1} parent=0 // loop_body
    %s19 = ssub.s32 %s14, 1
    %s20 = ssub.s32 %s14, 2
    %s27 = sadd.s32 1, %s22
    %p28 = scmp.ge.s32.totalorder %s27, 1
    %s29 = scalar_select %p28, 0, %s27
    %s30 = sadd.s32 1, %s21
    %s31 = scalar_select %p28, %s30, %s21
    %p32 = scmp.ge.s32.totalorder %s31, 2
    %s33 = scalar_select %p32, 0, %s31
    %s34 = ssub.s32 %s21, %s33
    %p35 = scmp.eq.s32.totalorder %s34, 0
    %s37 = sadd.s32 %s36, 1
    %s38 = scalar_select %p35, %s36, %s37
    %p41 = pneg %p35
    %p42 = scmp.eq.s32.totalorder %s14, 1
    %p43 = por %p41, %p42
    %p44 = scmp.ne.s32.totalorder %s36, %s39
    %p45 = scmp.eq.s32.totalorder %s14, 0
    %p46 = por %p44, %p45
    %p47 = scmp.ne.s32.totalorder %s36, %s39
    %p48 = scmp.eq.s32.totalorder %s19, 1
    %p49 = por %p47, %p48
    %p50 = scmp.ne.s32.totalorder %s39, %s40
    %p51 = scmp.eq.s32.totalorder %s19, 0
    %p52 = por %p50, %p51
    %p53 = scmp.ne.s32.totalorder %s39, %s40
    %p54 = scmp.eq.s32.totalorder %s20, 1
    %p55 = por %p53, %p54
    %p57 = scmp.ne.s32.totalorder %s40, %s56
    %p58 = scmp.eq.s32.totalorder %s20, 0
    %p59 = por %p57, %p58
    %s61 = sadd.s32 %s60, 1
    %p64 = scmp.eq.s32.totalorder %s14, 1
    %p65 = scmp.ne.s32.totalorder %s60, %s62
    %p66 = scmp.eq.s32.totalorder %s14, 0
    %p67 = por %p65, %p66
    %p68 = scmp.ne.s32.totalorder %s60, %s62
    %p69 = scmp.eq.s32.totalorder %s19, 1
    %p70 = por %p68, %p69
    %p71 = scmp.ne.s32.totalorder %s62, %s63
    %p72 = scmp.eq.s32.totalorder %s19, 0
    %p73 = por %p71, %p72
    %p74 = scmp.ne.s32.totalorder %s62, %s63
    %p75 = scmp.eq.s32.totalorder %s20, 1
    %p76 = por %p74, %p75
    %p78 = scmp.ne.s32.totalorder %s63, %s77
    %p79 = scmp.eq.s32.totalorder %s20, 0
    %p80 = por %p78, %p79
    %s82 = sadd.s32 %s81, 1
    %p85 = scmp.eq.s32.totalorder %s14, 1
    %p86 = scmp.ne.s32.totalorder %s81, %s83
    %p87 = scmp.eq.s32.totalorder %s14, 0
    %p88 = por %p86, %p87
    %p89 = scmp.ne.s32.totalorder %s81, %s83
    %p90 = scmp.eq.s32.totalorder %s19, 1
    %p91 = por %p89, %p90
    %p92 = scmp.ne.s32.totalorder %s83, %s84
    %p93 = scmp.eq.s32.totalorder %s19, 0
    %p94 = por %p92, %p93
    %p95 = scmp.ne.s32.totalorder %s83, %s84
    %p96 = scmp.eq.s32.totalorder %s20, 1
    %p97 = por %p95, %p96
    %p99 = scmp.ne.s32.totalorder %s84, %s98
    %p100 = scmp.eq.s32.totalorder %s20, 0
    %p101 = por %p99, %p100
    %s103 = sadd.s32 %s102, 1
    %p106 = scmp.eq.s32.totalorder %s14, 1
    %p107 = scmp.ne.s32.totalorder %s102, %s104
    %p108 = scmp.eq.s32.totalorder %s14, 0
    %p109 = por %p107, %p108
    %p110 = scmp.ne.s32.totalorder %s102, %s104
    %p111 = scmp.eq.s32.totalorder %s19, 1
    %p112 = por %p110, %p111
    %p113 = scmp.ne.s32.totalorder %s104, %s105
    %p114 = scmp.eq.s32.totalorder %s19, 0
    %p115 = por %p113, %p114
    %p116 = scmp.ne.s32.totalorder %s104, %s105
    %p117 = scmp.eq.s32.totalorder %s20, 1
    %p118 = por %p116, %p117
    %p120 = scmp.ne.s32.totalorder %s105, %s119
    %p121 = scmp.eq.s32.totalorder %s20, 0
    %p122 = por %p120, %p121
    %s124 = sadd.s32 %s123, 1
    %p127 = scmp.eq.s32.totalorder %s14, 1
    %p128 = scmp.ne.s32.totalorder %s123, %s125
    %p129 = scmp.eq.s32.totalorder %s14, 0
    %p130 = por %p128, %p129
    %p131 = scmp.ne.s32.totalorder %s123, %s125
    %p132 = scmp.eq.s32.totalorder %s19, 1
    %p133 = por %p131, %p132
    %p134 = scmp.ne.s32.totalorder %s125, %s126
    %p135 = scmp.eq.s32.totalorder %s19, 0
    %p136 = por %p134, %p135
    %p137 = scmp.ne.s32.totalorder %s125, %s126
    %p138 = scmp.eq.s32.totalorder %s20, 1
    %p139 = por %p137, %p138
    %p141 = scmp.ne.s32.totalorder %s126, %s140
    %p142 = scmp.eq.s32.totalorder %s20, 0
    %p143 = por %p141, %p142
    %s145 = sadd.s32 %s144, 1
    %p148 = scmp.eq.s32.totalorder %s14, 1
    %p149 = scmp.ne.s32.totalorder %s144, %s146
    %p150 = scmp.eq.s32.totalorder %s14, 0
    %p151 = por %p149, %p150
    %p152 = scmp.ne.s32.totalorder %s144, %s146
    %p153 = scmp.eq.s32.totalorder %s19, 1
    %p154 = por %p152, %p153
    %p155 = scmp.ne.s32.totalorder %s146, %s147
    %p156 = scmp.eq.s32.totalorder %s19, 0
    %p157 = por %p155, %p156
    %p158 = scmp.ne.s32.totalorder %s146, %s147
    %p159 = scmp.eq.s32.totalorder %s20, 1
    %p160 = por %p158, %p159
    %p162 = scmp.ne.s32.totalorder %s147, %s161
    %p163 = scmp.eq.s32.totalorder %s20, 0
    %p164 = por %p162, %p163
    %s166 = sadd.s32 %s165, 1
    %p169 = scmp.eq.s32.totalorder %s14, 1
    %p170 = scmp.ne.s32.totalorder %s165, %s167
    %p171 = scmp.eq.s32.totalorder %s14, 0
    %p172 = por %p170, %p171
    %p173 = scmp.ne.s32.totalorder %s165, %s167
    %p174 = scmp.eq.s32.totalorder %s19, 1
    %p175 = por %p173, %p174
    %p176 = scmp.ne.s32.totalorder %s167, %s168
    %p177 = scmp.eq.s32.totalorder %s19, 0
    %p178 = por %p176, %p177
    %p179 = scmp.ne.s32.totalorder %s167, %s168
    %p180 = scmp.eq.s32.totalorder %s20, 1
    %p181 = por %p179, %p180
    %p183 = scmp.ne.s32.totalorder %s168, %s182
    %p184 = scmp.eq.s32.totalorder %s20, 0
    %p185 = por %p183, %p184
    %s186 = ssub.s32 %s21, %s33
    %s187 = ssub.s32 %s22, %s29
    %s188 = sor.u32 %s186, %s187
    %p189 = scmp.eq.s32.totalorder %s188, 0
    %s191 = sadd.s32 %s190, 1
    %s192 = scalar_select %p189, %s190, %s191
    %p195 = pneg %p189
    %p196 = scmp.eq.s32.totalorder %s14, 1
    %p197 = por %p195, %p196
    %p198 = scmp.ne.s32.totalorder %s190, %s193
    %p199 = scmp.eq.s32.totalorder %s14, 0
    %p200 = por %p198, %p199
    %p201 = scmp.ne.s32.totalorder %s190, %s193
    %p202 = scmp.eq.s32.totalorder %s19, 1
    %p203 = por %p201, %p202
    %p204 = scmp.ne.s32.totalorder %s193, %s194
    %p205 = scmp.eq.s32.totalorder %s19, 0
    %p206 = por %p204, %p205
    %p207 = scmp.ne.s32.totalorder %s193, %s194
    %p208 = scmp.eq.s32.totalorder %s20, 1
    %p209 = por %p207, %p208
    %p211 = scmp.ne.s32.totalorder %s194, %s210
    %p212 = scmp.eq.s32.totalorder %s20, 0
    %p213 = por %p211, %p212
    %s214 = ssub.s32 %s21, %s33
    %s215 = ssub.s32 %s22, %s29
    %s216 = sor.u32 %s214, %s215
    %p217 = scmp.eq.s32.totalorder %s216, 0
    %s219 = sadd.s32 %s218, 1
    %s220 = scalar_select %p217, %s218, %s219
    %p223 = pneg %p217
    %p224 = scmp.eq.s32.totalorder %s14, 1
    %p225 = por %p223, %p224
    %p226 = scmp.ne.s32.totalorder %s218, %s221
    %p227 = scmp.eq.s32.totalorder %s14, 0
    %p228 = por %p226, %p227
    %p229 = scmp.ne.s32.totalorder %s218, %s221
    %p230 = scmp.eq.s32.totalorder %s19, 1
    %p231 = por %p229, %p230
    %p232 = scmp.ne.s32.totalorder %s221, %s222
    %p233 = scmp.eq.s32.totalorder %s19, 0
    %p234 = por %p232, %p233
    %p235 = scmp.ne.s32.totalorder %s221, %s222
    %p236 = scmp.eq.s32.totalorder %s20, 1
    %p237 = por %p235, %p236
    %p239 = scmp.ne.s32.totalorder %s222, %s238
    %p240 = scmp.eq.s32.totalorder %s20, 0
    %p241 = por %p239, %p240
    %p242 = scmp.le.s32.totalorder 1, %s14
    %p243 = scmp.lt.s32.totalorder %s14, 3
    %p244 = pnand %p242, %p243
    %p245 = pneg %p244
    // Predicated region
    $region9: #{bottleneck_forward.1} parent=5 // pred_check
      _
    $region10: #{bottleneck_forward.1} parent=5 // pred_check_branch
      %247 = sbr.rel (%p244) target = $region12
    $region11: #{bottleneck_forward.1} parent=5 // pred_region
      %s248 = ssub.s32 %s14, 1
      // Predicated region
      $region13: #{bottleneck_forward.1} parent=11 // pred_check
        %p249 = pneg %p73
      $region14: #{bottleneck_forward.1} parent=11 // pred_check_branch
        %251 = sbr.rel (%p249) target = $region16
      $region15: #{bottleneck_forward.1} parent=11 // pred_region
        _
      $region16: #{bottleneck_forward.1} parent=11 // pred_fallthru
        _
      // Predicated region
      $region17: #{bottleneck_forward.1} parent=11 // pred_check
        %p252 = pneg %p94
      $region18: #{bottleneck_forward.1} parent=11 // pred_check_branch
        %254 = sbr.rel (%p252) target = $region20
      $region19: #{bottleneck_forward.1} parent=11 // pred_region
        _
      $region20: #{bottleneck_forward.1} parent=11 // pred_fallthru
        _
      // Predicated region
      $region21: #{bottleneck_forward.1} parent=11 // pred_check
        %p255 = pneg %p115
      $region22: #{bottleneck_forward.1} parent=11 // pred_check_branch
        %257 = sbr.rel (%p255) target = $region24
      $region23: #{bottleneck_forward.1} parent=11 // pred_region
        _
      $region24: #{bottleneck_forward.1} parent=11 // pred_fallthru
        _
      // Predicated region
      $region25: #{bottleneck_forward.1} parent=11 // pred_check
        %p258 = pneg %p136
      $region26: #{bottleneck_forward.1} parent=11 // pred_check_branch
        %260 = sbr.rel (%p258) target = $region28
      $region27: #{bottleneck_forward.1} parent=11 // pred_region
        _
      $region28: #{bottleneck_forward.1} parent=11 // pred_fallthru
        _
      // Predicated region
      $region29: #{bottleneck_forward.1} parent=11 // pred_check
        %p261 = pneg %p157
      $region30: #{bottleneck_forward.1} parent=11 // pred_check_branch
        %263 = sbr.rel (%p261) target = $region32
      $region31: #{bottleneck_forward.1} parent=11 // pred_region
        _
      $region32: #{bottleneck_forward.1} parent=11 // pred_fallthru
        _
      // Predicated region
      $region33: #{bottleneck_forward.1} parent=11 // pred_check
        %p264 = pneg %p178
      $region34: #{bottleneck_forward.1} parent=11 // pred_check_branch
        %266 = sbr.rel (%p264) target = $region36
      $region35: #{bottleneck_forward.1} parent=11 // pred_region
        _
      $region36: #{bottleneck_forward.1} parent=11 // pred_fallthru
        _
    $region12: #{bottleneck_forward.1} parent=5 // pred_fallthru
      _
    %p267 = scmp.lt.s32.totalorder %s14, 2
    // Predicated region
    $region37: #{bottleneck_forward.1} parent=5 // pred_check
      %p268 = pneg %p267
    $region38: #{bottleneck_forward.1} parent=5 // pred_check_branch
      %270 = sbr.rel (%p268) target = $region40
    $region39: #{bottleneck_forward.1} parent=5 // pred_region
      // Predicated region
      $region41: #{bottleneck_forward.1} parent=39 // pred_check
        %p271 = pneg %p46
      $region42: #{bottleneck_forward.1} parent=39 // pred_check_branch
        %273 = sbr.rel (%p271) target = $region44
      $region43: #{bottleneck_forward.1} parent=39 // pred_region
        %p274 = scmp.lt.s32.totalorder %s21, 1
        %s275 = scalar_select %p274, %s21, 1
        %s276 = smul.addr %s275, 32
        %s277 = smul.addr %s276, 4
        %s278 = scalar_lea.vmem %s0, %s277
      $region44: #{bottleneck_forward.1} parent=39 // pred_fallthru
        _
      // Predicated region
      $region45: #{bottleneck_forward.1} parent=39 // pred_check
        %p279 = pneg %p200
      $region46: #{bottleneck_forward.1} parent=39 // pred_check_branch
        %281 = sbr.rel (%p279) target = $region48
      $region47: #{bottleneck_forward.1} parent=39 // pred_region
        %s282 = smul.u32 16, %s22
        %p283 = scmp.lt.s32.totalorder %s21, 1
        %s284 = scalar_select %p283, %s21, 1
        %p285 = scmp.lt.s32.totalorder %s282, 15
        %s286 = scalar_select %p285, %s282, 15
        %s287 = smul.addr %s286, 2
        %s288 = smul.addr %s284, 32
        %s289 = sadd.s32 %s287, %s288
        %s290 = smul.addr %s289, 4
        %s291 = scalar_lea.vmem %s7, %s290
        %s292 = smul.u32 16, %s22
      $region48: #{bottleneck_forward.1} parent=39 // pred_fallthru
        _
    $region40: #{bottleneck_forward.1} parent=5 // pred_fallthru
      _
    %p293 = scmp.le.s32.totalorder 1, %s14
    %p294 = scmp.lt.s32.totalorder %s14, 3
    %p295 = pnand %p293, %p294
    %p296 = pneg %p295
    // Predicated region
    $region49: #{bottleneck_forward.1} parent=5 // pred_check
      _
    $region50: #{bottleneck_forward.1} parent=5 // pred_check_branch
      %298 = sbr.rel (%p295) target = $region52
    $region51: #{bottleneck_forward.1} parent=5 // pred_region
      %s299 = ssub.s32 %s14, 1
      %p300 = scmp.lt.s32.totalorder %s23, 1
      %s301 = scalar_select %p300, %s23, 1
      %s302 = smul.addr %s301, 32
      %s303 = smul.addr %s302, 4
      %s304 = scalar_lea.vmem %s0, %s303
      %p305 = pneg %p52
      %p306 = pneg %p49
      %p307 = pneg %p73
      %p308 = pneg %p70
      %p309 = pneg %p94
      %p310 = pneg %p91
      %p311 = pneg %p115
      %p312 = pneg %p112
      %p313 = pneg %p136
      %p314 = pneg %p133
      %p315 = pneg %p157
      %p316 = pneg %p154
      %p317 = pneg %p178
      %p318 = pneg %p175
      %s319 = smul.u32 16, %s24
      %p320 = scmp.lt.s32.totalorder %s23, 1
      %s321 = scalar_select %p320, %s23, 1
      %p322 = scmp.lt.s32.totalorder %s319, 15
      %s323 = scalar_select %p322, %s319, 15
      %s324 = smul.addr %s323, 2
      %s325 = smul.addr %s321, 32
      %s326 = sadd.s32 %s324, %s325
      %s327 = smul.addr %s326, 4
      %s328 = scalar_lea.vmem %s7, %s327
      %p329 = pneg %p206
      %p330 = pneg %p203
      %p331 = pneg %p234
      %p332 = pneg %p231
      %s333 = smul.u32 16, %s24
      %p334 = scmp.lt.s32.totalorder %s23, 1
      %s335 = scalar_select %p334, %s23, 1
      %p336 = scmp.lt.s32.totalorder %s333, 15
      %s337 = scalar_select %p336, %s333, 15
      %s338 = smul.addr %s337, 2
      %s339 = smul.addr %s335, 32
      %s340 = sadd.s32 %s338, %s339
      %s341 = smul.addr %s340, 4
      %s342 = scalar_lea.vmem %s8, %s341
      %p343 = scmp.lt.s32.totalorder %s23, 1
      %s344 = scalar_select %p343, %s23, 1
      %s345 = smul.addr %s344, 32
      %s346 = smul.addr %s345, 4
      %s347 = scalar_lea.vmem %s0, %s346
      %s348 = smul.u32 16, %s24
      %p349 = scmp.lt.s32.totalorder %s23, 1
      %s350 = scalar_select %p349, %s23, 1
      %p351 = scmp.lt.s32.totalorder %s348, 15
      %s352 = scalar_select %p351, %s348, 15
      %s353 = smul.addr %s352, 2
      %s354 = smul.addr %s350, 32
      %s355 = sadd.s32 %s353, %s354
      %s356 = smul.addr %s355, 4
      %s357 = scalar_lea.vmem %s7, %s356
      %s358 = smul.u32 16, %s24
      %s359 = smul.u32 16, %s24
      %p360 = scmp.lt.s32.totalorder %s23, 1
      %s361 = scalar_select %p360, %s23, 1
      %p362 = scmp.lt.s32.totalorder %s359, 15
      %s363 = scalar_select %p362, %s359, 15
      %s364 = smul.addr %s363, 2
      %s365 = smul.addr %s361, 32
      %s366 = sadd.s32 %s364, %s365
      %s367 = smul.addr %s366, 4
      %s368 = scalar_lea.vmem %s8, %s367
      %s369 = smul.u32 16, %s24
      %vm371 = vcmask 1040384
      %vm372 = vsmask.f32 256
      %vm373 = vmand %vm371, %vm372
      %v374 = vld [vmem:[#allocation2] sm:$0x1]
      %v375 = vsel %vm373, 0, %v374
      %376 = vst [vmem:[#allocation2] sm:$0x1] %v375
      %v377 = vld [vmem:[#allocation2 + $0xc] sm:$0x1]
      %v378 = vsel %vm373, 0, %v377
      %379 = vst [vmem:[#allocation2 + $0xc] sm:$0x1] %v378
      %v380 = vld [vmem:[#allocation2 + $0x18] sm:$0x1]
      %v381 = vsel %vm373, 0, %v380
      %382 = vst [vmem:[#allocation2 + $0x18] sm:$0x1] %v381
      %v383 = vld [vmem:[#allocation2 + $0x24] sm:$0x1]
      %v384 = vsel %vm373, 0, %v383
      %385 = vst [vmem:[#allocation2 + $0x24] sm:$0x1] %v384
      %v386 = vld [vmem:[#allocation2 + $0x30] sm:$0x1]
      %v387 = vsel %vm373, 0, %v386
      %388 = vst [vmem:[#allocation2 + $0x30] sm:$0x1] %v387
      %v389 = vld [vmem:[#allocation2 + $0x3c] sm:$0x1]
      %v390 = vsel %vm373, 0, %v389
      %391 = vst [vmem:[#allocation2 + $0x3c] sm:$0x1] %v390
      %v392 = vld [vmem:[#allocation2 + $0x48] sm:$0x1]
      %v393 = vsel %vm373, 0, %v392
      %394 = vst [vmem:[#allocation2 + $0x48] sm:$0x1] %v393
      %v395 = vld [vmem:[#allocation2 + $0x54] sm:$0x1]
      %v396 = vsel %vm373, 0, %v395
      %397 = vst [vmem:[#allocation2 + $0x54] sm:$0x1] %v396
      %v398 = vld [vmem:[#allocation2 + $0x60] sm:$0x1]
      %v399 = vsel %vm373, 0, %v398
      %400 = vst [vmem:[#allocation2 + $0x60] sm:$0x1] %v399
      %v401 = vld [vmem:[#allocation2 + $0x6c] sm:$0x1]
      %v402 = vsel %vm373, 0, %v401
      %403 = vst [vmem:[#allocation2 + $0x6c] sm:$0x1] %v402
      %v404 = vld [vmem:[#allocation2 + $0x78] sm:$0x1]
      %v405 = vsel %vm373, 0, %v404
      %406 = vst [vmem:[#allocation2 + $0x78] sm:$0x1] %v405
      %v407 = vld [vmem:[#allocation2 + $0x84] sm:$0x1]
      %v408 = vsel %vm373, 0, %v407
      %409 = vst [vmem:[#allocation2 + $0x84] sm:$0x1] %v408
      %v410 = vld [vmem:[#allocation2 + $0x90] sm:$0x1]
      %v411 = vsel %vm373, 0, %v410
      %412 = vst [vmem:[#allocation2 + $0x90] sm:$0x1] %v411
      %v413 = vld [vmem:[#allocation2 + $0x9c] sm:$0x1]
      %v414 = vsel %vm373, 0, %v413
      %415 = vst [vmem:[#allocation2 + $0x9c] sm:$0x1] %v414
      %v416 = vld [vmem:[#allocation2 + $0xa8] sm:$0x1]
      %v417 = vsel %vm373, 0, %v416
      %418 = vst [vmem:[#allocation2 + $0xa8] sm:$0x1] %v417
      %v419 = vld [vmem:[#allocation2 + $0xb4] sm:$0x1]
      %v420 = vsel %vm373, 0, %v419
      %421 = vst [vmem:[#allocation2 + $0xb4] sm:$0x1] %v420
      %v422 = vld [vmem:[#allocation2 + $0xc0] sm:$0x1]
      %v423 = vsel %vm373, 0, %v422
      %424 = vst [vmem:[#allocation2 + $0xc0] sm:$0x1] %v423
      %v425 = vld [vmem:[#allocation2 + $0xcc] sm:$0x1]
      %v426 = vsel %vm373, 0, %v425
      %427 = vst [vmem:[#allocation2 + $0xcc] sm:$0x1] %v426
      %vm428 = vsmask.f32 7938
      %vm429 = vmand %vm371, %vm428
      %v430 = vld [vmem:[#allocation2 + $0x8] sm:$0x1]
      %v431 = vsel %vm429, 0, %v430
      %432 = vst [vmem:[#allocation2 + $0x8] sm:$0x1] %v431
      %v433 = vld [vmem:[#allocation2 + $0x14] sm:$0x1]
      %v434 = vsel %vm429, 0, %v433
      %435 = vst [vmem:[#allocation2 + $0x14] sm:$0x1] %v434
      %v436 = vld [vmem:[#allocation2 + $0x20] sm:$0x1]
      %v437 = vsel %vm429, 0, %v436
      %438 = vst [vmem:[#allocation2 + $0x20] sm:$0x1] %v437
      %v439 = vld [vmem:[#allocation2 + $0x2c] sm:$0x1]
      %v440 = vsel %vm429, 0, %v439
      %441 = vst [vmem:[#allocation2 + $0x2c] sm:$0x1] %v440
      %v442 = vld [vmem:[#allocation2 + $0x38] sm:$0x1]
      %v443 = vsel %vm429, 0, %v442
      %444 = vst [vmem:[#allocation2 + $0x38] sm:$0x1] %v443
      %v445 = vld [vmem:[#allocation2 + $0x44] sm:$0x1]
      %v446 = vsel %vm429, 0, %v445
      %447 = vst [vmem:[#allocation2 + $0x44] sm:$0x1] %v446
      %v448 = vld [vmem:[#allocation2 + $0x50] sm:$0x1]
      %v449 = vsel %vm429, 0, %v448
      %450 = vst [vmem:[#allocation2 + $0x50] sm:$0x1] %v449
      %v451 = vld [vmem:[#allocation2 + $0x5c] sm:$0x1]
      %v452 = vsel %vm429, 0, %v451
      %453 = vst [vmem:[#allocation2 + $0x5c] sm:$0x1] %v452
      %v454 = vld [vmem:[#allocation2 + $0x68] sm:$0x1]
      %v455 = vsel %vm429, 0, %v454
      %456 = vst [vmem:[#allocation2 + $0x68] sm:$0x1] %v455
      %v457 = vld [vmem:[#allocation2 + $0x74] sm:$0x1]
      %v458 = vsel %vm429, 0, %v457
      %459 = vst [vmem:[#allocation2 + $0x74] sm:$0x1] %v458
      %v460 = vld [vmem:[#allocation2 + $0x80] sm:$0x1]
      %v461 = vsel %vm429, 0, %v460
      %462 = vst [vmem:[#allocation2 + $0x80] sm:$0x1] %v461
      %v463 = vld [vmem:[#allocation2 + $0x8c] sm:$0x1]
      %v464 = vsel %vm429, 0, %v463
      %465 = vst [vmem:[#allocation2 + $0x8c] sm:$0x1] %v464
      %v466 = vld [vmem:[#allocation2 + $0x98] sm:$0x1]
      %v467 = vsel %vm429, 0, %v466
      %468 = vst [vmem:[#allocation2 + $0x98] sm:$0x1] %v467
      %v469 = vld [vmem:[#allocation2 + $0xa4] sm:$0x1]
      %v470 = vsel %vm429, 0, %v469
      %471 = vst [vmem:[#allocation2 + $0xa4] sm:$0x1] %v470
      %v472 = vld [vmem:[#allocation2 + $0xb0] sm:$0x1]
      %v473 = vsel %vm429, 0, %v472
      %474 = vst [vmem:[#allocation2 + $0xb0] sm:$0x1] %v473
      %v475 = vld [vmem:[#allocation2 + $0xbc] sm:$0x1]
      %v476 = vsel %vm429, 0, %v475
      %477 = vst [vmem:[#allocation2 + $0xbc] sm:$0x1] %v476
      %v478 = vld [vmem:[#allocation2 + $0xc8] sm:$0x1]
      %v479 = vsel %vm429, 0, %v478
      %480 = vst [vmem:[#allocation2 + $0xc8] sm:$0x1] %v479
      %v481 = vld [vmem:[#allocation2 + $0xd4] sm:$0x1]
      %v482 = vsel %vm429, 0, %v481
      %483 = vst [vmem:[#allocation2 + $0xd4] sm:$0x1] %v482
      %p484 = scmp.eq.s32.totalorder %s24, 0
      // Predicated region
      $region53: #{bottleneck_forward.1} parent=51 // pred_check
        %p485 = pneg %p484
      $region54: #{bottleneck_forward.1} parent=51 // pred_check_branch
        %487 = sbr.rel (%p485) target = $region56
      $region55: #{bottleneck_forward.1} parent=51 // pred_region
        %488 = vst [vmem:[#allocation2] sm:$0xf] 0
        %489 = vst [vmem:[#allocation2 + $0x4] sm:$0xf] 0
        %490 = vst [vmem:[#allocation2 + $0x8] sm:$0x1] 0
        %s491 = scalar_lea.vmem [#allocation2], 204
        %492 = vst [vmem:[%s491] sm:$0xf] 0
        %493 = vst [vmem:[%s491 + $0x4] sm:$0xf] 0
        %494 = vst [vmem:[%s491 + $0x8] sm:$0x1] 0
      $region56: #{bottleneck_forward.1} parent=51 // pred_fallthru
        _
      %v495 = vld [vmem:[%s347] sm:$0xf]
      %v496 = vld [vmem:[%s347 + $0x4] sm:$0xf]
      %v497 = vld [vmem:[%s347 + $0x8] sm:$0xf]
      %v498 = vld [vmem:[%s347 + $0xc] sm:$0xf]
      %v499 = vld [vmem:[%s347 + $0x10] sm:$0xf]
      %v500 = vld [vmem:[%s347 + $0x14] sm:$0xf]
      %v501 = vld [vmem:[%s347 + $0x18] sm:$0xf]
      %v502 = vld [vmem:[%s347 + $0x1c] sm:$0xf]
      %v503 = vld [vmem:[%s347 + $0x20] sm:$0xf]
      %v504 = vld [vmem:[%s347 + $0x24] sm:$0xf]
      %v505 = vld [vmem:[%s347 + $0x28] sm:$0xf]
      %v506 = vld [vmem:[%s347 + $0x2c] sm:$0xf]
      %v507 = vld [vmem:[%s347 + $0x30] sm:$0xf]
      %v508 = vld [vmem:[%s347 + $0x34] sm:$0xf]
      %v509 = vld [vmem:[%s347 + $0x38] sm:$0xf]
      %v510 = vld [vmem:[%s347 + $0x3c] sm:$0xf]
      %v511 = vld [vmem:[%s347 + $0x40] sm:$0xf]
      %v512 = vld [vmem:[%s347 + $0x44] sm:$0xf]
      %v513 = vld [vmem:[%s347 + $0x48] sm:$0xf]
      %v514 = vld [vmem:[%s347 + $0x4c] sm:$0xf]
      %v515 = vld [vmem:[%s347 + $0x50] sm:$0xf]
      %v516 = vld [vmem:[%s347 + $0x54] sm:$0xf]
      %v517 = vld [vmem:[%s347 + $0x58] sm:$0xf]
      %v518 = vld [vmem:[%s347 + $0x5c] sm:$0xf]
      %v519 = vld [vmem:[%s347 + $0x60] sm:$0xf]
      %v520 = vld [vmem:[%s347 + $0x64] sm:$0xf]
      %v521 = vld [vmem:[%s347 + $0x68] sm:$0xf]
      %v522 = vld [vmem:[%s347 + $0x6c] sm:$0xf]
      %v523 = vld [vmem:[%s347 + $0x70] sm:$0xf]
      %v524 = vld [vmem:[%s347 + $0x74] sm:$0xf]
      %v525 = vld [vmem:[%s347 + $0x78] sm:$0xf]
      %v526 = vld [vmem:[%s347 + $0x7c] sm:$0xf]
      %v527 = vld [vmem:[%s1] sm:$0xf]
      %v528 = vld [vmem:[%s2] sm:$0x1]
      %v530 = vlaneseq
      %v531 = vshrl.u32 %v530, 7
      %v532 = vsub.s32 0, %v531
      %v533 = vrot.slane %v528, %v532
      %v567 = vunpack.c.l.b16 %v495
      %v568 = vunpack.c.l.b16 %v496
      %v569 = vunpack.c.l.b16 %v497
      %v570 = vunpack.c.l.b16 %v498
      %v571 = vunpack.c.l.b16 %v499
      %v572 = vunpack.c.l.b16 %v500
      %v573 = vunpack.c.l.b16 %v501
      %v574 = vunpack.c.l.b16 %v502
      %v575 = vunpack.c.l.b16 %v503
      %v576 = vunpack.c.l.b16 %v504
      %v577 = vunpack.c.l.b16 %v505
      %v578 = vunpack.c.l.b16 %v506
      %v579 = vunpack.c.l.b16 %v507
      %v580 = vunpack.c.l.b16 %v508
      %v581 = vunpack.c.l.b16 %v509
      %v582 = vunpack.c.l.b16 %v510
      %v583 = vunpack.c.l.b16 %v511
      %v584 = vunpack.c.l.b16 %v512
      %v585 = vunpack.c.l.b16 %v513
      %v586 = vunpack.c.l.b16 %v514
      %v587 = vunpack.c.l.b16 %v515
      %v588 = vunpack.c.l.b16 %v516
      %v589 = vunpack.c.l.b16 %v517
      %v590 = vunpack.c.l.b16 %v518
      %v591 = vunpack.c.l.b16 %v519
      %v592 = vunpack.c.l.b16 %v520
      %v593 = vunpack.c.l.b16 %v521
      %v594 = vunpack.c.l.b16 %v522
      %v595 = vunpack.c.l.b16 %v523
      %v596 = vunpack.c.l.b16 %v524
      %v597 = vunpack.c.l.b16 %v525
      %v598 = vunpack.c.l.b16 %v526
      %v599 = vpack.c.b16 %v568, %v567
      %v600 = vpack.c.b16 %v570, %v569
      %v601 = vpack.c.b16 %v572, %v571
      %v602 = vpack.c.b16 %v574, %v573
      %v603 = vpack.c.b16 %v576, %v575
      %v604 = vpack.c.b16 %v578, %v577
      %v605 = vpack.c.b16 %v580, %v579
      %v606 = vpack.c.b16 %v582, %v581
      %v607 = vpack.c.b16 %v584, %v583
      %v608 = vpack.c.b16 %v586, %v585
      %v609 = vpack.c.b16 %v588, %v587
      %v610 = vpack.c.b16 %v590, %v589
      %v611 = vpack.c.b16 %v592, %v591
      %v612 = vpack.c.b16 %v594, %v593
      %v613 = vpack.c.b16 %v596, %v595
      %v614 = vpack.c.b16 %v598, %v597
      %vm615 = vcmask 64512
      %v617 = vsel %vm615, %v599, 0
      %v620 = vsel %vm615, %v600, 0
      %v623 = vsel %vm615, %v601, 0
      %v626 = vsel %vm615, %v602, 0
      %v629 = vsel %vm615, %v603, 0
      %v632 = vsel %vm615, %v604, 0
      %v635 = vsel %vm615, %v605, 0
      %v638 = vsel %vm615, %v606, 0
      %v641 = vsel %vm615, %v607, 0
      %v644 = vsel %vm615, %v608, 0
      %v647 = vsel %vm615, %v609, 0
      %v650 = vsel %vm615, %v610, 0
      %v653 = vsel %vm615, %v611, 0
      %v656 = vsel %vm615, %v612, 0
      %v659 = vsel %vm615, %v613, 0
      %v662 = vsel %vm615, %v614, 0
      %vm664 = vcmask 1043456
      %v666 = vsel %vm664, %v527, 0
      %668 = vmatprep.subr.bf16.mxu0 0
      %669 = vmatpush1.bf16.msra.mxu0 %v666
      %670 = vmatprep.subr.bf16.mxu0 0
      %671 = vmatpush1.bf16.msra.mxu0 0
      %672 = vmatprep.subr.bf16.mxu0 0
      %673 = vmatpush1.bf16.msra.mxu0 0
      %674 = vmatprep.subr.bf16.mxu0 0
      %675 = vmatpush1.bf16.msra.mxu0 0
      %676 = vmatprep.subr.bf16.mxu0 0
      %677 = vmatpush1.bf16.msra.mxu0 0
      %678 = vmatprep.subr.bf16.mxu0 0
      %679 = vmatpush1.bf16.msra.mxu0 0
      %680 = vmatprep.subr.bf16.mxu0 0
      %681 = vmatpush1.bf16.msra.mxu0 0
      %682 = vmatprep.subr.bf16.mxu0 0
      %683 = vmatpush1.bf16.msra.mxu0 0
      %684 = vmatprep.subr.bf16.mxu0 0
      %685 = vmatpush1.bf16.msra.mxu0 0
      %686 = vmatprep.subr.bf16.mxu0 0
      %687 = vmatpush1.bf16.msra.mxu0 0
      %688 = vmatprep.subr.bf16.mxu0 0
      %689 = vmatpush1.bf16.msra.mxu0 0
      %690 = vmatprep.subr.bf16.mxu0 0
      %691 = vmatpush1.bf16.msra.mxu0 0
      %692 = vmatprep.subr.bf16.mxu0 0
      %693 = vmatpush1.bf16.msra.mxu0 0
      %694 = vmatprep.subr.bf16.mxu0 0
      %695 = vmatpush1.bf16.msra.mxu0 0
      %696 = vmatprep.subr.bf16.mxu0 0
      %697 = vmatpush1.bf16.msra.mxu0 0
      %698 = vmatprep.subr.bf16.mxu0 0
      %699 = vmatpush1.bf16.msra.mxu0 0
      %700 = vmatprep.mubr.bf16.mxu0 0
      %701 = vmatmul.mubr.bf16.gmra.mrb[0].mxu0 %v617
      %v702 = vpop.f32.mrb[0].mxu0
      %v703 = vadd.f32 %v533, %v702
      %v704 = vpop.f32.mrb[0].mxu0
      %v705 = vpop.f32.mrb[0].mxu0
      %v706 = vadd.f32 %v533, %v705
      %v707 = vpop.f32.mrb[0].mxu0
      %708 = vmatprep.mubr.bf16.mxu0 0
      %709 = vmatmul.mubr.bf16.gmra.mrb[0].mxu0 %v620
      %v710 = vpop.f32.mrb[0].mxu0
      %v711 = vadd.f32 %v533, %v710
      %v712 = vpop.f32.mrb[0].mxu0
      %v713 = vpop.f32.mrb[0].mxu0
      %v714 = vadd.f32 %v533, %v713
      %v715 = vpop.f32.mrb[0].mxu0
      %716 = vmatprep.mubr.bf16.mxu0 0
      %717 = vmatmul.mubr.bf16.gmra.mrb[0].mxu0 %v623
      %v718 = vpop.f32.mrb[0].mxu0
      %v719 = vadd.f32 %v533, %v718
      %v720 = vpop.f32.mrb[0].mxu0
      %v721 = vpop.f32.mrb[0].mxu0
      %v722 = vadd.f32 %v533, %v721
      %v723 = vpop.f32.mrb[0].mxu0
      %724 = vmatprep.mubr.bf16.mxu0 0
      %725 = vmatmul.mubr.bf16.gmra.mrb[0].mxu0 %v626
      %v726 = vpop.f32.mrb[0].mxu0
      %v727 = vadd.f32 %v533, %v726
      %v728 = vpop.f32.mrb[0].mxu0
      %v729 = vpop.f32.mrb[0].mxu0
      %v730 = vadd.f32 %v533, %v729
      %v731 = vpop.f32.mrb[0].mxu0
      %732 = vmatprep.mubr.bf16.mxu0 0
      %733 = vmatmul.mubr.bf16.gmra.mrb[0].mxu0 %v629
      %v734 = vpop.f32.mrb[0].mxu0
      %v735 = vadd.f32 %v533, %v734
      %v736 = vpop.f32.mrb[0].mxu0
      %v737 = vpop.f32.mrb[0].mxu0
      %v738 = vadd.f32 %v533, %v737
      %v739 = vpop.f32.mrb[0].mxu0
      %740 = vmatprep.mubr.bf16.mxu0 0
      %741 = vmatmul.mubr.bf16.gmra.mrb[0].mxu0 %v632
      %v742 = vpop.f32.mrb[0].mxu0
      %v743 = vadd.f32 %v533, %v742
      %v744 = vpop.f32.mrb[0].mxu0
      %v745 = vpop.f32.mrb[0].mxu0
      %v746 = vadd.f32 %v533, %v745
      %v747 = vpop.f32.mrb[0].mxu0
      %748 = vmatprep.mubr.bf16.mxu0 0
      %749 = vmatmul.mubr.bf16.gmra.mrb[0].mxu0 %v635
      %v750 = vpop.f32.mrb[0].mxu0
      %v751 = vadd.f32 %v533, %v750
      %v752 = vpop.f32.mrb[0].mxu0
      %v753 = vpop.f32.mrb[0].mxu0
      %v754 = vadd.f32 %v533, %v753
      %v755 = vpop.f32.mrb[0].mxu0
      %756 = vmatprep.mubr.bf16.mxu0 0
      %757 = vmatmul.mubr.bf16.gmra.mrb[0].mxu0 %v638
      %v758 = vpop.f32.mrb[0].mxu0
      %v759 = vadd.f32 %v533, %v758
      %v760 = vpop.f32.mrb[0].mxu0
      %v761 = vpop.f32.mrb[0].mxu0
      %v762 = vadd.f32 %v533, %v761
      %v763 = vpop.f32.mrb[0].mxu0
      %764 = vmatprep.mubr.bf16.mxu0 0
      %765 = vmatmul.mubr.bf16.gmra.mrb[0].mxu0 %v641
      %v766 = vpop.f32.mrb[0].mxu0
      %v767 = vadd.f32 %v533, %v766
      %v768 = vpop.f32.mrb[0].mxu0
      %v769 = vpop.f32.mrb[0].mxu0
      %v770 = vadd.f32 %v533, %v769
      %v771 = vpop.f32.mrb[0].mxu0
      %772 = vmatprep.mubr.bf16.mxu0 0
      %773 = vmatmul.mubr.bf16.gmra.mrb[0].mxu0 %v644
      %v774 = vpop.f32.mrb[0].mxu0
      %v775 = vadd.f32 %v533, %v774
      %v776 = vpop.f32.mrb[0].mxu0
      %v777 = vpop.f32.mrb[0].mxu0
      %v778 = vadd.f32 %v533, %v777
      %v779 = vpop.f32.mrb[0].mxu0
      %780 = vmatprep.mubr.bf16.mxu0 0
      %781 = vmatmul.mubr.bf16.gmra.mrb[0].mxu0 %v647
      %v782 = vpop.f32.mrb[0].mxu0
      %v783 = vadd.f32 %v533, %v782
      %v784 = vpop.f32.mrb[0].mxu0
      %v785 = vpop.f32.mrb[0].mxu0
      %v786 = vadd.f32 %v533, %v785
      %v787 = vpop.f32.mrb[0].mxu0
      %788 = vmatprep.mubr.bf16.mxu0 0
      %789 = vmatmul.mubr.bf16.gmra.mrb[0].mxu0 %v650
      %v790 = vpop.f32.mrb[0].mxu0
      %v791 = vadd.f32 %v533, %v790
      %v792 = vpop.f32.mrb[0].mxu0
      %v793 = vpop.f32.mrb[0].mxu0
      %v794 = vadd.f32 %v533, %v793
      %v795 = vpop.f32.mrb[0].mxu0
      %796 = vmatprep.mubr.bf16.mxu0 0
      %797 = vmatmul.mubr.bf16.gmra.mrb[0].mxu0 %v653
      %v798 = vpop.f32.mrb[0].mxu0
      %v799 = vadd.f32 %v533, %v798
      %v800 = vpop.f32.mrb[0].mxu0
      %v801 = vpop.f32.mrb[0].mxu0
      %v802 = vadd.f32 %v533, %v801
      %v803 = vpop.f32.mrb[0].mxu0
      %804 = vmatprep.mubr.bf16.mxu0 0
      %805 = vmatmul.mubr.bf16.gmra.mrb[0].mxu0 %v656
      %v806 = vpop.f32.mrb[0].mxu0
      %v807 = vadd.f32 %v533, %v806
      %v808 = vpop.f32.mrb[0].mxu0
      %v809 = vpop.f32.mrb[0].mxu0
      %v810 = vadd.f32 %v533, %v809
      %v811 = vpop.f32.mrb[0].mxu0
      %812 = vmatprep.mubr.bf16.mxu0 0
      %813 = vmatmul.mubr.bf16.gmra.mrb[0].mxu0 %v659
      %v814 = vpop.f32.mrb[0].mxu0
      %v815 = vadd.f32 %v533, %v814
      %v816 = vpop.f32.mrb[0].mxu0
      %v817 = vpop.f32.mrb[0].mxu0
      %v818 = vadd.f32 %v533, %v817
      %v819 = vpop.f32.mrb[0].mxu0
      %820 = vmatprep.mubr.bf16.mxu0 0
      %821 = vmatmul.mubr.bf16.gmra.mrb[0].mxu0 %v662
      %v822 = vpop.f32.mrb[0].mxu0
      %v823 = vadd.f32 %v533, %v822
      %v824 = vpop.f32.mrb[0].mxu0
      %v825 = vpop.f32.mrb[0].mxu0
      %v826 = vadd.f32 %v533, %v825
      %v827 = vpop.f32.mrb[0].mxu0
      %828 = vdwg.mxu0
      %v829 = vmax.f32 %v703, 0.0
      %v830 = vmax.f32 %v706, 0.0
      %v831 = vmax.f32 %v711, 0.0
      %v832 = vmax.f32 %v714, 0.0
      %v833 = vmax.f32 %v719, 0.0
      %v834 = vmax.f32 %v722, 0.0
      %v835 = vmax.f32 %v727, 0.0
      %v836 = vmax.f32 %v730, 0.0
      %v837 = vmax.f32 %v735, 0.0
      %v838 = vmax.f32 %v738, 0.0
      %v839 = vmax.f32 %v743, 0.0
      %v840 = vmax.f32 %v746, 0.0
      %v841 = vmax.f32 %v751, 0.0
      %v842 = vmax.f32 %v754, 0.0
      %v843 = vmax.f32 %v759, 0.0
      %v844 = vmax.f32 %v762, 0.0
      %v845 = vmax.f32 %v767, 0.0
      %v846 = vmax.f32 %v770, 0.0
      %v847 = vmax.f32 %v775, 0.0
      %v848 = vmax.f32 %v778, 0.0
      %v849 = vmax.f32 %v783, 0.0
      %v850 = vmax.f32 %v786, 0.0
      %v851 = vmax.f32 %v791, 0.0
      %v852 = vmax.f32 %v794, 0.0
      %v853 = vmax.f32 %v799, 0.0
      %v854 = vmax.f32 %v802, 0.0
      %v855 = vmax.f32 %v807, 0.0
      %v856 = vmax.f32 %v810, 0.0
      %v857 = vmax.f32 %v815, 0.0
      %v858 = vmax.f32 %v818, 0.0
      %v859 = vmax.f32 %v823, 0.0
      %v860 = vmax.f32 %v826, 0.0
      %v861 = vpack.c.bf16 %v830, %v829
      %v862 = vpack.c.bf16 %v832, %v831
      %v863 = vpack.c.bf16 %v834, %v833
      %v864 = vpack.c.bf16 %v836, %v835
      %v865 = vpack.c.bf16 %v838, %v837
      %v866 = vpack.c.bf16 %v840, %v839
      %v867 = vpack.c.bf16 %v842, %v841
      %v868 = vpack.c.bf16 %v844, %v843
      %v869 = vpack.c.bf16 %v846, %v845
      %v870 = vpack.c.bf16 %v848, %v847
      %v871 = vpack.c.bf16 %v850, %v849
      %v872 = vpack.c.bf16 %v852, %v851
      %v873 = vpack.c.bf16 %v854, %v853
      %v874 = vpack.c.bf16 %v856, %v855
      %v875 = vpack.c.bf16 %v858, %v857
      %v876 = vpack.c.bf16 %v860, %v859
      %v893 = vunpack.c.l.b16 %v861
      %v894 = vunpack.c.h.b16 %v861
      %v895 = vunpack.c.l.b16 %v862
      %v896 = vunpack.c.h.b16 %v862
      %v897 = vunpack.c.l.b16 %v863
      %v898 = vunpack.c.h.b16 %v863
      %v899 = vunpack.c.l.b16 %v864
      %v900 = vunpack.c.h.b16 %v864
      %v901 = vunpack.c.l.b16 %v865
      %v902 = vunpack.c.h.b16 %v865
      %v903 = vunpack.c.l.b16 %v866
      %v904 = vunpack.c.h.b16 %v866
      %v905 = vunpack.c.l.b16 %v867
      %v906 = vunpack.c.h.b16 %v867
      %v907 = vunpack.c.l.b16 %v868
      %v908 = vunpack.c.h.b16 %v868
      %v909 = vunpack.c.l.b16 %v869
      %v910 = vunpack.c.h.b16 %v869
      %v911 = vunpack.c.l.b16 %v870
      %v912 = vunpack.c.h.b16 %v870
      %v913 = vunpack.c.l.b16 %v871
      %v914 = vunpack.c.h.b16 %v871
      %v915 = vunpack.c.l.b16 %v872
      %v916 = vunpack.c.h.b16 %v872
      %v917 = vunpack.c.l.b16 %v873
      %v918 = vunpack.c.h.b16 %v873
      %v919 = vunpack.c.l.b16 %v874
      %v920 = vunpack.c.h.b16 %v874
      %v921 = vunpack.c.l.b16 %v875
      %v922 = vunpack.c.h.b16 %v875
      %v923 = vunpack.c.l.b16 %v876
      %v924 = vunpack.c.h.b16 %v876
      %v925 = vpack.c.b16 %v893, %v893
      %v926 = vpack.c.b16 %v894, %v894
      %v927 = vpack.c.b16 %v895, %v895
      %v928 = vpack.c.b16 %v896, %v896
      %v929 = vpack.c.b16 %v897, %v897
      %v930 = vpack.c.b16 %v898, %v898
      %v931 = vpack.c.b16 %v899, %v899
      %v932 = vpack.c.b16 %v900, %v900
      %v933 = vpack.c.b16 %v901, %v901
      %v934 = vpack.c.b16 %v902, %v902
      %v935 = vpack.c.b16 %v903, %v903
      %v936 = vpack.c.b16 %v904, %v904
      %v937 = vpack.c.b16 %v905, %v905
      %v938 = vpack.c.b16 %v906, %v906
      %v939 = vpack.c.b16 %v907, %v907
      %v940 = vpack.c.b16 %v908, %v908
      %v941 = vpack.c.b16 %v909, %v909
      %v942 = vpack.c.b16 %v910, %v910
      %v943 = vpack.c.b16 %v911, %v911
      %v944 = vpack.c.b16 %v912, %v912
      %v945 = vpack.c.b16 %v913, %v913
      %v946 = vpack.c.b16 %v914, %v914
      %v947 = vpack.c.b16 %v915, %v915
      %v948 = vpack.c.b16 %v916, %v916
      %v949 = vpack.c.b16 %v917, %v917
      %v950 = vpack.c.b16 %v918, %v918
      %v951 = vpack.c.b16 %v919, %v919
      %v952 = vpack.c.b16 %v920, %v920
      %v953 = vpack.c.b16 %v921, %v921
      %v954 = vpack.c.b16 %v922, %v922
      %v955 = vpack.c.b16 %v923, %v923
      %v956 = vpack.c.b16 %v924, %v924
      %vm957 = vsmask.f32 4368
      %vm958 = vmor %vm372, %vm957
      %v960 = vshrl.u32 %v925, 16
      %v962 = vrot.slane %v960, 7
      %v963 = vshll.u32 %v925, 16
      %v965 = vor.u32 %v962, %v963
      %v966 = vrot.slane %v962, 4
      %v968 = vshrl.u32 %v926, 16
      %v970 = vrot.slane %v968, 7
      %v971 = vshll.u32 %v926, 16
      %v973 = vor.u32 %v970, %v971
      %v974 = vsel %vm958, %v966, %v973
      %v975 = vrot.slane %v970, 4
      %v977 = vshrl.u32 %v927, 16
      %v979 = vrot.slane %v977, 7
      %v980 = vshll.u32 %v927, 16
      %v982 = vor.u32 %v979, %v980
      %v983 = vrot.slane %v979, 4
      %v985 = vshrl.u32 %v928, 16
      %v987 = vrot.slane %v985, 7
      %v988 = vshll.u32 %v928, 16
      %v990 = vor.u32 %v987, %v988
      %v991 = vsel %vm958, %v983, %v990
      %v992 = vrot.slane %v987, 4
      %v994 = vshrl.u32 %v929, 16
      %v996 = vrot.slane %v994, 7
      %v997 = vshll.u32 %v929, 16
      %v999 = vor.u32 %v996, %v997
      %v1000 = vrot.slane %v996, 4
      %v1002 = vshrl.u32 %v930, 16
      %v1004 = vrot.slane %v1002, 7
      %v1005 = vshll.u32 %v930, 16
      %v1007 = vor.u32 %v1004, %v1005
      %v1008 = vsel %vm958, %v1000, %v1007
      %v1009 = vrot.slane %v1004, 4
      %v1011 = vshrl.u32 %v931, 16
      %v1013 = vrot.slane %v1011, 7
      %v1014 = vshll.u32 %v931, 16
      %v1016 = vor.u32 %v1013, %v1014
      %v1017 = vrot.slane %v1013, 4
      %v1019 = vshrl.u32 %v932, 16
      %v1021 = vrot.slane %v1019, 7
      %v1022 = vshll.u32 %v932, 16
      %v1024 = vor.u32 %v1021, %v1022
      %v1025 = vsel %vm958, %v1017, %v1024
      %v1026 = vrot.slane %v1021, 4
      %v1028 = vshrl.u32 %v933, 16
      %v1030 = vrot.slane %v1028, 7
      %v1031 = vshll.u32 %v933, 16
      %v1033 = vor.u32 %v1030, %v1031
      %v1034 = vrot.slane %v1030, 4
      %v1036 = vshrl.u32 %v934, 16
      %v1038 = vrot.slane %v1036, 7
      %v1039 = vshll.u32 %v934, 16
      %v1041 = vor.u32 %v1038, %v1039
      %v1042 = vsel %vm958, %v1034, %v1041
      %v1043 = vrot.slane %v1038, 4
      %v1045 = vshrl.u32 %v935, 16
      %v1047 = vrot.slane %v1045, 7
      %v1048 = vshll.u32 %v935, 16
      %v1050 = vor.u32 %v1047, %v1048
      %v1051 = vrot.slane %v1047, 4
      %v1053 = vshrl.u32 %v936, 16
      %v1055 = vrot.slane %v1053, 7
      %v1056 = vshll.u32 %v936, 16
      %v1058 = vor.u32 %v1055, %v1056
      %v1059 = vsel %vm958, %v1051, %v1058
      %v1060 = vrot.slane %v1055, 4
      %v1062 = vshrl.u32 %v937, 16
      %v1064 = vrot.slane %v1062, 7
      %v1065 = vshll.u32 %v937, 16
      %v1067 = vor.u32 %v1064, %v1065
      %v1068 = vrot.slane %v1064, 4
      %v1070 = vshrl.u32 %v938, 16
      %v1072 = vrot.slane %v1070, 7
      %v1073 = vshll.u32 %v938, 16
      %v1075 = vor.u32 %v1072, %v1073
      %v1076 = vsel %vm958, %v1068, %v1075
      %v1077 = vrot.slane %v1072, 4
      %v1079 = vshrl.u32 %v939, 16
      %v1081 = vrot.slane %v1079, 7
      %v1082 = vshll.u32 %v939, 16
      %v1084 = vor.u32 %v1081, %v1082
      %v1085 = vrot.slane %v1081, 4
      %v1087 = vshrl.u32 %v940, 16
      %v1089 = vrot.slane %v1087, 7
      %v1090 = vshll.u32 %v940, 16
      %v1092 = vor.u32 %v1089, %v1090
      %v1093 = vsel %vm958, %v1085, %v1092
      %v1094 = vrot.slane %v1089, 4
      %v1096 = vshrl.u32 %v941, 16
      %v1098 = vrot.slane %v1096, 7
      %v1099 = vshll.u32 %v941, 16
      %v1101 = vor.u32 %v1098, %v1099
      %v1102 = vrot.slane %v1098, 4
      %v1104 = vshrl.u32 %v942, 16
      %v1106 = vrot.slane %v1104, 7
      %v1107 = vshll.u32 %v942, 16
      %v1109 = vor.u32 %v1106, %v1107
      %v1110 = vsel %vm958, %v1102, %v1109
      %v1111 = vrot.slane %v1106, 4
      %v1113 = vshrl.u32 %v943, 16
      %v1115 = vrot.slane %v1113, 7
      %v1116 = vshll.u32 %v943, 16
      %v1118 = vor.u32 %v1115, %v1116
      %v1119 = vrot.slane %v1115, 4
      %v1121 = vshrl.u32 %v944, 16
      %v1123 = vrot.slane %v1121, 7
      %v1124 = vshll.u32 %v944, 16
      %v1126 = vor.u32 %v1123, %v1124
      %v1127 = vsel %vm958, %v1119, %v1126
      %v1128 = vrot.slane %v1123, 4
      %v1130 = vshrl.u32 %v945, 16
      %v1132 = vrot.slane %v1130, 7
      %v1133 = vshll.u32 %v945, 16
      %v1135 = vor.u32 %v1132, %v1133
      %v1136 = vrot.slane %v1132, 4
      %v1138 = vshrl.u32 %v946, 16
      %v1140 = vrot.slane %v1138, 7
      %v1141 = vshll.u32 %v946, 16
      %v1143 = vor.u32 %v1140, %v1141
      %v1144 = vsel %vm958, %v1136, %v1143
      %v1145 = vrot.slane %v1140, 4
      %v1147 = vshrl.u32 %v947, 16
      %v1149 = vrot.slane %v1147, 7
      %v1150 = vshll.u32 %v947, 16
      %v1152 = vor.u32 %v1149, %v1150
      %v1153 = vrot.slane %v1149, 4
      %v1155 = vshrl.u32 %v948, 16
      %v1157 = vrot.slane %v1155, 7
      %v1158 = vshll.u32 %v948, 16
      %v1160 = vor.u32 %v1157, %v1158
      %v1161 = vsel %vm958, %v1153, %v1160
      %v1162 = vrot.slane %v1157, 4
      %v1164 = vshrl.u32 %v949, 16
      %v1166 = vrot.slane %v1164, 7
      %v1167 = vshll.u32 %v949, 16
      %v1169 = vor.u32 %v1166, %v1167
      %v1170 = vrot.slane %v1166, 4
      %v1172 = vshrl.u32 %v950, 16
      %v1174 = vrot.slane %v1172, 7
      %v1175 = vshll.u32 %v950, 16
      %v1177 = vor.u32 %v1174, %v1175
      %v1178 = vsel %vm958, %v1170, %v1177
      %v1179 = vrot.slane %v1174, 4
      %v1181 = vshrl.u32 %v951, 16
      %v1183 = vrot.slane %v1181, 7
      %v1184 = vshll.u32 %v951, 16
      %v1186 = vor.u32 %v1183, %v1184
      %v1187 = vrot.slane %v1183, 4
      %v1189 = vshrl.u32 %v952, 16
      %v1191 = vrot.slane %v1189, 7
      %v1192 = vshll.u32 %v952, 16
      %v1194 = vor.u32 %v1191, %v1192
      %v1195 = vsel %vm958, %v1187, %v1194
      %v1196 = vrot.slane %v1191, 4
      %v1198 = vshrl.u32 %v953, 16
      %v1200 = vrot.slane %v1198, 7
      %v1201 = vshll.u32 %v953, 16
      %v1203 = vor.u32 %v1200, %v1201
      %v1204 = vrot.slane %v1200, 4
      %v1206 = vshrl.u32 %v954, 16
      %v1208 = vrot.slane %v1206, 7
      %v1209 = vshll.u32 %v954, 16
      %v1211 = vor.u32 %v1208, %v1209
      %v1212 = vsel %vm958, %v1204, %v1211
      %v1213 = vrot.slane %v1208, 4
      %v1215 = vshrl.u32 %v955, 16
      %v1217 = vrot.slane %v1215, 7
      %v1218 = vshll.u32 %v955, 16
      %v1220 = vor.u32 %v1217, %v1218
      %v1221 = vrot.slane %v1217, 4
      %v1223 = vshrl.u32 %v956, 16
      %v1225 = vrot.slane %v1223, 7
      %v1226 = vshll.u32 %v956, 16
      %v1228 = vor.u32 %v1225, %v1226
      %v1229 = vsel %vm958, %v1221, %v1228
      %v1230 = vrot.slane %v1225, 4
      %s1279 = scalar_lea.vmem [#allocation2], 12
      %vm1280 = vcmask 1043456
      %vm1281 = vmand %vm1280, %vm428
      %v1282 = vld [vmem:[%s1279] sm:$0xf]
      %v1283 = vsel %vm1281, %v965, %v1282
      %1284 = vst [vmem:[%s1279] sm:$0xf] %v1283
      %1285 = vst [vmem:[%s1279 + $0x4] sm:$0xf] %v974
      %v1286 = vld [vmem:[%s1279 + $0x8] sm:$0x1]
      %v1287 = vsel %vm373, %v975, %v1286
      %1288 = vst [vmem:[%s1279 + $0x8] sm:$0x1] %v1287
      %v1289 = vld [vmem:[%s1279 + $0xc] sm:$0xf]
      %v1290 = vsel %vm1281, %v982, %v1289
      %1291 = vst [vmem:[%s1279 + $0xc] sm:$0xf] %v1290
      %1292 = vst [vmem:[%s1279 + $0x10] sm:$0xf] %v991
      %v1293 = vld [vmem:[%s1279 + $0x14] sm:$0x1]
      %v1294 = vsel %vm373, %v992, %v1293
      %1295 = vst [vmem:[%s1279 + $0x14] sm:$0x1] %v1294
      %v1296 = vld [vmem:[%s1279 + $0x18] sm:$0xf]
      %v1297 = vsel %vm1281, %v999, %v1296
      %1298 = vst [vmem:[%s1279 + $0x18] sm:$0xf] %v1297
      %1299 = vst [vmem:[%s1279 + $0x1c] sm:$0xf] %v1008
      %v1300 = vld [vmem:[%s1279 + $0x20] sm:$0x1]
      %v1301 = vsel %vm373, %v1009, %v1300
      %1302 = vst [vmem:[%s1279 + $0x20] sm:$0x1] %v1301
      %v1303 = vld [vmem:[%s1279 + $0x24] sm:$0xf]
      %v1304 = vsel %vm1281, %v1016, %v1303
      %1305 = vst [vmem:[%s1279 + $0x24] sm:$0xf] %v1304
      %1306 = vst [vmem:[%s1279 + $0x28] sm:$0xf] %v1025
      %v1307 = vld [vmem:[%s1279 + $0x2c] sm:$0x1]
      %v1308 = vsel %vm373, %v1026, %v1307
      %1309 = vst [vmem:[%s1279 + $0x2c] sm:$0x1] %v1308
      %v1310 = vld [vmem:[%s1279 + $0x30] sm:$0xf]
      %v1311 = vsel %vm1281, %v1033, %v1310
      %1312 = vst [vmem:[%s1279 + $0x30] sm:$0xf] %v1311
      %1313 = vst [vmem:[%s1279 + $0x34] sm:$0xf] %v1042
      %v1314 = vld [vmem:[%s1279 + $0x38] sm:$0x1]
      %v1315 = vsel %vm373, %v1043, %v1314
      %1316 = vst [vmem:[%s1279 + $0x38] sm:$0x1] %v1315
      %v1317 = vld [vmem:[%s1279 + $0x3c] sm:$0xf]
      %v1318 = vsel %vm1281, %v1050, %v1317
      %1319 = vst [vmem:[%s1279 + $0x3c] sm:$0xf] %v1318
      %1320 = vst [vmem:[%s1279 + $0x40] sm:$0xf] %v1059
      %v1321 = vld [vmem:[%s1279 + $0x44] sm:$0x1]
      %v1322 = vsel %vm373, %v1060, %v1321
      %1323 = vst [vmem:[%s1279 + $0x44] sm:$0x1] %v1322
      %v1324 = vld [vmem:[%s1279 + $0x48] sm:$0xf]
      %v1325 = vsel %vm1281, %v1067, %v1324
      %1326 = vst [vmem:[%s1279 + $0x48] sm:$0xf] %v1325
      %1327 = vst [vmem:[%s1279 + $0x4c] sm:$0xf] %v1076
      %v1328 = vld [vmem:[%s1279 + $0x50] sm:$0x1]
      %v1329 = vsel %vm373, %v1077, %v1328
      %1330 = vst [vmem:[%s1279 + $0x50] sm:$0x1] %v1329
      %v1331 = vld [vmem:[%s1279 + $0x54] sm:$0xf]
      %v1332 = vsel %vm1281, %v1084, %v1331
      %1333 = vst [vmem:[%s1279 + $0x54] sm:$0xf] %v1332
      %1334 = vst [vmem:[%s1279 + $0x58] sm:$0xf] %v1093
      %v1335 = vld [vmem:[%s1279 + $0x5c] sm:$0x1]
      %v1336 = vsel %vm373, %v1094, %v1335
      %1337 = vst [vmem:[%s1279 + $0x5c] sm:$0x1] %v1336
      %v1338 = vld [vmem:[%s1279 + $0x60] sm:$0xf]
      %v1339 = vsel %vm1281, %v1101, %v1338
      %1340 = vst [vmem:[%s1279 + $0x60] sm:$0xf] %v1339
      %1341 = vst [vmem:[%s1279 + $0x64] sm:$0xf] %v1110
      %v1342 = vld [vmem:[%s1279 + $0x68] sm:$0x1]
      %v1343 = vsel %vm373, %v1111, %v1342
      %1344 = vst [vmem:[%s1279 + $0x68] sm:$0x1] %v1343
      %v1345 = vld [vmem:[%s1279 + $0x6c] sm:$0xf]
      %v1346 = vsel %vm1281, %v1118, %v1345
      %1347 = vst [vmem:[%s1279 + $0x6c] sm:$0xf] %v1346
      %1348 = vst [vmem:[%s1279 + $0x70] sm:$0xf] %v1127
      %v1349 = vld [vmem:[%s1279 + $0x74] sm:$0x1]
      %v1350 = vsel %vm373, %v1128, %v1349
      %1351 = vst [vmem:[%s1279 + $0x74] sm:$0x1] %v1350
      %v1352 = vld [vmem:[%s1279 + $0x78] sm:$0xf]
      %v1353 = vsel %vm1281, %v1135, %v1352
      %1354 = vst [vmem:[%s1279 + $0x78] sm:$0xf] %v1353
      %1355 = vst [vmem:[%s1279 + $0x7c] sm:$0xf] %v1144
      %v1356 = vld [vmem:[%s1279 + $0x80] sm:$0x1]
      %v1357 = vsel %vm373, %v1145, %v1356
      %1358 = vst [vmem:[%s1279 + $0x80] sm:$0x1] %v1357
      %v1359 = vld [vmem:[%s1279 + $0x84] sm:$0xf]
      %v1360 = vsel %vm1281, %v1152, %v1359
      %1361 = vst [vmem:[%s1279 + $0x84] sm:$0xf] %v1360
      %1362 = vst [vmem:[%s1279 + $0x88] sm:$0xf] %v1161
      %v1363 = vld [vmem:[%s1279 + $0x8c] sm:$0x1]
      %v1364 = vsel %vm373, %v1162, %v1363
      %1365 = vst [vmem:[%s1279 + $0x8c] sm:$0x1] %v1364
      %v1366 = vld [vmem:[%s1279 + $0x90] sm:$0xf]
      %v1367 = vsel %vm1281, %v1169, %v1366
      %1368 = vst [vmem:[%s1279 + $0x90] sm:$0xf] %v1367
      %1369 = vst [vmem:[%s1279 + $0x94] sm:$0xf] %v1178
      %v1370 = vld [vmem:[%s1279 + $0x98] sm:$0x1]
      %v1371 = vsel %vm373, %v1179, %v1370
      %1372 = vst [vmem:[%s1279 + $0x98] sm:$0x1] %v1371
      %v1373 = vld [vmem:[%s1279 + $0x9c] sm:$0xf]
      %v1374 = vsel %vm1281, %v1186, %v1373
      %1375 = vst [vmem:[%s1279 + $0x9c] sm:$0xf] %v1374
      %1376 = vst [vmem:[%s1279 + $0xa0] sm:$0xf] %v1195
      %v1377 = vld [vmem:[%s1279 + $0xa4] sm:$0x1]
      %v1378 = vsel %vm373, %v1196, %v1377
      %1379 = vst [vmem:[%s1279 + $0xa4] sm:$0x1] %v1378
      %v1380 = vld [vmem:[%s1279 + $0xa8] sm:$0xf]
      %v1381 = vsel %vm1281, %v1203, %v1380
      %1382 = vst [vmem:[%s1279 + $0xa8] sm:$0xf] %v1381
      %1383 = vst [vmem:[%s1279 + $0xac] sm:$0xf] %v1212
      %v1384 = vld [vmem:[%s1279 + $0xb0] sm:$0x1]
      %v1385 = vsel %vm373, %v1213, %v1384
      %1386 = vst [vmem:[%s1279 + $0xb0] sm:$0x1] %v1385
      %v1387 = vld [vmem:[%s1279 + $0xb4] sm:$0xf]
      %v1388 = vsel %vm1281, %v1220, %v1387
      %1389 = vst [vmem:[%s1279 + $0xb4] sm:$0xf] %v1388
      %1390 = vst [vmem:[%s1279 + $0xb8] sm:$0xf] %v1229
      %v1391 = vld [vmem:[%s1279 + $0xbc] sm:$0x1]
      %v1392 = vsel %vm373, %v1230, %v1391
      %1393 = vst [vmem:[%s1279 + $0xbc] sm:$0x1] %v1392
      %v1394 = vld [vmem:[#allocation2] sm:$0xf]
      %v1395 = vld [vmem:[#allocation2 + $0x4] sm:$0xf]
      %v1396 = vld [vmem:[#allocation2 + $0xc] sm:$0xf]
      %v1397 = vld [vmem:[#allocation2 + $0x10] sm:$0xf]
      %v1398 = vld [vmem:[#allocation2 + $0x18] sm:$0xf]
      %v1399 = vld [vmem:[#allocation2 + $0x1c] sm:$0xf]
      %v1400 = vld [vmem:[#allocation2 + $0x24] sm:$0xf]
      %v1401 = vld [vmem:[#allocation2 + $0x28] sm:$0xf]
      %v1402 = vld [vmem:[#allocation2 + $0x30] sm:$0xf]
      %v1403 = vld [vmem:[#allocation2 + $0x34] sm:$0xf]
      %v1404 = vld [vmem:[#allocation2 + $0x3c] sm:$0xf]
      %v1405 = vld [vmem:[#allocation2 + $0x40] sm:$0xf]
      %v1406 = vld [vmem:[#allocation2 + $0x48] sm:$0xf]
      %v1407 = vld [vmem:[#allocation2 + $0x4c] sm:$0xf]
      %v1408 = vld [vmem:[#allocation2 + $0x54] sm:$0xf]
      %v1409 = vld [vmem:[#allocation2 + $0x58] sm:$0xf]
      %v1410 = vld [vmem:[#allocation2 + $0x60] sm:$0xf]
      %v1411 = vld [vmem:[#allocation2 + $0x64] sm:$0xf]
      %v1412 = vld [vmem:[#allocation2 + $0x6c] sm:$0xf]
      %v1413 = vld [vmem:[#allocation2 + $0x70] sm:$0xf]
      %v1414 = vld [vmem:[#allocation2 + $0x78] sm:$0xf]
      %v1415 = vld [vmem:[#allocation2 + $0x7c] sm:$0xf]
      %v1416 = vld [vmem:[#allocation2 + $0x84] sm:$0xf]
      %v1417 = vld [vmem:[#allocation2 + $0x88] sm:$0xf]
      %v1418 = vld [vmem:[#allocation2 + $0x90] sm:$0xf]
      %v1419 = vld [vmem:[#allocation2 + $0x94] sm:$0xf]
      %v1420 = vld [vmem:[#allocation2 + $0x9c] sm:$0xf]
      %v1421 = vld [vmem:[#allocation2 + $0xa0] sm:$0xf]
      %v1422 = vld [vmem:[#allocation2 + $0xa8] sm:$0xf]
      %v1423 = vld [vmem:[#allocation2 + $0xac] sm:$0xf]
      %v1424 = vld [vmem:[#allocation2 + $0xb4] sm:$0xf]
      %v1425 = vld [vmem:[#allocation2 + $0xb8] sm:$0xf]
      %v1426 = vld [vmem:[#allocation2 + $0xc0] sm:$0xf]
      %v1427 = vld [vmem:[#allocation2 + $0xc4] sm:$0xf]
      %v1428 = vld [vmem:[#allocation2 + $0xcc] sm:$0xf]
      %v1429 = vld [vmem:[#allocation2 + $0xd0] sm:$0xf]
      %v1430 = vld [vmem:[#allocation2 + $0x8] sm:$0x1]
      %v1431 = vld [vmem:[#allocation2 + $0x14] sm:$0x1]
      %v1432 = vld [vmem:[#allocation2 + $0x20] sm:$0x1]
      %v1433 = vld [vmem:[#allocation2 + $0x2c] sm:$0x1]
      %v1434 = vld [vmem:[#allocation2 + $0x38] sm:$0x1]
      %v1435 = vld [vmem:[#allocation2 + $0x44] sm:$0x1]
      %v1436 = vld [vmem:[#allocation2 + $0x50] sm:$0x1]
      %v1437 = vld [vmem:[#allocation2 + $0x5c] sm:$0x1]
      %v1438 = vld [vmem:[#allocation2 + $0x68] sm:$0x1]
      %v1439 = vld [vmem:[#allocation2 + $0x74] sm:$0x1]
      %v1440 = vld [vmem:[#allocation2 + $0x80] sm:$0x1]
      %v1441 = vld [vmem:[#allocation2 + $0x8c] sm:$0x1]
      %v1442 = vld [vmem:[#allocation2 + $0x98] sm:$0x1]
      %v1443 = vld [vmem:[#allocation2 + $0xa4] sm:$0x1]
      %v1444 = vld [vmem:[#allocation2 + $0xb0] sm:$0x1]
      %v1445 = vld [vmem:[#allocation2 + $0xbc] sm:$0x1]
      %v1446 = vld [vmem:[#allocation2 + $0xc8] sm:$0x1]
      %v1447 = vld [vmem:[#allocation2 + $0xd4] sm:$0x1]
      %v1448 = vld [vmem:[#allocation2] sm:$0xe]
      %v1449 = vld [vmem:[#allocation2 + $0xc] sm:$0xe]
      %v1450 = vld [vmem:[#allocation2 + $0x18] sm:$0xe]
      %v1451 = vld [vmem:[#allocation2 + $0x24] sm:$0xe]
      %v1452 = vld [vmem:[#allocation2 + $0x30] sm:$0xe]
      %v1453 = vld [vmem:[#allocation2 + $0x3c] sm:$0xe]
      %v1454 = vld [vmem:[#allocation2 + $0x48] sm:$0xe]
      %v1455 = vld [vmem:[#allocation2 + $0x54] sm:$0xe]
      %v1456 = vld [vmem:[#allocation2 + $0x60] sm:$0xe]
      %v1457 = vld [vmem:[#allocation2 + $0x6c] sm:$0xe]
      %v1458 = vld [vmem:[#allocation2 + $0x78] sm:$0xe]
      %v1459 = vld [vmem:[#allocation2 + $0x84] sm:$0xe]
      %v1460 = vld [vmem:[#allocation2 + $0x90] sm:$0xe]
      %v1461 = vld [vmem:[#allocation2 + $0x9c] sm:$0xe]
      %v1462 = vld [vmem:[#allocation2 + $0xa8] sm:$0xe]
      %v1463 = vld [vmem:[#allocation2 + $0xb4] sm:$0xe]
      %v1464 = vld [vmem:[#allocation2 + $0xc0] sm:$0xe]
      %v1465 = vld [vmem:[#allocation2 + $0xcc] sm:$0xe]
      %v1502 = vunpack.c.l.b16 %v1394
      %v1503 = vunpack.c.l.b16 %v1395
      %v1504 = vunpack.c.l.b16 %v1396
      %v1505 = vunpack.c.l.b16 %v1397
      %v1506 = vunpack.c.l.b16 %v1398
      %v1507 = vunpack.c.l.b16 %v1399
      %v1508 = vunpack.c.l.b16 %v1400
      %v1509 = vunpack.c.l.b16 %v1401
      %v1510 = vunpack.c.l.b16 %v1402
      %v1511 = vunpack.c.l.b16 %v1403
      %v1512 = vunpack.c.l.b16 %v1404
      %v1513 = vunpack.c.l.b16 %v1405
      %v1514 = vunpack.c.l.b16 %v1406
      %v1515 = vunpack.c.l.b16 %v1407
      %v1516 = vunpack.c.l.b16 %v1408
      %v1517 = vunpack.c.l.b16 %v1409
      %v1518 = vunpack.c.l.b16 %v1410
      %v1519 = vunpack.c.l.b16 %v1411
      %v1520 = vunpack.c.l.b16 %v1412
      %v1521 = vunpack.c.l.b16 %v1413
      %v1522 = vunpack.c.l.b16 %v1414
      %v1523 = vunpack.c.l.b16 %v1415
      %v1524 = vunpack.c.l.b16 %v1416
      %v1525 = vunpack.c.l.b16 %v1417
      %v1526 = vunpack.c.l.b16 %v1418
      %v1527 = vunpack.c.l.b16 %v1419
      %v1528 = vunpack.c.l.b16 %v1420
      %v1529 = vunpack.c.l.b16 %v1421
      %v1530 = vunpack.c.l.b16 %v1422
      %v1531 = vunpack.c.l.b16 %v1423
      %v1532 = vunpack.c.l.b16 %v1424
      %v1533 = vunpack.c.l.b16 %v1425
      %v1534 = vunpack.c.l.b16 %v1426
      %v1535 = vunpack.c.l.b16 %v1427
      %v1536 = vunpack.c.l.b16 %v1428
      %v1537 = vunpack.c.l.b16 %v1429
      %v1538 = vpack.c.b16 %v1503, %v1502
      %v1539 = vpack.c.b16 %v1505, %v1504
      %v1540 = vpack.c.b16 %v1507, %v1506
      %v1541 = vpack.c.b16 %v1509, %v1508
      %v1542 = vpack.c.b16 %v1511, %v1510
      %v1543 = vpack.c.b16 %v1513, %v1512
      %v1544 = vpack.c.b16 %v1515, %v1514
      %v1545 = vpack.c.b16 %v1517, %v1516
      %v1546 = vpack.c.b16 %v1519, %v1518
      %v1547 = vpack.c.b16 %v1521, %v1520
      %v1548 = vpack.c.b16 %v1523, %v1522
      %v1549 = vpack.c.b16 %v1525, %v1524
      %v1550 = vpack.c.b16 %v1527, %v1526
      %v1551 = vpack.c.b16 %v1529, %v1528
      %v1552 = vpack.c.b16 %v1531, %v1530
      %v1553 = vpack.c.b16 %v1533, %v1532
      %v1554 = vpack.c.b16 %v1535, %v1534
      %v1555 = vpack.c.b16 %v1537, %v1536
      %v1592 = vunpack.c.l.b16 %v1430
      %v1593 = vunpack.c.l.b16 %v1431
      %v1594 = vunpack.c.l.b16 %v1432
      %v1595 = vunpack.c.l.b16 %v1433
      %v1596 = vunpack.c.l.b16 %v1434
      %v1597 = vunpack.c.l.b16 %v1435
      %v1598 = vunpack.c.l.b16 %v1436
      %v1599 = vunpack.c.l.b16 %v1437
      %v1600 = vunpack.c.l.b16 %v1438
      %v1601 = vunpack.c.l.b16 %v1439
      %v1602 = vunpack.c.l.b16 %v1440
      %v1603 = vunpack.c.l.b16 %v1441
      %v1604 = vunpack.c.l.b16 %v1442
      %v1605 = vunpack.c.l.b16 %v1443
      %v1606 = vunpack.c.l.b16 %v1444
      %v1607 = vunpack.c.l.b16 %v1445
      %v1608 = vunpack.c.l.b16 %v1446
      %v1609 = vunpack.c.l.b16 %v1447
      %v1610 = vpack.c.b16 %v1592, %v1592
      %v1611 = vpack.c.b16 %v1593, %v1593
      %v1612 = vpack.c.b16 %v1594, %v1594
      %v1613 = vpack.c.b16 %v1595, %v1595
      %v1614 = vpack.c.b16 %v1596, %v1596
      %v1615 = vpack.c.b16 %v1597, %v1597
      %v1616 = vpack.c.b16 %v1598, %v1598
      %v1617 = vpack.c.b16 %v1599, %v1599
      %v1618 = vpack.c.b16 %v1600, %v1600
      %v1619 = vpack.c.b16 %v1601, %v1601
      %v1620 = vpack.c.b16 %v1602, %v1602
      %v1621 = vpack.c.b16 %v1603, %v1603
      %v1622 = vpack.c.b16 %v1604, %v1604
      %v1623 = vpack.c.b16 %v1605, %v1605
      %v1624 = vpack.c.b16 %v1606, %v1606
      %v1625 = vpack.c.b16 %v1607, %v1607
      %v1626 = vpack.c.b16 %v1608, %v1608
      %v1627 = vpack.c.b16 %v1609, %v1609
      %vm1628 = vsmask.f32 7424
      %v1630 = vshrl.u32 %v1538, 16
      %v1632 = vshll.u32 %v1538, 16
      %v1634 = vrot.slane %v1632, 1
      %v1635 = vor.u32 %v1630, %v1634
      %v1637 = vshll.u32 %v1610, 16
      %v1639 = vrot.slane %v1637, 1
      %v1640 = vsel %vm1628, %v1635, %v1639
      %v1642 = vshrl.u32 %v1539, 16
      %v1644 = vshll.u32 %v1539, 16
      %v1646 = vrot.slane %v1644, 1
      %v1647 = vor.u32 %v1642, %v1646
      %v1649 = vshll.u32 %v1611, 16
      %v1651 = vrot.slane %v1649, 1
      %v1652 = vsel %vm1628, %v1647, %v1651
      %v1654 = vshrl.u32 %v1540, 16
      %v1656 = vshll.u32 %v1540, 16
      %v1658 = vrot.slane %v1656, 1
      %v1659 = vor.u32 %v1654, %v1658
      %v1661 = vshll.u32 %v1612, 16
      %v1663 = vrot.slane %v1661, 1
      %v1664 = vsel %vm1628, %v1659, %v1663
      %v1666 = vshrl.u32 %v1541, 16
      %v1668 = vshll.u32 %v1541, 16
      %v1670 = vrot.slane %v1668, 1
      %v1671 = vor.u32 %v1666, %v1670
      %v1673 = vshll.u32 %v1613, 16
      %v1675 = vrot.slane %v1673, 1
      %v1676 = vsel %vm1628, %v1671, %v1675
      %v1678 = vshrl.u32 %v1542, 16
      %v1680 = vshll.u32 %v1542, 16
      %v1682 = vrot.slane %v1680, 1
      %v1683 = vor.u32 %v1678, %v1682
      %v1685 = vshll.u32 %v1614, 16
      %v1687 = vrot.slane %v1685, 1
      %v1688 = vsel %vm1628, %v1683, %v1687
      %v1690 = vshrl.u32 %v1543, 16
      %v1692 = vshll.u32 %v1543, 16
      %v1694 = vrot.slane %v1692, 1
      %v1695 = vor.u32 %v1690, %v1694
      %v1697 = vshll.u32 %v1615, 16
      %v1699 = vrot.slane %v1697, 1
      %v1700 = vsel %vm1628, %v1695, %v1699
      %v1702 = vshrl.u32 %v1544, 16
      %v1704 = vshll.u32 %v1544, 16
      %v1706 = vrot.slane %v1704, 1
      %v1707 = vor.u32 %v1702, %v1706
      %v1709 = vshll.u32 %v1616, 16
      %v1711 = vrot.slane %v1709, 1
      %v1712 = vsel %vm1628, %v1707, %v1711
      %v1714 = vshrl.u32 %v1545, 16
      %v1716 = vshll.u32 %v1545, 16
      %v1718 = vrot.slane %v1716, 1
      %v1719 = vor.u32 %v1714, %v1718
      %v1721 = vshll.u32 %v1617, 16
      %v1723 = vrot.slane %v1721, 1
      %v1724 = vsel %vm1628, %v1719, %v1723
      %v1726 = vshrl.u32 %v1546, 16
      %v1728 = vshll.u32 %v1546, 16
      %v1730 = vrot.slane %v1728, 1
      %v1731 = vor.u32 %v1726, %v1730
      %v1733 = vshll.u32 %v1618, 16
      %v1735 = vrot.slane %v1733, 1
      %v1736 = vsel %vm1628, %v1731, %v1735
      %v1738 = vshrl.u32 %v1547, 16
      %v1740 = vshll.u32 %v1547, 16
      %v1742 = vrot.slane %v1740, 1
      %v1743 = vor.u32 %v1738, %v1742
      %v1745 = vshll.u32 %v1619, 16
      %v1747 = vrot.slane %v1745, 1
      %v1748 = vsel %vm1628, %v1743, %v1747
      %v1750 = vshrl.u32 %v1548, 16
      %v1752 = vshll.u32 %v1548, 16
      %v1754 = vrot.slane %v1752, 1
      %v1755 = vor.u32 %v1750, %v1754
      %v1757 = vshll.u32 %v1620, 16
      %v1759 = vrot.slane %v1757, 1
      %v1760 = vsel %vm1628, %v1755, %v1759
      %v1762 = vshrl.u32 %v1549, 16
      %v1764 = vshll.u32 %v1549, 16
      %v1766 = vrot.slane %v1764, 1
      %v1767 = vor.u32 %v1762, %v1766
      %v1769 = vshll.u32 %v1621, 16
      %v1771 = vrot.slane %v1769, 1
      %v1772 = vsel %vm1628, %v1767, %v1771
      %v1774 = vshrl.u32 %v1550, 16
      %v1776 = vshll.u32 %v1550, 16
      %v1778 = vrot.slane %v1776, 1
      %v1779 = vor.u32 %v1774, %v1778
      %v1781 = vshll.u32 %v1622, 16
      %v1783 = vrot.slane %v1781, 1
      %v1784 = vsel %vm1628, %v1779, %v1783
      %v1786 = vshrl.u32 %v1551, 16
      %v1788 = vshll.u32 %v1551, 16
      %v1790 = vrot.slane %v1788, 1
      %v1791 = vor.u32 %v1786, %v1790
      %v1793 = vshll.u32 %v1623, 16
      %v1795 = vrot.slane %v1793, 1
      %v1796 = vsel %vm1628, %v1791, %v1795
      %v1798 = vshrl.u32 %v1552, 16
      %v1800 = vshll.u32 %v1552, 16
      %v1802 = vrot.slane %v1800, 1
      %v1803 = vor.u32 %v1798, %v1802
      %v1805 = vshll.u32 %v1624, 16
      %v1807 = vrot.slane %v1805, 1
      %v1808 = vsel %vm1628, %v1803, %v1807
      %v1810 = vshrl.u32 %v1553, 16
      %v1812 = vshll.u32 %v1553, 16
      %v1814 = vrot.slane %v1812, 1
      %v1815 = vor.u32 %v1810, %v1814
      %v1817 = vshll.u32 %v1625, 16
      %v1819 = vrot.slane %v1817, 1
      %v1820 = vsel %vm1628, %v1815, %v1819
      %v1822 = vshrl.u32 %v1554, 16
      %v1824 = vshll.u32 %v1554, 16
      %v1826 = vrot.slane %v1824, 1
      %v1827 = vor.u32 %v1822, %v1826
      %v1829 = vshll.u32 %v1626, 16
      %v1831 = vrot.slane %v1829, 1
      %v1832 = vsel %vm1628, %v1827, %v1831
      %v1834 = vshrl.u32 %v1555, 16
      %v1836 = vshll.u32 %v1555, 16
      %v1838 = vrot.slane %v1836, 1
      %v1839 = vor.u32 %v1834, %v1838
      %v1841 = vshll.u32 %v1627, 16
      %v1843 = vrot.slane %v1841, 1
      %v1844 = vsel %vm1628, %v1839, %v1843
      %v1881 = vunpack.c.l.b16 %v1448
      %v1882 = vunpack.c.l.b16 %v1449
      %v1883 = vunpack.c.l.b16 %v1450
      %v1884 = vunpack.c.l.b16 %v1451
      %v1885 = vunpack.c.l.b16 %v1452
      %v1886 = vunpack.c.l.b16 %v1453
      %v1887 = vunpack.c.l.b16 %v1454
      %v1888 = vunpack.c.l.b16 %v1455
      %v1889 = vunpack.c.l.b16 %v1456
      %v1890 = vunpack.c.l.b16 %v1457
      %v1891 = vunpack.c.l.b16 %v1458
      %v1892 = vunpack.c.l.b16 %v1459
      %v1893 = vunpack.c.l.b16 %v1460
      %v1894 = vunpack.c.l.b16 %v1461
      %v1895 = vunpack.c.l.b16 %v1462
      %v1896 = vunpack.c.l.b16 %v1463
      %v1897 = vunpack.c.l.b16 %v1464
      %v1898 = vunpack.c.l.b16 %v1465
      %v1899 = vpack.c.b16 %v1503, %v1881
      %v1900 = vpack.c.b16 %v1505, %v1882
      %v1901 = vpack.c.b16 %v1507, %v1883
      %v1902 = vpack.c.b16 %v1509, %v1884
      %v1903 = vpack.c.b16 %v1511, %v1885
      %v1904 = vpack.c.b16 %v1513, %v1886
      %v1905 = vpack.c.b16 %v1515, %v1887
      %v1906 = vpack.c.b16 %v1517, %v1888
      %v1907 = vpack.c.b16 %v1519, %v1889
      %v1908 = vpack.c.b16 %v1521, %v1890
      %v1909 = vpack.c.b16 %v1523, %v1891
      %v1910 = vpack.c.b16 %v1525, %v1892
      %v1911 = vpack.c.b16 %v1527, %v1893
      %v1912 = vpack.c.b16 %v1529, %v1894
      %v1913 = vpack.c.b16 %v1531, %v1895
      %v1914 = vpack.c.b16 %v1533, %v1896
      %v1915 = vpack.c.b16 %v1535, %v1897
      %v1916 = vpack.c.b16 %v1537, %v1898
      %vm1917 = vcmask 1046528
      %v1918 = vrot.slane %v1899, 1
      %v1919 = vrot.slane %v1610, 1
      %v1920 = vsel %vm1917, %v1918, %v1919
      %v1921 = vrot.slane %v1900, 1
      %v1922 = vrot.slane %v1611, 1
      %v1923 = vsel %vm1917, %v1921, %v1922
      %v1924 = vrot.slane %v1901, 1
      %v1925 = vrot.slane %v1612, 1
      %v1926 = vsel %vm1917, %v1924, %v1925
      %v1927 = vrot.slane %v1902, 1
      %v1928 = vrot.slane %v1613, 1
      %v1929 = vsel %vm1917, %v1927, %v1928
      %v1930 = vrot.slane %v1903, 1
      %v1931 = vrot.slane %v1614, 1
      %v1932 = vsel %vm1917, %v1930, %v1931
      %v1933 = vrot.slane %v1904, 1
      %v1934 = vrot.slane %v1615, 1
      %v1935 = vsel %vm1917, %v1933, %v1934
      %v1936 = vrot.slane %v1905, 1
      %v1937 = vrot.slane %v1616, 1
      %v1938 = vsel %vm1917, %v1936, %v1937
      %v1939 = vrot.slane %v1906, 1
      %v1940 = vrot.slane %v1617, 1
      %v1941 = vsel %vm1917, %v1939, %v1940
      %v1942 = vrot.slane %v1907, 1
      %v1943 = vrot.slane %v1618, 1
      %v1944 = vsel %vm1917, %v1942, %v1943
      %v1945 = vrot.slane %v1908, 1
      %v1946 = vrot.slane %v1619, 1
      %v1947 = vsel %vm1917, %v1945, %v1946
      %v1948 = vrot.slane %v1909, 1
      %v1949 = vrot.slane %v1620, 1
      %v1950 = vsel %vm1917, %v1948, %v1949
      %v1951 = vrot.slane %v1910, 1
      %v1952 = vrot.slane %v1621, 1
      %v1953 = vsel %vm1917, %v1951, %v1952
      %v1954 = vrot.slane %v1911, 1
      %v1955 = vrot.slane %v1622, 1
      %v1956 = vsel %vm1917, %v1954, %v1955
      %v1957 = vrot.slane %v1912, 1
      %v1958 = vrot.slane %v1623, 1
      %v1959 = vsel %vm1917, %v1957, %v1958
      %v1960 = vrot.slane %v1913, 1
      %v1961 = vrot.slane %v1624, 1
      %v1962 = vsel %vm1917, %v1960, %v1961
      %v1963 = vrot.slane %v1914, 1
      %v1964 = vrot.slane %v1625, 1
      %v1965 = vsel %vm1917, %v1963, %v1964
      %v1966 = vrot.slane %v1915, 1
      %v1967 = vrot.slane %v1626, 1
      %v1968 = vsel %vm1917, %v1966, %v1967
      %v1969 = vrot.slane %v1916, 1
      %v1970 = vrot.slane %v1627, 1
      %v1971 = vsel %vm1917, %v1969, %v1970
      %v1990 = vld [vmem:[%s3] sm:$0xf]
      %v1991 = vld [vmem:[%s3 + $0x4] sm:$0xf]
      %v1992 = vld [vmem:[%s3 + $0x8] sm:$0xf]
      %v1993 = vld [vmem:[%s3 + $0xc] sm:$0xf]
      %v1994 = vld [vmem:[%s3 + $0x10] sm:$0xf]
      %v1995 = vld [vmem:[%s3 + $0x14] sm:$0xf]
      %v1996 = vld [vmem:[%s3 + $0x18] sm:$0xf]
      %v1997 = vld [vmem:[%s3 + $0x1c] sm:$0xf]
      %v1998 = vld [vmem:[%s3 + $0x20] sm:$0xf]
      %v1999 = vld [vmem:[%s3 + $0x24] sm:$0xf]
      %v2000 = vld [vmem:[%s3 + $0x28] sm:$0xf]
      %v2001 = vld [vmem:[%s3 + $0x2c] sm:$0xf]
      %v2002 = vld [vmem:[%s3 + $0x30] sm:$0xf]
      %v2003 = vld [vmem:[%s3 + $0x34] sm:$0xf]
      %v2004 = vld [vmem:[%s3 + $0x38] sm:$0xf]
      %v2005 = vld [vmem:[%s3 + $0x3c] sm:$0xf]
      %v2006 = vld [vmem:[%s3 + $0x40] sm:$0xf]
      %v2007 = vld [vmem:[%s3 + $0x44] sm:$0xf]
      %v2008 = vld [vmem:[%s3 + $0x48] sm:$0xf]
      %v2009 = vld [vmem:[%s3 + $0x4c] sm:$0xf]
      %v2010 = vld [vmem:[%s3 + $0x50] sm:$0xf]
      %v2011 = vld [vmem:[%s3 + $0x54] sm:$0xf]
      %v2012 = vld [vmem:[%s3 + $0x58] sm:$0xf]
      %v2013 = vld [vmem:[%s3 + $0x5c] sm:$0xf]
      %v2014 = vld [vmem:[%s3 + $0x60] sm:$0xf]
      %v2015 = vld [vmem:[%s3 + $0x64] sm:$0xf]
      %v2016 = vld [vmem:[%s3 + $0x68] sm:$0xf]
      %v2017 = vld [vmem:[%s3 + $0x6c] sm:$0xf]
      %v2018 = vld [vmem:[%s3 + $0x70] sm:$0xf]
      %v2019 = vld [vmem:[%s3 + $0x74] sm:$0xf]
      %v2020 = vld [vmem:[%s3 + $0x78] sm:$0xf]
      %v2021 = vld [vmem:[%s3 + $0x7c] sm:$0xf]
      %v2022 = vld [vmem:[%s3 + $0x80] sm:$0xf]
      %v2023 = vld [vmem:[%s3 + $0x84] sm:$0xf]
      %v2024 = vld [vmem:[%s3 + $0x88] sm:$0xf]
      %v2025 = vld [vmem:[%s3 + $0x8c] sm:$0xf]
      %v2026 = vld [vmem:[%s3 + $0x90] sm:$0xf]
      %v2027 = vld [vmem:[%s3 + $0x94] sm:$0xf]
      %v2028 = vld [vmem:[%s3 + $0x98] sm:$0xf]
      %v2029 = vld [vmem:[%s3 + $0x9c] sm:$0xf]
      %v2030 = vld [vmem:[%s3 + $0xa0] sm:$0xf]
      %v2031 = vld [vmem:[%s3 + $0xa4] sm:$0xf]
      %v2032 = vld [vmem:[%s3 + $0xa8] sm:$0xf]
      %v2033 = vld [vmem:[%s3 + $0xac] sm:$0xf]
      %v2034 = vld [vmem:[%s3 + $0xb0] sm:$0xf]
      %v2035 = vld [vmem:[%s3 + $0xb4] sm:$0xf]
      %v2036 = vld [vmem:[%s3 + $0xb8] sm:$0xf]
      %v2037 = vld [vmem:[%s3 + $0xbc] sm:$0xf]
      %s2038 = scalar_lea.vmem %s3, 192
      %v2039 = vld [vmem:[%s2038] sm:$0xf]
      %v2040 = vld [vmem:[%s2038 + $0x4] sm:$0xf]
      %v2041 = vld [vmem:[%s2038 + $0x8] sm:$0xf]
      %v2042 = vld [vmem:[%s2038 + $0xc] sm:$0xf]
      %v2043 = vld [vmem:[%s2038 + $0x10] sm:$0xf]
      %v2044 = vld [vmem:[%s2038 + $0x14] sm:$0xf]
      %v2045 = vld [vmem:[%s2038 + $0x18] sm:$0xf]
      %v2046 = vld [vmem:[%s2038 + $0x1c] sm:$0xf]
      %v2047 = vld [vmem:[%s2038 + $0x20] sm:$0xf]
      %v2048 = vld [vmem:[%s2038 + $0x24] sm:$0xf]
      %v2049 = vld [vmem:[%s2038 + $0x28] sm:$0xf]
      %v2050 = vld [vmem:[%s2038 + $0x2c] sm:$0xf]
      %v2051 = vld [vmem:[%s2038 + $0x30] sm:$0xf]
      %v2052 = vld [vmem:[%s2038 + $0x34] sm:$0xf]
      %v2053 = vld [vmem:[%s2038 + $0x38] sm:$0xf]
      %v2054 = vld [vmem:[%s2038 + $0x3c] sm:$0xf]
      %v2055 = vld [vmem:[%s2038 + $0x40] sm:$0xf]
      %v2056 = vld [vmem:[%s2038 + $0x44] sm:$0xf]
      %v2057 = vld [vmem:[%s2038 + $0x48] sm:$0xf]
      %v2058 = vld [vmem:[%s2038 + $0x4c] sm:$0xf]
      %v2059 = vld [vmem:[%s2038 + $0x50] sm:$0xf]
      %v2060 = vld [vmem:[%s2038 + $0x54] sm:$0xf]
      %v2061 = vld [vmem:[%s2038 + $0x58] sm:$0xf]
      %v2062 = vld [vmem:[%s2038 + $0x5c] sm:$0xf]
      %v2063 = vld [vmem:[%s2038 + $0x60] sm:$0xf]
      %v2064 = vld [vmem:[%s2038 + $0x64] sm:$0xf]
      %v2065 = vld [vmem:[%s2038 + $0x68] sm:$0xf]
      %v2066 = vld [vmem:[%s2038 + $0x6c] sm:$0xf]
      %v2067 = vld [vmem:[%s2038 + $0x70] sm:$0xf]
      %v2068 = vld [vmem:[%s2038 + $0x74] sm:$0xf]
      %v2069 = vld [vmem:[%s2038 + $0x78] sm:$0xf]
      %v2070 = vld [vmem:[%s2038 + $0x7c] sm:$0xf]
      %v2071 = vld [vmem:[%s2038 + $0x80] sm:$0xf]
      %v2072 = vld [vmem:[%s2038 + $0x84] sm:$0xf]
      %v2073 = vld [vmem:[%s2038 + $0x88] sm:$0xf]
      %v2074 = vld [vmem:[%s2038 + $0x8c] sm:$0xf]
      %v2075 = vld [vmem:[%s2038 + $0x90] sm:$0xf]
      %v2076 = vld [vmem:[%s2038 + $0x94] sm:$0xf]
      %v2077 = vld [vmem:[%s2038 + $0x98] sm:$0xf]
      %v2078 = vld [vmem:[%s2038 + $0x9c] sm:$0xf]
      %v2079 = vld [vmem:[%s2038 + $0xa0] sm:$0xf]
      %v2080 = vld [vmem:[%s2038 + $0xa4] sm:$0xf]
      %v2081 = vld [vmem:[%s2038 + $0xa8] sm:$0xf]
      %v2082 = vld [vmem:[%s2038 + $0xac] sm:$0xf]
      %v2083 = vld [vmem:[%s2038 + $0xb0] sm:$0xf]
      %v2084 = vld [vmem:[%s2038 + $0xb4] sm:$0xf]
      %v2085 = vld [vmem:[%s2038 + $0xb8] sm:$0xf]
      %v2086 = vld [vmem:[%s2038 + $0xbc] sm:$0xf]
      %v2135 = vunpack.c.l.b16 %v2039
      %v2136 = vunpack.c.l.b16 %v2040
      %v2137 = vunpack.c.l.b16 %v2041
      %v2138 = vunpack.c.l.b16 %v2042
      %v2139 = vunpack.c.l.b16 %v2043
      %v2140 = vunpack.c.l.b16 %v2044
      %v2141 = vunpack.c.l.b16 %v2045
      %v2142 = vunpack.c.l.b16 %v2046
      %v2143 = vunpack.c.l.b16 %v2047
      %v2144 = vunpack.c.l.b16 %v2048
      %v2145 = vunpack.c.l.b16 %v2049
      %v2146 = vunpack.c.l.b16 %v2050
      %v2147 = vunpack.c.l.b16 %v2051
      %v2148 = vunpack.c.l.b16 %v2052
      %v2149 = vunpack.c.l.b16 %v2053
      %v2150 = vunpack.c.l.b16 %v2054
      %v2151 = vunpack.c.l.b16 %v2055
      %v2152 = vunpack.c.l.b16 %v2056
      %v2153 = vunpack.c.l.b16 %v2057
      %v2154 = vunpack.c.l.b16 %v2058
      %v2155 = vunpack.c.l.b16 %v2059
      %v2156 = vunpack.c.l.b16 %v2060
      %v2157 = vunpack.c.l.b16 %v2061
      %v2158 = vunpack.c.l.b16 %v2062
      %v2159 = vunpack.c.l.b16 %v2063
      %v2160 = vunpack.c.l.b16 %v2064
      %v2161 = vunpack.c.l.b16 %v2065
      %v2162 = vunpack.c.l.b16 %v2066
      %v2163 = vunpack.c.l.b16 %v2067
      %v2164 = vunpack.c.l.b16 %v2068
      %v2165 = vunpack.c.l.b16 %v2069
      %v2166 = vunpack.c.l.b16 %v2070
      %v2167 = vunpack.c.l.b16 %v2071
      %v2168 = vunpack.c.l.b16 %v2072
      %v2169 = vunpack.c.l.b16 %v2073
      %v2170 = vunpack.c.l.b16 %v2074
      %v2171 = vunpack.c.l.b16 %v2075
      %v2172 = vunpack.c.l.b16 %v2076
      %v2173 = vunpack.c.l.b16 %v2077
      %v2174 = vunpack.c.l.b16 %v2078
      %v2175 = vunpack.c.l.b16 %v2079
      %v2176 = vunpack.c.l.b16 %v2080
      %v2177 = vunpack.c.l.b16 %v2081
      %v2178 = vunpack.c.l.b16 %v2082
      %v2179 = vunpack.c.l.b16 %v2083
      %v2180 = vunpack.c.l.b16 %v2084
      %v2181 = vunpack.c.l.b16 %v2085
      %v2182 = vunpack.c.l.b16 %v2086
      %v2183 = vpack.c.b16 %v2136, %v2135
      %v2184 = vpack.c.b16 %v2138, %v2137
      %v2185 = vpack.c.b16 %v2140, %v2139
      %v2186 = vpack.c.b16 %v2142, %v2141
      %v2187 = vpack.c.b16 %v2144, %v2143
      %v2188 = vpack.c.b16 %v2146, %v2145
      %v2189 = vpack.c.b16 %v2148, %v2147
      %v2190 = vpack.c.b16 %v2150, %v2149
      %v2191 = vpack.c.b16 %v2152, %v2151
      %v2192 = vpack.c.b16 %v2154, %v2153
      %v2193 = vpack.c.b16 %v2156, %v2155
      %v2194 = vpack.c.b16 %v2158, %v2157
      %v2195 = vpack.c.b16 %v2160, %v2159
      %v2196 = vpack.c.b16 %v2162, %v2161
      %v2197 = vpack.c.b16 %v2164, %v2163
      %v2198 = vpack.c.b16 %v2166, %v2165
      %v2199 = vpack.c.b16 %v2168, %v2167
      %v2200 = vpack.c.b16 %v2170, %v2169
      %v2201 = vpack.c.b16 %v2172, %v2171
      %v2202 = vpack.c.b16 %v2174, %v2173
      %v2203 = vpack.c.b16 %v2176, %v2175
      %v2204 = vpack.c.b16 %v2178, %v2177
      %v2205 = vpack.c.b16 %v2180, %v2179
      %v2206 = vpack.c.b16 %v2182, %v2181
      %2231 = vmatprep.subr.bf16.mxu0 0
      %2232 = vmatpush1.bf16.msra.mxu0 %v2183
      %2233 = vmatprep.subr.bf16.mxu0 0
      %2234 = vmatpush1.bf16.msra.mxu0 %v2184
      %2235 = vmatprep.subr.bf16.mxu0 0
      %2236 = vmatpush1.bf16.msra.mxu0 %v2185
      %2237 = vmatprep.subr.bf16.mxu0 0
      %2238 = vmatpush1.bf16.msra.mxu0 %v2186
      %2239 = vmatprep.subr.bf16.mxu0 0
      %2240 = vmatpush1.bf16.msra.mxu0 %v2187
      %2241 = vmatprep.subr.bf16.mxu0 0
      %2242 = vmatpush1.bf16.msra.mxu0 %v2188
      %2243 = vmatprep.subr.bf16.mxu0 0
      %2244 = vmatpush1.bf16.msra.mxu0 %v2189
      %2245 = vmatprep.subr.bf16.mxu0 0
      %2246 = vmatpush1.bf16.msra.mxu0 %v2190
      %2247 = vmatprep.subr.bf16.mxu0 0
      %2248 = vmatpush1.bf16.msra.mxu0 %v2191
      %2249 = vmatprep.subr.bf16.mxu0 0
      %2250 = vmatpush1.bf16.msra.mxu0 %v2192
      %2251 = vmatprep.subr.bf16.mxu0 0
      %2252 = vmatpush1.bf16.msra.mxu0 %v2193
      %2253 = vmatprep.subr.bf16.mxu0 0
      %2254 = vmatpush1.bf16.msra.mxu0 %v2194
      %2255 = vmatprep.subr.bf16.mxu0 0
      %2256 = vmatpush1.bf16.msra.mxu0 %v2195
      %2257 = vmatprep.subr.bf16.mxu0 0
      %2258 = vmatpush1.bf16.msra.mxu0 %v2196
      %2259 = vmatprep.subr.bf16.mxu0 0
      %2260 = vmatpush1.bf16.msra.mxu0 %v2197
      %2261 = vmatprep.subr.bf16.mxu0 0
      %2262 = vmatpush1.bf16.msra.mxu0 %v2198
      %2263 = vmatprep.mubr.bf16.mxu0 %v1652
      %2264 = vmatmul.mubr.bf16.gmra.mrb[0].mxu0 %v1539
      %v2265 = vpop.f32.mrb[0].mxu0
      %v2266 = vadd.f32 0.0, %v2265
      %v2267 = vpop.f32.mrb[0].mxu0
      %v2268 = vpop.f32.mrb[0].mxu0
      %v2269 = vadd.f32 0.0, %v2268
      %v2270 = vpop.f32.mrb[0].mxu0
      %2271 = vmatprep.mubr.bf16.mxu0 %v1664
      %2272 = vmatmul.mubr.bf16.gmra.mrb[0].mxu0 %v1540
      %v2273 = vpop.f32.mrb[0].mxu0
      %v2274 = vadd.f32 0.0, %v2273
      %v2275 = vpop.f32.mrb[0].mxu0
      %v2276 = vpop.f32.mrb[0].mxu0
      %v2277 = vadd.f32 0.0, %v2276
      %v2278 = vpop.f32.mrb[0].mxu0
      %2279 = vmatprep.mubr.bf16.mxu0 %v1676
      %2280 = vmatmul.mubr.bf16.gmra.mrb[0].mxu0 %v1541
      %v2281 = vpop.f32.mrb[0].mxu0
      %v2282 = vadd.f32 0.0, %v2281
      %v2283 = vpop.f32.mrb[0].mxu0
      %v2284 = vpop.f32.mrb[0].mxu0
      %v2285 = vadd.f32 0.0, %v2284
      %v2286 = vpop.f32.mrb[0].mxu0
      %2287 = vmatprep.mubr.bf16.mxu0 %v1688
      %2288 = vmatmul.mubr.bf16.gmra.mrb[0].mxu0 %v1542
      %v2289 = vpop.f32.mrb[0].mxu0
      %v2290 = vadd.f32 0.0, %v2289
      %v2291 = vpop.f32.mrb[0].mxu0
      %v2292 = vpop.f32.mrb[0].mxu0
      %v2293 = vadd.f32 0.0, %v2292
      %v2294 = vpop.f32.mrb[0].mxu0
      %2295 = vmatprep.mubr.bf16.mxu0 %v1700
      %2296 = vmatmul.mubr.bf16.gmra.mrb[0].mxu0 %v1543
      %v2297 = vpop.f32.mrb[0].mxu0
      %v2298 = vadd.f32 0.0, %v2297
      %v2299 = vpop.f32.mrb[0].mxu0
      %v2300 = vpop.f32.mrb[0].mxu0
      %v2301 = vadd.f32 0.0, %v2300
      %v2302 = vpop.f32.mrb[0].mxu0
      %2303 = vmatprep.mubr.bf16.mxu0 %v1712
      %2304 = vmatmul.mubr.bf16.gmra.mrb[0].mxu0 %v1544
      %v2305 = vpop.f32.mrb[0].mxu0
      %v2306 = vadd.f32 0.0, %v2305
      %v2307 = vpop.f32.mrb[0].mxu0
      %v2308 = vpop.f32.mrb[0].mxu0
      %v2309 = vadd.f32 0.0, %v2308
      %v2310 = vpop.f32.mrb[0].mxu0
      %2311 = vmatprep.mubr.bf16.mxu0 %v1724
      %2312 = vmatmul.mubr.bf16.gmra.mrb[0].mxu0 %v1545
      %v2313 = vpop.f32.mrb[0].mxu0
      %v2314 = vadd.f32 0.0, %v2313
      %v2315 = vpop.f32.mrb[0].mxu0
      %v2316 = vpop.f32.mrb[0].mxu0
      %v2317 = vadd.f32 0.0, %v2316
      %v2318 = vpop.f32.mrb[0].mxu0
      %2319 = vmatprep.mubr.bf16.mxu0 %v1736
      %2320 = vmatmul.mubr.bf16.gmra.mrb[0].mxu0 %v1546
      %v2321 = vpop.f32.mrb[0].mxu0
      %v2322 = vadd.f32 0.0, %v2321
      %v2323 = vpop.f32.mrb[0].mxu0
      %v2324 = vpop.f32.mrb[0].mxu0
      %v2325 = vadd.f32 0.0, %v2324
      %v2326 = vpop.f32.mrb[0].mxu0
      %2327 = vmatprep.mubr.bf16.mxu0 %v1748
      %2328 = vmatmul.mubr.bf16.gmra.mrb[0].mxu0 %v1547
      %v2329 = vpop.f32.mrb[0].mxu0
      %v2330 = vadd.f32 0.0, %v2329
      %v2331 = vpop.f32.mrb[0].mxu0
      %v2332 = vpop.f32.mrb[0].mxu0
      %v2333 = vadd.f32 0.0, %v2332
      %v2334 = vpop.f32.mrb[0].mxu0
      %2335 = vmatprep.mubr.bf16.mxu0 %v1760
      %2336 = vmatmul.mubr.bf16.gmra.mrb[0].mxu0 %v1548
      %v2337 = vpop.f32.mrb[0].mxu0
      %v2338 = vadd.f32 0.0, %v2337
      %v2339 = vpop.f32.mrb[0].mxu0
      %v2340 = vpop.f32.mrb[0].mxu0
      %v2341 = vadd.f32 0.0, %v2340
      %v2342 = vpop.f32.mrb[0].mxu0
      %2343 = vmatprep.mubr.bf16.mxu0 %v1772
      %2344 = vmatmul.mubr.bf16.gmra.mrb[0].mxu0 %v1549
      %v2345 = vpop.f32.mrb[0].mxu0
      %v2346 = vadd.f32 0.0, %v2345
      %v2347 = vpop.f32.mrb[0].mxu0
      %v2348 = vpop.f32.mrb[0].mxu0
      %v2349 = vadd.f32 0.0, %v2348
      %v2350 = vpop.f32.mrb[0].mxu0
      %2351 = vmatprep.mubr.bf16.mxu0 %v1784
      %2352 = vmatmul.mubr.bf16.gmra.mrb[0].mxu0 %v1550
      %v2353 = vpop.f32.mrb[0].mxu0
      %v2354 = vadd.f32 0.0, %v2353
      %v2355 = vpop.f32.mrb[0].mxu0
      %v2356 = vpop.f32.mrb[0].mxu0
      %v2357 = vadd.f32 0.0, %v2356
      %v2358 = vpop.f32.mrb[0].mxu0
      %2359 = vmatprep.mubr.bf16.mxu0 %v1796
      %2360 = vmatmul.mubr.bf16.gmra.mrb[0].mxu0 %v1551
      %v2361 = vpop.f32.mrb[0].mxu0
      %v2362 = vadd.f32 0.0, %v2361
      %v2363 = vpop.f32.mrb[0].mxu0
      %v2364 = vpop.f32.mrb[0].mxu0
      %v2365 = vadd.f32 0.0, %v2364
      %v2366 = vpop.f32.mrb[0].mxu0
      %2367 = vmatprep.mubr.bf16.mxu0 %v1808
      %2368 = vmatmul.mubr.bf16.gmra.mrb[0].mxu0 %v1552
      %v2369 = vpop.f32.mrb[0].mxu0
      %v2370 = vadd.f32 0.0, %v2369
      %v2371 = vpop.f32.mrb[0].mxu0
      %v2372 = vpop.f32.mrb[0].mxu0
      %v2373 = vadd.f32 0.0, %v2372
      %v2374 = vpop.f32.mrb[0].mxu0
      %2375 = vmatprep.mubr.bf16.mxu0 %v1820
      %2376 = vmatmul.mubr.bf16.gmra.mrb[0].mxu0 %v1553
      %v2377 = vpop.f32.mrb[0].mxu0
      %v2378 = vadd.f32 0.0, %v2377
      %v2379 = vpop.f32.mrb[0].mxu0
      %v2380 = vpop.f32.mrb[0].mxu0
      %v2381 = vadd.f32 0.0, %v2380
      %v2382 = vpop.f32.mrb[0].mxu0
      %2383 = vmatprep.mubr.bf16.mxu0 %v1832
      %2384 = vmatmul.mubr.bf16.gmra.mrb[0].mxu0 %v1554
      %v2385 = vpop.f32.mrb[0].mxu0
      %v2386 = vadd.f32 0.0, %v2385
      %v2387 = vpop.f32.mrb[0].mxu0
      %v2388 = vpop.f32.mrb[0].mxu0
      %v2389 = vadd.f32 0.0, %v2388
      %v2390 = vpop.f32.mrb[0].mxu0
      %2391 = vdwg.mxu0
      %2392 = vmatprep.subr.bf16.mxu0 0
      %2393 = vmatpush1.bf16.msra.mxu0 %v2199
      %2394 = vmatprep.subr.bf16.mxu0 0
      %2395 = vmatpush1.bf16.msra.mxu0 %v2200
      %2396 = vmatprep.subr.bf16.mxu0 0
      %2397 = vmatpush1.bf16.msra.mxu0 %v2201
      %2398 = vmatprep.subr.bf16.mxu0 0
      %2399 = vmatpush1.bf16.msra.mxu0 %v2202
      %2400 = vmatprep.subr.bf16.mxu0 0
      %2401 = vmatpush1.bf16.msra.mxu0 %v2203
      %2402 = vmatprep.subr.bf16.mxu0 0
      %2403 = vmatpush1.bf16.msra.mxu0 %v2204
      %2404 = vmatprep.subr.bf16.mxu0 0
      %2405 = vmatpush1.bf16.msra.mxu0 %v2205
      %2406 = vmatprep.subr.bf16.mxu0 0
      %2407 = vmatpush1.bf16.msra.mxu0 %v2206
      %2408 = vmatprep.subr.bf16.mxu0 0
      %2409 = vmatpush1.bf16.msra.mxu0 0
      %2410 = vmatprep.subr.bf16.mxu0 0
      %2411 = vmatpush1.bf16.msra.mxu0 0
      %2412 = vmatprep.subr.bf16.mxu0 0
      %2413 = vmatpush1.bf16.msra.mxu0 0
      %2414 = vmatprep.subr.bf16.mxu0 0
      %2415 = vmatpush1.bf16.msra.mxu0 0
      %2416 = vmatprep.subr.bf16.mxu0 0
      %2417 = vmatpush1.bf16.msra.mxu0 0
      %2418 = vmatprep.subr.bf16.mxu0 0
      %2419 = vmatpush1.bf16.msra.mxu0 0
      %2420 = vmatprep.subr.bf16.mxu0 0
      %2421 = vmatpush1.bf16.msra.mxu0 0
      %2422 = vmatprep.subr.bf16.mxu0 0
      %2423 = vmatpush1.bf16.msra.mxu0 0
      %2424 = vmatprep.mubr.bf16.mxu0 0
      %2425 = vmatmul.mubr.bf16.gmra.mrb[0].mxu0 %v1923
      %v2426 = vpop.f32.mrb[0].mxu0
      %v2427 = vadd.f32 %v2266, %v2426
      %v2428 = vpop.f32.mrb[0].mxu0
      %v2429 = vpop.f32.mrb[0].mxu0
      %v2430 = vadd.f32 %v2269, %v2429
      %v2431 = vpop.f32.mrb[0].mxu0
      %2432 = vmatprep.mubr.bf16.mxu0 0
      %2433 = vmatmul.mubr.bf16.gmra.mrb[0].mxu0 %v1926
      %v2434 = vpop.f32.mrb[0].mxu0
      %v2435 = vadd.f32 %v2274, %v2434
      %v2436 = vpop.f32.mrb[0].mxu0
      %v2437 = vpop.f32.mrb[0].mxu0
      %v2438 = vadd.f32 %v2277, %v2437
      %v2439 = vpop.f32.mrb[0].mxu0
      %2440 = vmatprep.mubr.bf16.mxu0 0
      %2441 = vmatmul.mubr.bf16.gmra.mrb[0].mxu0 %v1929
      %v2442 = vpop.f32.mrb[0].mxu0
      %v2443 = vadd.f32 %v2282, %v2442
      %v2444 = vpop.f32.mrb[0].mxu0
      %v2445 = vpop.f32.mrb[0].mxu0
      %v2446 = vadd.f32 %v2285, %v2445
      %v2447 = vpop.f32.mrb[0].mxu0
      %2448 = vmatprep.mubr.bf16.mxu0 0
      %2449 = vmatmul.mubr.bf16.gmra.mrb[0].mxu0 %v1932
      %v2450 = vpop.f32.mrb[0].mxu0
      %v2451 = vadd.f32 %v2290, %v2450
      %v2452 = vpop.f32.mrb[0].mxu0
      %v2453 = vpop.f32.mrb[0].mxu0
      %v2454 = vadd.f32 %v2293, %v2453
      %v2455 = vpop.f32.mrb[0].mxu0
      %2456 = vmatprep.mubr.bf16.mxu0 0
      %2457 = vmatmul.mubr.bf16.gmra.mrb[0].mxu0 %v1935
      %v2458 = vpop.f32.mrb[0].mxu0
      %v2459 = vadd.f32 %v2298, %v2458
      %v2460 = vpop.f32.mrb[0].mxu0
      %v2461 = vpop.f32.mrb[0].mxu0
      %v2462 = vadd.f32 %v2301, %v2461
      %v2463 = vpop.f32.mrb[0].mxu0
      %2464 = vmatprep.mubr.bf16.mxu0 0
      %2465 = vmatmul.mubr.bf16.gmra.mrb[0].mxu0 %v1938
      %v2466 = vpop.f32.mrb[0].mxu0
      %v2467 = vadd.f32 %v2306, %v2466
      %v2468 = vpop.f32.mrb[0].mxu0
      %v2469 = vpop.f32.mrb[0].mxu0
      %v2470 = vadd.f32 %v2309, %v2469
      %v2471 = vpop.f32.mrb[0].mxu0
      %2472 = vmatprep.mubr.bf16.mxu0 0
      %2473 = vmatmul.mubr.bf16.gmra.mrb[0].mxu0 %v1941
      %v2474 = vpop.f32.mrb[0].mxu0
      %v2475 = vadd.f32 %v2314, %v2474
      %v2476 = vpop.f32.mrb[0].mxu0
      %v2477 = vpop.f32.mrb[0].mxu0
      %v2478 = vadd.f32 %v2317, %v2477
      %v2479 = vpop.f32.mrb[0].mxu0
      %2480 = vmatprep.mubr.bf16.mxu0 0
      %2481 = vmatmul.mubr.bf16.gmra.mrb[0].mxu0 %v1944
      %v2482 = vpop.f32.mrb[0].mxu0
      %v2483 = vadd.f32 %v2322, %v2482
      %v2484 = vpop.f32.mrb[0].mxu0
      %v2485 = vpop.f32.mrb[0].mxu0
      %v2486 = vadd.f32 %v2325, %v2485
      %v2487 = vpop.f32.mrb[0].mxu0
      %2488 = vmatprep.mubr.bf16.mxu0 0
      %2489 = vmatmul.mubr.bf16.gmra.mrb[0].mxu0 %v1947
      %v2490 = vpop.f32.mrb[0].mxu0
      %v2491 = vadd.f32 %v2330, %v2490
      %v2492 = vpop.f32.mrb[0].mxu0
      %v2493 = vpop.f32.mrb[0].mxu0
      %v2494 = vadd.f32 %v2333, %v2493
      %v2495 = vpop.f32.mrb[0].mxu0
      %2496 = vmatprep.mubr.bf16.mxu0 0
      %2497 = vmatmul.mubr.bf16.gmra.mrb[0].mxu0 %v1950
      %v2498 = vpop.f32.mrb[0].mxu0
      %v2499 = vadd.f32 %v2338, %v2498
      %v2500 = vpop.f32.mrb[0].mxu0
      %v2501 = vpop.f32.mrb[0].mxu0
      %v2502 = vadd.f32 %v2341, %v2501
      %v2503 = vpop.f32.mrb[0].mxu0
      %2504 = vmatprep.mubr.bf16.mxu0 0
      %2505 = vmatmul.mubr.bf16.gmra.mrb[0].mxu0 %v1953
      %v2506 = vpop.f32.mrb[0].mxu0
      %v2507 = vadd.f32 %v2346, %v2506
      %v2508 = vpop.f32.mrb[0].mxu0
      %v2509 = vpop.f32.mrb[0].mxu0
      %v2510 = vadd.f32 %v2349, %v2509
      %v2511 = vpop.f32.mrb[0].mxu0
      %2512 = vmatprep.mubr.bf16.mxu0 0
      %2513 = vmatmul.mubr.bf16.gmra.mrb[0].mxu0 %v1956
      %v2514 = vpop.f32.mrb[0].mxu0
      %v2515 = vadd.f32 %v2354, %v2514
      %v2516 = vpop.f32.mrb[0].mxu0
      %v2517 = vpop.f32.mrb[0].mxu0
      %v2518 = vadd.f32 %v2357, %v2517
      %v2519 = vpop.f32.mrb[0].mxu0
      %2520 = vmatprep.mubr.bf16.mxu0 0
      %2521 = vmatmul.mubr.bf16.gmra.mrb[0].mxu0 %v1959
      %v2522 = vpop.f32.mrb[0].mxu0
      %v2523 = vadd.f32 %v2362, %v2522
      %v2524 = vpop.f32.mrb[0].mxu0
      %v2525 = vpop.f32.mrb[0].mxu0
      %v2526 = vadd.f32 %v2365, %v2525
      %v2527 = vpop.f32.mrb[0].mxu0
      %2528 = vmatprep.mubr.bf16.mxu0 0
      %2529 = vmatmul.mubr.bf16.gmra.mrb[0].mxu0 %v1962
      %v2530 = vpop.f32.mrb[0].mxu0
      %v2531 = vadd.f32 %v2370, %v2530
      %v2532 = vpop.f32.mrb[0].mxu0
      %v2533 = vpop.f32.mrb[0].mxu0
      %v2534 = vadd.f32 %v2373, %v2533
      %v2535 = vpop.f32.mrb[0].mxu0
      %2536 = vmatprep.mubr.bf16.mxu0 0
      %2537 = vmatmul.mubr.bf16.gmra.mrb[0].mxu0 %v1965
      %v2538 = vpop.f32.mrb[0].mxu0
      %v2539 = vadd.f32 %v2378, %v2538
      %v2540 = vpop.f32.mrb[0].mxu0
      %v2541 = vpop.f32.mrb[0].mxu0
      %v2542 = vadd.f32 %v2381, %v2541
      %v2543 = vpop.f32.mrb[0].mxu0
      %2544 = vmatprep.mubr.bf16.mxu0 0
      %2545 = vmatmul.mubr.bf16.gmra.mrb[0].mxu0 %v1968
      %v2546 = vpop.f32.mrb[0].mxu0
      %v2547 = vadd.f32 %v2386, %v2546
      %v2548 = vpop.f32.mrb[0].mxu0
      %v2549 = vpop.f32.mrb[0].mxu0
      %v2550 = vadd.f32 %v2389, %v2549
      %v2551 = vpop.f32.mrb[0].mxu0
      %2552 = vdwg.mxu0
      %v2601 = vunpack.c.l.b16 %v1990
      %v2602 = vunpack.c.l.b16 %v1991
      %v2603 = vunpack.c.l.b16 %v1992
      %v2604 = vunpack.c.l.b16 %v1993
      %v2605 = vunpack.c.l.b16 %v1994
      %v2606 = vunpack.c.l.b16 %v1995
      %v2607 = vunpack.c.l.b16 %v1996
      %v2608 = vunpack.c.l.b16 %v1997
      %v2609 = vunpack.c.l.b16 %v1998
      %v2610 = vunpack.c.l.b16 %v1999
      %v2611 = vunpack.c.l.b16 %v2000
      %v2612 = vunpack.c.l.b16 %v2001
      %v2613 = vunpack.c.l.b16 %v2002
      %v2614 = vunpack.c.l.b16 %v2003
      %v2615 = vunpack.c.l.b16 %v2004
      %v2616 = vunpack.c.l.b16 %v2005
      %v2617 = vunpack.c.l.b16 %v2006
      %v2618 = vunpack.c.l.b16 %v2007
      %v2619 = vunpack.c.l.b16 %v2008
      %v2620 = vunpack.c.l.b16 %v2009
      %v2621 = vunpack.c.l.b16 %v2010
      %v2622 = vunpack.c.l.b16 %v2011
      %v2623 = vunpack.c.l.b16 %v2012
      %v2624 = vunpack.c.l.b16 %v2013
      %v2625 = vunpack.c.l.b16 %v2014
      %v2626 = vunpack.c.l.b16 %v2015
      %v2627 = vunpack.c.l.b16 %v2016
      %v2628 = vunpack.c.l.b16 %v2017
      %v2629 = vunpack.c.l.b16 %v2018
      %v2630 = vunpack.c.l.b16 %v2019
      %v2631 = vunpack.c.l.b16 %v2020
      %v2632 = vunpack.c.l.b16 %v2021
      %v2633 = vunpack.c.l.b16 %v2022
      %v2634 = vunpack.c.l.b16 %v2023
      %v2635 = vunpack.c.l.b16 %v2024
      %v2636 = vunpack.c.l.b16 %v2025
      %v2637 = vunpack.c.l.b16 %v2026
      %v2638 = vunpack.c.l.b16 %v2027
      %v2639 = vunpack.c.l.b16 %v2028
      %v2640 = vunpack.c.l.b16 %v2029
      %v2641 = vunpack.c.l.b16 %v2030
      %v2642 = vunpack.c.l.b16 %v2031
      %v2643 = vunpack.c.l.b16 %v2032
      %v2644 = vunpack.c.l.b16 %v2033
      %v2645 = vunpack.c.l.b16 %v2034
      %v2646 = vunpack.c.l.b16 %v2035
      %v2647 = vunpack.c.l.b16 %v2036
      %v2648 = vunpack.c.l.b16 %v2037
      %v2649 = vpack.c.b16 %v2602, %v2601
      %v2650 = vpack.c.b16 %v2604, %v2603
      %v2651 = vpack.c.b16 %v2606, %v2605
      %v2652 = vpack.c.b16 %v2608, %v2607
      %v2653 = vpack.c.b16 %v2610, %v2609
      %v2654 = vpack.c.b16 %v2612, %v2611
      %v2655 = vpack.c.b16 %v2614, %v2613
      %v2656 = vpack.c.b16 %v2616, %v2615
      %v2657 = vpack.c.b16 %v2618, %v2617
      %v2658 = vpack.c.b16 %v2620, %v2619
      %v2659 = vpack.c.b16 %v2622, %v2621
      %v2660 = vpack.c.b16 %v2624, %v2623
      %v2661 = vpack.c.b16 %v2626, %v2625
      %v2662 = vpack.c.b16 %v2628, %v2627
      %v2663 = vpack.c.b16 %v2630, %v2629
      %v2664 = vpack.c.b16 %v2632, %v2631
      %v2665 = vpack.c.b16 %v2634, %v2633
      %v2666 = vpack.c.b16 %v2636, %v2635
      %v2667 = vpack.c.b16 %v2638, %v2637
      %v2668 = vpack.c.b16 %v2640, %v2639
      %v2669 = vpack.c.b16 %v2642, %v2641
      %v2670 = vpack.c.b16 %v2644, %v2643
      %v2671 = vpack.c.b16 %v2646, %v2645
      %v2672 = vpack.c.b16 %v2648, %v2647
      %2697 = vmatprep.subr.bf16.mxu0 0
      %2698 = vmatpush1.bf16.msra.mxu0 %v2649
      %2699 = vmatprep.subr.bf16.mxu0 0
      %2700 = vmatpush1.bf16.msra.mxu0 %v2650
      %2701 = vmatprep.subr.bf16.mxu0 0
      %2702 = vmatpush1.bf16.msra.mxu0 %v2651
      %2703 = vmatprep.subr.bf16.mxu0 0
      %2704 = vmatpush1.bf16.msra.mxu0 %v2652
      %2705 = vmatprep.subr.bf16.mxu0 0
      %2706 = vmatpush1.bf16.msra.mxu0 %v2653
      %2707 = vmatprep.subr.bf16.mxu0 0
      %2708 = vmatpush1.bf16.msra.mxu0 %v2654
      %2709 = vmatprep.subr.bf16.mxu0 0
      %2710 = vmatpush1.bf16.msra.mxu0 %v2655
      %2711 = vmatprep.subr.bf16.mxu0 0
      %2712 = vmatpush1.bf16.msra.mxu0 %v2656
      %2713 = vmatprep.subr.bf16.mxu0 0
      %2714 = vmatpush1.bf16.msra.mxu0 %v2657
      %2715 = vmatprep.subr.bf16.mxu0 0
      %2716 = vmatpush1.bf16.msra.mxu0 %v2658
      %2717 = vmatprep.subr.bf16.mxu0 0
      %2718 = vmatpush1.bf16.msra.mxu0 %v2659
      %2719 = vmatprep.subr.bf16.mxu0 0
      %2720 = vmatpush1.bf16.msra.mxu0 %v2660
      %2721 = vmatprep.subr.bf16.mxu0 0
      %2722 = vmatpush1.bf16.msra.mxu0 %v2661
      %2723 = vmatprep.subr.bf16.mxu0 0
      %2724 = vmatpush1.bf16.msra.mxu0 %v2662
      %2725 = vmatprep.subr.bf16.mxu0 0
      %2726 = vmatpush1.bf16.msra.mxu0 %v2663
      %2727 = vmatprep.subr.bf16.mxu0 0
      %2728 = vmatpush1.bf16.msra.mxu0 %v2664
      %2729 = vmatprep.mubr.bf16.mxu0 %v1640
      %2730 = vmatmul.mubr.bf16.gmra.mrb[0].mxu0 %v1538
      %v2731 = vpop.f32.mrb[0].mxu0
      %v2732 = vadd.f32 %v2427, %v2731
      %v2733 = vpop.f32.mrb[0].mxu0
      %v2734 = vpop.f32.mrb[0].mxu0
      %v2735 = vadd.f32 %v2430, %v2734
      %v2736 = vpop.f32.mrb[0].mxu0
      %2737 = vmatprep.mubr.bf16.mxu0 %v1652
      %2738 = vmatmul.mubr.bf16.gmra.mrb[0].mxu0 %v1539
      %v2739 = vpop.f32.mrb[0].mxu0
      %v2740 = vadd.f32 %v2435, %v2739
      %v2741 = vpop.f32.mrb[0].mxu0
      %v2742 = vpop.f32.mrb[0].mxu0
      %v2743 = vadd.f32 %v2438, %v2742
      %v2744 = vpop.f32.mrb[0].mxu0
      %2745 = vmatprep.mubr.bf16.mxu0 %v1664
      %2746 = vmatmul.mubr.bf16.gmra.mrb[0].mxu0 %v1540
      %v2747 = vpop.f32.mrb[0].mxu0
      %v2748 = vadd.f32 %v2443, %v2747
      %v2749 = vpop.f32.mrb[0].mxu0
      %v2750 = vpop.f32.mrb[0].mxu0
      %v2751 = vadd.f32 %v2446, %v2750
      %v2752 = vpop.f32.mrb[0].mxu0
      %2753 = vmatprep.mubr.bf16.mxu0 %v1676
      %2754 = vmatmul.mubr.bf16.gmra.mrb[0].mxu0 %v1541
      %v2755 = vpop.f32.mrb[0].mxu0
      %v2756 = vadd.f32 %v2451, %v2755
      %v2757 = vpop.f32.mrb[0].mxu0
      %v2758 = vpop.f32.mrb[0].mxu0
      %v2759 = vadd.f32 %v2454, %v2758
      %v2760 = vpop.f32.mrb[0].mxu0
      %2761 = vmatprep.mubr.bf16.mxu0 %v1688
      %2762 = vmatmul.mubr.bf16.gmra.mrb[0].mxu0 %v1542
      %v2763 = vpop.f32.mrb[0].mxu0
      %v2764 = vadd.f32 %v2459, %v2763
      %v2765 = vpop.f32.mrb[0].mxu0
      %v2766 = vpop.f32.mrb[0].mxu0
      %v2767 = vadd.f32 %v2462, %v2766
      %v2768 = vpop.f32.mrb[0].mxu0
      %2769 = vmatprep.mubr.bf16.mxu0 %v1700
      %2770 = vmatmul.mubr.bf16.gmra.mrb[0].mxu0 %v1543
      %v2771 = vpop.f32.mrb[0].mxu0
      %v2772 = vadd.f32 %v2467, %v2771
      %v2773 = vpop.f32.mrb[0].mxu0
      %v2774 = vpop.f32.mrb[0].mxu0
      %v2775 = vadd.f32 %v2470, %v2774
      %v2776 = vpop.f32.mrb[0].mxu0
      %2777 = vmatprep.mubr.bf16.mxu0 %v1712
      %2778 = vmatmul.mubr.bf16.gmra.mrb[0].mxu0 %v1544
      %v2779 = vpop.f32.mrb[0].mxu0
      %v2780 = vadd.f32 %v2475, %v2779
      %v2781 = vpop.f32.mrb[0].mxu0
      %v2782 = vpop.f32.mrb[0].mxu0
      %v2783 = vadd.f32 %v2478, %v2782
      %v2784 = vpop.f32.mrb[0].mxu0
      %2785 = vmatprep.mubr.bf16.mxu0 %v1724
      %2786 = vmatmul.mubr.bf16.gmra.mrb[0].mxu0 %v1545
      %v2787 = vpop.f32.mrb[0].mxu0
      %v2788 = vadd.f32 %v2483, %v2787
      %v2789 = vpop.f32.mrb[0].mxu0
      %v2790 = vpop.f32.mrb[0].mxu0
      %v2791 = vadd.f32 %v2486, %v2790
      %v2792 = vpop.f32.mrb[0].mxu0
      %2793 = vmatprep.mubr.bf16.mxu0 %v1736
      %2794 = vmatmul.mubr.bf16.gmra.mrb[0].mxu0 %v1546
      %v2795 = vpop.f32.mrb[0].mxu0
      %v2796 = vadd.f32 %v2491, %v2795
      %v2797 = vpop.f32.mrb[0].mxu0
      %v2798 = vpop.f32.mrb[0].mxu0
      %v2799 = vadd.f32 %v2494, %v2798
      %v2800 = vpop.f32.mrb[0].mxu0
      %2801 = vmatprep.mubr.bf16.mxu0 %v1748
      %2802 = vmatmul.mubr.bf16.gmra.mrb[0].mxu0 %v1547
      %v2803 = vpop.f32.mrb[0].mxu0
      %v2804 = vadd.f32 %v2499, %v2803
      %v2805 = vpop.f32.mrb[0].mxu0
      %v2806 = vpop.f32.mrb[0].mxu0
      %v2807 = vadd.f32 %v2502, %v2806
      %v2808 = vpop.f32.mrb[0].mxu0
      %2809 = vmatprep.mubr.bf16.mxu0 %v1760
      %2810 = vmatmul.mubr.bf16.gmra.mrb[0].mxu0 %v1548
      %v2811 = vpop.f32.mrb[0].mxu0
      %v2812 = vadd.f32 %v2507, %v2811
      %v2813 = vpop.f32.mrb[0].mxu0
      %v2814 = vpop.f32.mrb[0].mxu0
      %v2815 = vadd.f32 %v2510, %v2814
      %v2816 = vpop.f32.mrb[0].mxu0
      %2817 = vmatprep.mubr.bf16.mxu0 %v1772
      %2818 = vmatmul.mubr.bf16.gmra.mrb[0].mxu0 %v1549
      %v2819 = vpop.f32.mrb[0].mxu0
      %v2820 = vadd.f32 %v2515, %v2819
      %v2821 = vpop.f32.mrb[0].mxu0
      %v2822 = vpop.f32.mrb[0].mxu0
      %v2823 = vadd.f32 %v2518, %v2822
      %v2824 = vpop.f32.mrb[0].mxu0
      %2825 = vmatprep.mubr.bf16.mxu0 %v1784
      %2826 = vmatmul.mubr.bf16.gmra.mrb[0].mxu0 %v1550
      %v2827 = vpop.f32.mrb[0].mxu0
      %v2828 = vadd.f32 %v2523, %v2827
      %v2829 = vpop.f32.mrb[0].mxu0
      %v2830 = vpop.f32.mrb[0].mxu0
      %v2831 = vadd.f32 %v2526, %v2830
      %v2832 = vpop.f32.mrb[0].mxu0
      %2833 = vmatprep.mubr.bf16.mxu0 %v1796
      %2834 = vmatmul.mubr.bf16.gmra.mrb[0].mxu0 %v1551
      %v2835 = vpop.f32.mrb[0].mxu0
      %v2836 = vadd.f32 %v2531, %v2835
      %v2837 = vpop.f32.mrb[0].mxu0
      %v2838 = vpop.f32.mrb[0].mxu0
      %v2839 = vadd.f32 %v2534, %v2838
      %v2840 = vpop.f32.mrb[0].mxu0
      %2841 = vmatprep.mubr.bf16.mxu0 %v1808
      %2842 = vmatmul.mubr.bf16.gmra.mrb[0].mxu0 %v1552
      %v2843 = vpop.f32.mrb[0].mxu0
      %v2844 = vadd.f32 %v2539, %v2843
      %v2845 = vpop.f32.mrb[0].mxu0
      %v2846 = vpop.f32.mrb[0].mxu0
      %v2847 = vadd.f32 %v2542, %v2846
      %v2848 = vpop.f32.mrb[0].mxu0
      %2849 = vmatprep.mubr.bf16.mxu0 %v1820
      %2850 = vmatmul.mubr.bf16.gmra.mrb[0].mxu0 %v1553
      %v2851 = vpop.f32.mrb[0].mxu0
      %v2852 = vadd.f32 %v2547, %v2851
      %v2853 = vpop.f32.mrb[0].mxu0
      %v2854 = vpop.f32.mrb[0].mxu0
      %v2855 = vadd.f32 %v2550, %v2854
      %v2856 = vpop.f32.mrb[0].mxu0
      %2857 = vdwg.mxu0
      %2858 = vmatprep.subr.bf16.mxu0 0
      %2859 = vmatpush1.bf16.msra.mxu0 %v2665
      %2860 = vmatprep.subr.bf16.mxu0 0
      %2861 = vmatpush1.bf16.msra.mxu0 %v2666
      %2862 = vmatprep.subr.bf16.mxu0 0
      %2863 = vmatpush1.bf16.msra.mxu0 %v2667
      %2864 = vmatprep.subr.bf16.mxu0 0
      %2865 = vmatpush1.bf16.msra.mxu0 %v2668
      %2866 = vmatprep.subr.bf16.mxu0 0
      %2867 = vmatpush1.bf16.msra.mxu0 %v2669
      %2868 = vmatprep.subr.bf16.mxu0 0
      %2869 = vmatpush1.bf16.msra.mxu0 %v2670
      %2870 = vmatprep.subr.bf16.mxu0 0
      %2871 = vmatpush1.bf16.msra.mxu0 %v2671
      %2872 = vmatprep.subr.bf16.mxu0 0
      %2873 = vmatpush1.bf16.msra.mxu0 %v2672
      %2874 = vmatprep.subr.bf16.mxu0 0
      %2875 = vmatpush1.bf16.msra.mxu0 0
      %2876 = vmatprep.subr.bf16.mxu0 0
      %2877 = vmatpush1.bf16.msra.mxu0 0
      %2878 = vmatprep.subr.bf16.mxu0 0
      %2879 = vmatpush1.bf16.msra.mxu0 0
      %2880 = vmatprep.subr.bf16.mxu0 0
      %2881 = vmatpush1.bf16.msra.mxu0 0
      %2882 = vmatprep.subr.bf16.mxu0 0
      %2883 = vmatpush1.bf16.msra.mxu0 0
      %2884 = vmatprep.subr.bf16.mxu0 0
      %2885 = vmatpush1.bf16.msra.mxu0 0
      %2886 = vmatprep.subr.bf16.mxu0 0
      %2887 = vmatpush1.bf16.msra.mxu0 0
      %2888 = vmatprep.subr.bf16.mxu0 0
      %2889 = vmatpush1.bf16.msra.mxu0 0
      %2890 = vmatprep.mubr.bf16.mxu0 0
      %2891 = vmatmul.mubr.bf16.gmra.mrb[0].mxu0 %v1920
      %v2892 = vpop.f32.mrb[0].mxu0
      %v2893 = vadd.f32 %v2732, %v2892
      %v2894 = vpop.f32.mrb[0].mxu0
      %v2895 = vpop.f32.mrb[0].mxu0
      %v2896 = vadd.f32 %v2735, %v2895
      %v2897 = vpop.f32.mrb[0].mxu0
      %2898 = vmatprep.mubr.bf16.mxu0 0
      %2899 = vmatmul.mubr.bf16.gmra.mrb[0].mxu0 %v1923
      %v2900 = vpop.f32.mrb[0].mxu0
      %v2901 = vadd.f32 %v2740, %v2900
      %v2902 = vpop.f32.mrb[0].mxu0
      %v2903 = vpop.f32.mrb[0].mxu0
      %v2904 = vadd.f32 %v2743, %v2903
      %v2905 = vpop.f32.mrb[0].mxu0
      %2906 = vmatprep.mubr.bf16.mxu0 0
      %2907 = vmatmul.mubr.bf16.gmra.mrb[0].mxu0 %v1926
      %v2908 = vpop.f32.mrb[0].mxu0
      %v2909 = vadd.f32 %v2748, %v2908
      %v2910 = vpop.f32.mrb[0].mxu0
      %v2911 = vpop.f32.mrb[0].mxu0
      %v2912 = vadd.f32 %v2751, %v2911
      %v2913 = vpop.f32.mrb[0].mxu0
      %2914 = vmatprep.mubr.bf16.mxu0 0
      %2915 = vmatmul.mubr.bf16.gmra.mrb[0].mxu0 %v1929
      %v2916 = vpop.f32.mrb[0].mxu0
      %v2917 = vadd.f32 %v2756, %v2916
      %v2918 = vpop.f32.mrb[0].mxu0
      %v2919 = vpop.f32.mrb[0].mxu0
      %v2920 = vadd.f32 %v2759, %v2919
      %v2921 = vpop.f32.mrb[0].mxu0
      %2922 = vmatprep.mubr.bf16.mxu0 0
      %2923 = vmatmul.mubr.bf16.gmra.mrb[0].mxu0 %v1932
      %v2924 = vpop.f32.mrb[0].mxu0
      %v2925 = vadd.f32 %v2764, %v2924
      %v2926 = vpop.f32.mrb[0].mxu0
      %v2927 = vpop.f32.mrb[0].mxu0
      %v2928 = vadd.f32 %v2767, %v2927
      %v2929 = vpop.f32.mrb[0].mxu0
      %2930 = vmatprep.mubr.bf16.mxu0 0
      %2931 = vmatmul.mubr.bf16.gmra.mrb[0].mxu0 %v1935
      %v2932 = vpop.f32.mrb[0].mxu0
      %v2933 = vadd.f32 %v2772, %v2932
      %v2934 = vpop.f32.mrb[0].mxu0
      %v2935 = vpop.f32.mrb[0].mxu0
      %v2936 = vadd.f32 %v2775, %v2935
      %v2937 = vpop.f32.mrb[0].mxu0
      %2938 = vmatprep.mubr.bf16.mxu0 0
      %2939 = vmatmul.mubr.bf16.gmra.mrb[0].mxu0 %v1938
      %v2940 = vpop.f32.mrb[0].mxu0
      %v2941 = vadd.f32 %v2780, %v2940
      %v2942 = vpop.f32.mrb[0].mxu0
      %v2943 = vpop.f32.mrb[0].mxu0
      %v2944 = vadd.f32 %v2783, %v2943
      %v2945 = vpop.f32.mrb[0].mxu0
      %2946 = vmatprep.mubr.bf16.mxu0 0
      %2947 = vmatmul.mubr.bf16.gmra.mrb[0].mxu0 %v1941
      %v2948 = vpop.f32.mrb[0].mxu0
      %v2949 = vadd.f32 %v2788, %v2948
      %v2950 = vpop.f32.mrb[0].mxu0
      %v2951 = vpop.f32.mrb[0].mxu0
      %v2952 = vadd.f32 %v2791, %v2951
      %v2953 = vpop.f32.mrb[0].mxu0
      %2954 = vmatprep.mubr.bf16.mxu0 0
      %2955 = vmatmul.mubr.bf16.gmra.mrb[0].mxu0 %v1944
      %v2956 = vpop.f32.mrb[0].mxu0
      %v2957 = vadd.f32 %v2796, %v2956
      %v2958 = vpop.f32.mrb[0].mxu0
      %v2959 = vpop.f32.mrb[0].mxu0
      %v2960 = vadd.f32 %v2799, %v2959
      %v2961 = vpop.f32.mrb[0].mxu0
      %2962 = vmatprep.mubr.bf16.mxu0 0
      %2963 = vmatmul.mubr.bf16.gmra.mrb[0].mxu0 %v1947
      %v2964 = vpop.f32.mrb[0].mxu0
      %v2965 = vadd.f32 %v2804, %v2964
      %v2966 = vpop.f32.mrb[0].mxu0
      %v2967 = vpop.f32.mrb[0].mxu0
      %v2968 = vadd.f32 %v2807, %v2967
      %v2969 = vpop.f32.mrb[0].mxu0
      %2970 = vmatprep.mubr.bf16.mxu0 0
      %2971 = vmatmul.mubr.bf16.gmra.mrb[0].mxu0 %v1950
      %v2972 = vpop.f32.mrb[0].mxu0
      %v2973 = vadd.f32 %v2812, %v2972
      %v2974 = vpop.f32.mrb[0].mxu0
      %v2975 = vpop.f32.mrb[0].mxu0
      %v2976 = vadd.f32 %v2815, %v2975
      %v2977 = vpop.f32.mrb[0].mxu0
      %2978 = vmatprep.mubr.bf16.mxu0 0
      %2979 = vmatmul.mubr.bf16.gmra.mrb[0].mxu0 %v1953
      %v2980 = vpop.f32.mrb[0].mxu0
      %v2981 = vadd.f32 %v2820, %v2980
      %v2982 = vpop.f32.mrb[0].mxu0
      %v2983 = vpop.f32.mrb[0].mxu0
      %v2984 = vadd.f32 %v2823, %v2983
      %v2985 = vpop.f32.mrb[0].mxu0
      %2986 = vmatprep.mubr.bf16.mxu0 0
      %2987 = vmatmul.mubr.bf16.gmra.mrb[0].mxu0 %v1956
      %v2988 = vpop.f32.mrb[0].mxu0
      %v2989 = vadd.f32 %v2828, %v2988
      %v2990 = vpop.f32.mrb[0].mxu0
      %v2991 = vpop.f32.mrb[0].mxu0
      %v2992 = vadd.f32 %v2831, %v2991
      %v2993 = vpop.f32.mrb[0].mxu0
      %2994 = vmatprep.mubr.bf16.mxu0 0
      %2995 = vmatmul.mubr.bf16.gmra.mrb[0].mxu0 %v1959
      %v2996 = vpop.f32.mrb[0].mxu0
      %v2997 = vadd.f32 %v2836, %v2996
      %v2998 = vpop.f32.mrb[0].mxu0
      %v2999 = vpop.f32.mrb[0].mxu0
      %v3000 = vadd.f32 %v2839, %v2999
      %v3001 = vpop.f32.mrb[0].mxu0
      %3002 = vmatprep.mubr.bf16.mxu0 0
      %3003 = vmatmul.mubr.bf16.gmra.mrb[0].mxu0 %v1962
      %v3004 = vpop.f32.mrb[0].mxu0
      %v3005 = vadd.f32 %v2844, %v3004
      %v3006 = vpop.f32.mrb[0].mxu0
      %v3007 = vpop.f32.mrb[0].mxu0
      %v3008 = vadd.f32 %v2847, %v3007
      %v3009 = vpop.f32.mrb[0].mxu0
      %3010 = vmatprep.mubr.bf16.mxu0 0
      %3011 = vmatmul.mubr.bf16.gmra.mrb[0].mxu0 %v1965
      %v3012 = vpop.f32.mrb[0].mxu0
      %v3013 = vadd.f32 %v2852, %v3012
      %v3014 = vpop.f32.mrb[0].mxu0
      %v3015 = vpop.f32.mrb[0].mxu0
      %v3016 = vadd.f32 %v2855, %v3015
      %v3017 = vpop.f32.mrb[0].mxu0
      %3018 = vdwg.mxu0
      %s3019 = scalar_lea.vmem %s3, 384
      %v3020 = vld [vmem:[%s3019] sm:$0xf]
      %v3021 = vld [vmem:[%s3019 + $0x4] sm:$0xf]
      %v3022 = vld [vmem:[%s3019 + $0x8] sm:$0xf]
      %v3023 = vld [vmem:[%s3019 + $0xc] sm:$0xf]
      %v3024 = vld [vmem:[%s3019 + $0x10] sm:$0xf]
      %v3025 = vld [vmem:[%s3019 + $0x14] sm:$0xf]
      %v3026 = vld [vmem:[%s3019 + $0x18] sm:$0xf]
      %v3027 = vld [vmem:[%s3019 + $0x1c] sm:$0xf]
      %v3028 = vld [vmem:[%s3019 + $0x20] sm:$0xf]
      %v3029 = vld [vmem:[%s3019 + $0x24] sm:$0xf]
      %v3030 = vld [vmem:[%s3019 + $0x28] sm:$0xf]
      %v3031 = vld [vmem:[%s3019 + $0x2c] sm:$0xf]
      %v3032 = vld [vmem:[%s3019 + $0x30] sm:$0xf]
      %v3033 = vld [vmem:[%s3019 + $0x34] sm:$0xf]
      %v3034 = vld [vmem:[%s3019 + $0x38] sm:$0xf]
      %v3035 = vld [vmem:[%s3019 + $0x3c] sm:$0xf]
      %v3036 = vld [vmem:[%s3019 + $0x40] sm:$0xf]
      %v3037 = vld [vmem:[%s3019 + $0x44] sm:$0xf]
      %v3038 = vld [vmem:[%s3019 + $0x48] sm:$0xf]
      %v3039 = vld [vmem:[%s3019 + $0x4c] sm:$0xf]
      %v3040 = vld [vmem:[%s3019 + $0x50] sm:$0xf]
      %v3041 = vld [vmem:[%s3019 + $0x54] sm:$0xf]
      %v3042 = vld [vmem:[%s3019 + $0x58] sm:$0xf]
      %v3043 = vld [vmem:[%s3019 + $0x5c] sm:$0xf]
      %v3044 = vld [vmem:[%s3019 + $0x60] sm:$0xf]
      %v3045 = vld [vmem:[%s3019 + $0x64] sm:$0xf]
      %v3046 = vld [vmem:[%s3019 + $0x68] sm:$0xf]
      %v3047 = vld [vmem:[%s3019 + $0x6c] sm:$0xf]
      %v3048 = vld [vmem:[%s3019 + $0x70] sm:$0xf]
      %v3049 = vld [vmem:[%s3019 + $0x74] sm:$0xf]
      %v3050 = vld [vmem:[%s3019 + $0x78] sm:$0xf]
      %v3051 = vld [vmem:[%s3019 + $0x7c] sm:$0xf]
      %v3052 = vld [vmem:[%s3019 + $0x80] sm:$0xf]
      %v3053 = vld [vmem:[%s3019 + $0x84] sm:$0xf]
      %v3054 = vld [vmem:[%s3019 + $0x88] sm:$0xf]
      %v3055 = vld [vmem:[%s3019 + $0x8c] sm:$0xf]
      %v3056 = vld [vmem:[%s3019 + $0x90] sm:$0xf]
      %v3057 = vld [vmem:[%s3019 + $0x94] sm:$0xf]
      %v3058 = vld [vmem:[%s3019 + $0x98] sm:$0xf]
      %v3059 = vld [vmem:[%s3019 + $0x9c] sm:$0xf]
      %v3060 = vld [vmem:[%s3019 + $0xa0] sm:$0xf]
      %v3061 = vld [vmem:[%s3019 + $0xa4] sm:$0xf]
      %v3062 = vld [vmem:[%s3019 + $0xa8] sm:$0xf]
      %v3063 = vld [vmem:[%s3019 + $0xac] sm:$0xf]
      %v3064 = vld [vmem:[%s3019 + $0xb0] sm:$0xf]
      %v3065 = vld [vmem:[%s3019 + $0xb4] sm:$0xf]
      %v3066 = vld [vmem:[%s3019 + $0xb8] sm:$0xf]
      %v3067 = vld [vmem:[%s3019 + $0xbc] sm:$0xf]
      %v3116 = vunpack.c.l.b16 %v3020
      %v3117 = vunpack.c.l.b16 %v3021
      %v3118 = vunpack.c.l.b16 %v3022
      %v3119 = vunpack.c.l.b16 %v3023
      %v3120 = vunpack.c.l.b16 %v3024
      %v3121 = vunpack.c.l.b16 %v3025
      %v3122 = vunpack.c.l.b16 %v3026
      %v3123 = vunpack.c.l.b16 %v3027
      %v3124 = vunpack.c.l.b16 %v3028
      %v3125 = vunpack.c.l.b16 %v3029
      %v3126 = vunpack.c.l.b16 %v3030
      %v3127 = vunpack.c.l.b16 %v3031
      %v3128 = vunpack.c.l.b16 %v3032
      %v3129 = vunpack.c.l.b16 %v3033
      %v3130 = vunpack.c.l.b16 %v3034
      %v3131 = vunpack.c.l.b16 %v3035
      %v3132 = vunpack.c.l.b16 %v3036
      %v3133 = vunpack.c.l.b16 %v3037
      %v3134 = vunpack.c.l.b16 %v3038
      %v3135 = vunpack.c.l.b16 %v3039
      %v3136 = vunpack.c.l.b16 %v3040
      %v3137 = vunpack.c.l.b16 %v3041
      %v3138 = vunpack.c.l.b16 %v3042
      %v3139 = vunpack.c.l.b16 %v3043
      %v3140 = vunpack.c.l.b16 %v3044
      %v3141 = vunpack.c.l.b16 %v3045
      %v3142 = vunpack.c.l.b16 %v3046
      %v3143 = vunpack.c.l.b16 %v3047
      %v3144 = vunpack.c.l.b16 %v3048
      %v3145 = vunpack.c.l.b16 %v3049
      %v3146 = vunpack.c.l.b16 %v3050
      %v3147 = vunpack.c.l.b16 %v3051
      %v3148 = vunpack.c.l.b16 %v3052
      %v3149 = vunpack.c.l.b16 %v3053
      %v3150 = vunpack.c.l.b16 %v3054
      %v3151 = vunpack.c.l.b16 %v3055
      %v3152 = vunpack.c.l.b16 %v3056
      %v3153 = vunpack.c.l.b16 %v3057
      %v3154 = vunpack.c.l.b16 %v3058
      %v3155 = vunpack.c.l.b16 %v3059
      %v3156 = vunpack.c.l.b16 %v3060
      %v3157 = vunpack.c.l.b16 %v3061
      %v3158 = vunpack.c.l.b16 %v3062
      %v3159 = vunpack.c.l.b16 %v3063
      %v3160 = vunpack.c.l.b16 %v3064
      %v3161 = vunpack.c.l.b16 %v3065
      %v3162 = vunpack.c.l.b16 %v3066
      %v3163 = vunpack.c.l.b16 %v3067
      %v3164 = vpack.c.b16 %v3117, %v3116
      %v3165 = vpack.c.b16 %v3119, %v3118
      %v3166 = vpack.c.b16 %v3121, %v3120
      %v3167 = vpack.c.b16 %v3123, %v3122
      %v3168 = vpack.c.b16 %v3125, %v3124
      %v3169 = vpack.c.b16 %v3127, %v3126
      %v3170 = vpack.c.b16 %v3129, %v3128
      %v3171 = vpack.c.b16 %v3131, %v3130
      %v3172 = vpack.c.b16 %v3133, %v3132
      %v3173 = vpack.c.b16 %v3135, %v3134
      %v3174 = vpack.c.b16 %v3137, %v3136
      %v3175 = vpack.c.b16 %v3139, %v3138
      %v3176 = vpack.c.b16 %v3141, %v3140
      %v3177 = vpack.c.b16 %v3143, %v3142
      %v3178 = vpack.c.b16 %v3145, %v3144
      %v3179 = vpack.c.b16 %v3147, %v3146
      %v3180 = vpack.c.b16 %v3149, %v3148
      %v3181 = vpack.c.b16 %v3151, %v3150
      %v3182 = vpack.c.b16 %v3153, %v3152
      %v3183 = vpack.c.b16 %v3155, %v3154
      %v3184 = vpack.c.b16 %v3157, %v3156
      %v3185 = vpack.c.b16 %v3159, %v3158
      %v3186 = vpack.c.b16 %v3161, %v3160
      %v3187 = vpack.c.b16 %v3163, %v3162
      %3212 = vmatprep.subr.bf16.mxu0 0
      %3213 = vmatpush1.bf16.msra.mxu0 %v3164
      %3214 = vmatprep.subr.bf16.mxu0 0
      %3215 = vmatpush1.bf16.msra.mxu0 %v3165
      %3216 = vmatprep.subr.bf16.mxu0 0
      %3217 = vmatpush1.bf16.msra.mxu0 %v3166
      %3218 = vmatprep.subr.bf16.mxu0 0
      %3219 = vmatpush1.bf16.msra.mxu0 %v3167
      %3220 = vmatprep.subr.bf16.mxu0 0
      %3221 = vmatpush1.bf16.msra.mxu0 %v3168
      %3222 = vmatprep.subr.bf16.mxu0 0
      %3223 = vmatpush1.bf16.msra.mxu0 %v3169
      %3224 = vmatprep.subr.bf16.mxu0 0
      %3225 = vmatpush1.bf16.msra.mxu0 %v3170
      %3226 = vmatprep.subr.bf16.mxu0 0
      %3227 = vmatpush1.bf16.msra.mxu0 %v3171
      %3228 = vmatprep.subr.bf16.mxu0 0
      %3229 = vmatpush1.bf16.msra.mxu0 %v3172
      %3230 = vmatprep.subr.bf16.mxu0 0
      %3231 = vmatpush1.bf16.msra.mxu0 %v3173
      %3232 = vmatprep.subr.bf16.mxu0 0
      %3233 = vmatpush1.bf16.msra.mxu0 %v3174
      %3234 = vmatprep.subr.bf16.mxu0 0
      %3235 = vmatpush1.bf16.msra.mxu0 %v3175
      %3236 = vmatprep.subr.bf16.mxu0 0
      %3237 = vmatpush1.bf16.msra.mxu0 %v3176
      %3238 = vmatprep.subr.bf16.mxu0 0
      %3239 = vmatpush1.bf16.msra.mxu0 %v3177
      %3240 = vmatprep.subr.bf16.mxu0 0
      %3241 = vmatpush1.bf16.msra.mxu0 %v3178
      %3242 = vmatprep.subr.bf16.mxu0 0
      %3243 = vmatpush1.bf16.msra.mxu0 %v3179
      %3244 = vmatprep.mubr.bf16.mxu0 %v1664
      %3245 = vmatmul.mubr.bf16.gmra.mrb[0].mxu0 %v1540
      %v3246 = vpop.f32.mrb[0].mxu0
      %v3247 = vadd.f32 0.0, %v3246
      %v3248 = vpop.f32.mrb[0].mxu0
      %v3249 = vpop.f32.mrb[0].mxu0
      %v3250 = vadd.f32 0.0, %v3249
      %v3251 = vpop.f32.mrb[0].mxu0
      %3252 = vmatprep.mubr.bf16.mxu0 %v1676
      %3253 = vmatmul.mubr.bf16.gmra.mrb[0].mxu0 %v1541
      %v3254 = vpop.f32.mrb[0].mxu0
      %v3255 = vadd.f32 0.0, %v3254
      %v3256 = vpop.f32.mrb[0].mxu0
      %v3257 = vpop.f32.mrb[0].mxu0
      %v3258 = vadd.f32 0.0, %v3257
      %v3259 = vpop.f32.mrb[0].mxu0
      %3260 = vmatprep.mubr.bf16.mxu0 %v1688
      %3261 = vmatmul.mubr.bf16.gmra.mrb[0].mxu0 %v1542
      %v3262 = vpop.f32.mrb[0].mxu0
      %v3263 = vadd.f32 0.0, %v3262
      %v3264 = vpop.f32.mrb[0].mxu0
      %v3265 = vpop.f32.mrb[0].mxu0
      %v3266 = vadd.f32 0.0, %v3265
      %v3267 = vpop.f32.mrb[0].mxu0
      %3268 = vmatprep.mubr.bf16.mxu0 %v1700
      %3269 = vmatmul.mubr.bf16.gmra.mrb[0].mxu0 %v1543
      %v3270 = vpop.f32.mrb[0].mxu0
      %v3271 = vadd.f32 0.0, %v3270
      %v3272 = vpop.f32.mrb[0].mxu0
      %v3273 = vpop.f32.mrb[0].mxu0
      %v3274 = vadd.f32 0.0, %v3273
      %v3275 = vpop.f32.mrb[0].mxu0
      %3276 = vmatprep.mubr.bf16.mxu0 %v1712
      %3277 = vmatmul.mubr.bf16.gmra.mrb[0].mxu0 %v1544
      %v3278 = vpop.f32.mrb[0].mxu0
      %v3279 = vadd.f32 0.0, %v3278
      %v3280 = vpop.f32.mrb[0].mxu0
      %v3281 = vpop.f32.mrb[0].mxu0
      %v3282 = vadd.f32 0.0, %v3281
      %v3283 = vpop.f32.mrb[0].mxu0
      %3284 = vmatprep.mubr.bf16.mxu0 %v1724
      %3285 = vmatmul.mubr.bf16.gmra.mrb[0].mxu0 %v1545
      %v3286 = vpop.f32.mrb[0].mxu0
      %v3287 = vadd.f32 0.0, %v3286
      %v3288 = vpop.f32.mrb[0].mxu0
      %v3289 = vpop.f32.mrb[0].mxu0
      %v3290 = vadd.f32 0.0, %v3289
      %v3291 = vpop.f32.mrb[0].mxu0
      %3292 = vmatprep.mubr.bf16.mxu0 %v1736
      %3293 = vmatmul.mubr.bf16.gmra.mrb[0].mxu0 %v1546
      %v3294 = vpop.f32.mrb[0].mxu0
      %v3295 = vadd.f32 0.0, %v3294
      %v3296 = vpop.f32.mrb[0].mxu0
      %v3297 = vpop.f32.mrb[0].mxu0
      %v3298 = vadd.f32 0.0, %v3297
      %v3299 = vpop.f32.mrb[0].mxu0
      %3300 = vmatprep.mubr.bf16.mxu0 %v1748
      %3301 = vmatmul.mubr.bf16.gmra.mrb[0].mxu0 %v1547
      %v3302 = vpop.f32.mrb[0].mxu0
      %v3303 = vadd.f32 0.0, %v3302
      %v3304 = vpop.f32.mrb[0].mxu0
      %v3305 = vpop.f32.mrb[0].mxu0
      %v3306 = vadd.f32 0.0, %v3305
      %v3307 = vpop.f32.mrb[0].mxu0
      %3308 = vmatprep.mubr.bf16.mxu0 %v1760
      %3309 = vmatmul.mubr.bf16.gmra.mrb[0].mxu0 %v1548
      %v3310 = vpop.f32.mrb[0].mxu0
      %v3311 = vadd.f32 0.0, %v3310
      %v3312 = vpop.f32.mrb[0].mxu0
      %v3313 = vpop.f32.mrb[0].mxu0
      %v3314 = vadd.f32 0.0, %v3313
      %v3315 = vpop.f32.mrb[0].mxu0
      %3316 = vmatprep.mubr.bf16.mxu0 %v1772
      %3317 = vmatmul.mubr.bf16.gmra.mrb[0].mxu0 %v1549
      %v3318 = vpop.f32.mrb[0].mxu0
      %v3319 = vadd.f32 0.0, %v3318
      %v3320 = vpop.f32.mrb[0].mxu0
      %v3321 = vpop.f32.mrb[0].mxu0
      %v3322 = vadd.f32 0.0, %v3321
      %v3323 = vpop.f32.mrb[0].mxu0
      %3324 = vmatprep.mubr.bf16.mxu0 %v1784
      %3325 = vmatmul.mubr.bf16.gmra.mrb[0].mxu0 %v1550
      %v3326 = vpop.f32.mrb[0].mxu0
      %v3327 = vadd.f32 0.0, %v3326
      %v3328 = vpop.f32.mrb[0].mxu0
      %v3329 = vpop.f32.mrb[0].mxu0
      %v3330 = vadd.f32 0.0, %v3329
      %v3331 = vpop.f32.mrb[0].mxu0
      %3332 = vmatprep.mubr.bf16.mxu0 %v1796
      %3333 = vmatmul.mubr.bf16.gmra.mrb[0].mxu0 %v1551
      %v3334 = vpop.f32.mrb[0].mxu0
      %v3335 = vadd.f32 0.0, %v3334
      %v3336 = vpop.f32.mrb[0].mxu0
      %v3337 = vpop.f32.mrb[0].mxu0
      %v3338 = vadd.f32 0.0, %v3337
      %v3339 = vpop.f32.mrb[0].mxu0
      %3340 = vmatprep.mubr.bf16.mxu0 %v1808
      %3341 = vmatmul.mubr.bf16.gmra.mrb[0].mxu0 %v1552
      %v3342 = vpop.f32.mrb[0].mxu0
      %v3343 = vadd.f32 0.0, %v3342
      %v3344 = vpop.f32.mrb[0].mxu0
      %v3345 = vpop.f32.mrb[0].mxu0
      %v3346 = vadd.f32 0.0, %v3345
      %v3347 = vpop.f32.mrb[0].mxu0
      %3348 = vmatprep.mubr.bf16.mxu0 %v1820
      %3349 = vmatmul.mubr.bf16.gmra.mrb[0].mxu0 %v1553
      %v3350 = vpop.f32.mrb[0].mxu0
      %v3351 = vadd.f32 0.0, %v3350
      %v3352 = vpop.f32.mrb[0].mxu0
      %v3353 = vpop.f32.mrb[0].mxu0
      %v3354 = vadd.f32 0.0, %v3353
      %v3355 = vpop.f32.mrb[0].mxu0
      %3356 = vmatprep.mubr.bf16.mxu0 %v1832
      %3357 = vmatmul.mubr.bf16.gmra.mrb[0].mxu0 %v1554
      %v3358 = vpop.f32.mrb[0].mxu0
      %v3359 = vadd.f32 0.0, %v3358
      %v3360 = vpop.f32.mrb[0].mxu0
      %v3361 = vpop.f32.mrb[0].mxu0
      %v3362 = vadd.f32 0.0, %v3361
      %v3363 = vpop.f32.mrb[0].mxu0
      %3364 = vmatprep.mubr.bf16.mxu0 %v1844
      %3365 = vmatmul.mubr.bf16.gmra.mrb[0].mxu0 %v1555
      %v3366 = vpop.f32.mrb[0].mxu0
      %v3367 = vadd.f32 0.0, %v3366
      %v3368 = vpop.f32.mrb[0].mxu0
      %v3369 = vpop.f32.mrb[0].mxu0
      %v3370 = vadd.f32 0.0, %v3369
      %v3371 = vpop.f32.mrb[0].mxu0
      %3372 = vdwg.mxu0
      %3373 = vmatprep.subr.bf16.mxu0 0
      %3374 = vmatpush1.bf16.msra.mxu0 %v3180
      %3375 = vmatprep.subr.bf16.mxu0 0
      %3376 = vmatpush1.bf16.msra.mxu0 %v3181
      %3377 = vmatprep.subr.bf16.mxu0 0
      %3378 = vmatpush1.bf16.msra.mxu0 %v3182
      %3379 = vmatprep.subr.bf16.mxu0 0
      %3380 = vmatpush1.bf16.msra.mxu0 %v3183
      %3381 = vmatprep.subr.bf16.mxu0 0
      %3382 = vmatpush1.bf16.msra.mxu0 %v3184
      %3383 = vmatprep.subr.bf16.mxu0 0
      %3384 = vmatpush1.bf16.msra.mxu0 %v3185
      %3385 = vmatprep.subr.bf16.mxu0 0
      %3386 = vmatpush1.bf16.msra.mxu0 %v3186
      %3387 = vmatprep.subr.bf16.mxu0 0
      %3388 = vmatpush1.bf16.msra.mxu0 %v3187
      %3389 = vmatprep.subr.bf16.mxu0 0
      %3390 = vmatpush1.bf16.msra.mxu0 0
      %3391 = vmatprep.subr.bf16.mxu0 0
      %3392 = vmatpush1.bf16.msra.mxu0 0
      %3393 = vmatprep.subr.bf16.mxu0 0
      %3394 = vmatpush1.bf16.msra.mxu0 0
      %3395 = vmatprep.subr.bf16.mxu0 0
      %3396 = vmatpush1.bf16.msra.mxu0 0
      %3397 = vmatprep.subr.bf16.mxu0 0
      %3398 = vmatpush1.bf16.msra.mxu0 0
      %3399 = vmatprep.subr.bf16.mxu0 0
      %3400 = vmatpush1.bf16.msra.mxu0 0
      %3401 = vmatprep.subr.bf16.mxu0 0
      %3402 = vmatpush1.bf16.msra.mxu0 0
      %3403 = vmatprep.subr.bf16.mxu0 0
      %3404 = vmatpush1.bf16.msra.mxu0 0
      %3405 = vmatprep.mubr.bf16.mxu0 0
      %3406 = vmatmul.mubr.bf16.gmra.mrb[0].mxu0 %v1926
      %v3407 = vpop.f32.mrb[0].mxu0
      %v3408 = vadd.f32 %v3247, %v3407
      %v3409 = vpop.f32.mrb[0].mxu0
      %v3410 = vpop.f32.mrb[0].mxu0
      %v3411 = vadd.f32 %v3250, %v3410
      %v3412 = vpop.f32.mrb[0].mxu0
      %3413 = vmatprep.mubr.bf16.mxu0 0
      %3414 = vmatmul.mubr.bf16.gmra.mrb[0].mxu0 %v1929
      %v3415 = vpop.f32.mrb[0].mxu0
      %v3416 = vadd.f32 %v3255, %v3415
      %v3417 = vpop.f32.mrb[0].mxu0
      %v3418 = vpop.f32.mrb[0].mxu0
      %v3419 = vadd.f32 %v3258, %v3418
      %v3420 = vpop.f32.mrb[0].mxu0
      %3421 = vmatprep.mubr.bf16.mxu0 0
      %3422 = vmatmul.mubr.bf16.gmra.mrb[0].mxu0 %v1932
      %v3423 = vpop.f32.mrb[0].mxu0
      %v3424 = vadd.f32 %v3263, %v3423
      %v3425 = vpop.f32.mrb[0].mxu0
      %v3426 = vpop.f32.mrb[0].mxu0
      %v3427 = vadd.f32 %v3266, %v3426
      %v3428 = vpop.f32.mrb[0].mxu0
      %3429 = vmatprep.mubr.bf16.mxu0 0
      %3430 = vmatmul.mubr.bf16.gmra.mrb[0].mxu0 %v1935
      %v3431 = vpop.f32.mrb[0].mxu0
      %v3432 = vadd.f32 %v3271, %v3431
      %v3433 = vpop.f32.mrb[0].mxu0
      %v3434 = vpop.f32.mrb[0].mxu0
      %v3435 = vadd.f32 %v3274, %v3434
      %v3436 = vpop.f32.mrb[0].mxu0
      %3437 = vmatprep.mubr.bf16.mxu0 0
      %3438 = vmatmul.mubr.bf16.gmra.mrb[0].mxu0 %v1938
      %v3439 = vpop.f32.mrb[0].mxu0
      %v3440 = vadd.f32 %v3279, %v3439
      %v3441 = vpop.f32.mrb[0].mxu0
      %v3442 = vpop.f32.mrb[0].mxu0
      %v3443 = vadd.f32 %v3282, %v3442
      %v3444 = vpop.f32.mrb[0].mxu0
      %3445 = vmatprep.mubr.bf16.mxu0 0
      %3446 = vmatmul.mubr.bf16.gmra.mrb[0].mxu0 %v1941
      %v3447 = vpop.f32.mrb[0].mxu0
      %v3448 = vadd.f32 %v3287, %v3447
      %v3449 = vpop.f32.mrb[0].mxu0
      %v3450 = vpop.f32.mrb[0].mxu0
      %v3451 = vadd.f32 %v3290, %v3450
      %v3452 = vpop.f32.mrb[0].mxu0
      %3453 = vmatprep.mubr.bf16.mxu0 0
      %3454 = vmatmul.mubr.bf16.gmra.mrb[0].mxu0 %v1944
      %v3455 = vpop.f32.mrb[0].mxu0
      %v3456 = vadd.f32 %v3295, %v3455
      %v3457 = vpop.f32.mrb[0].mxu0
      %v3458 = vpop.f32.mrb[0].mxu0
      %v3459 = vadd.f32 %v3298, %v3458
      %v3460 = vpop.f32.mrb[0].mxu0
      %3461 = vmatprep.mubr.bf16.mxu0 0
      %3462 = vmatmul.mubr.bf16.gmra.mrb[0].mxu0 %v1947
      %v3463 = vpop.f32.mrb[0].mxu0
      %v3464 = vadd.f32 %v3303, %v3463
      %v3465 = vpop.f32.mrb[0].mxu0
      %v3466 = vpop.f32.mrb[0].mxu0
      %v3467 = vadd.f32 %v3306, %v3466
      %v3468 = vpop.f32.mrb[0].mxu0
      %3469 = vmatprep.mubr.bf16.mxu0 0
      %3470 = vmatmul.mubr.bf16.gmra.mrb[0].mxu0 %v1950
      %v3471 = vpop.f32.mrb[0].mxu0
      %v3472 = vadd.f32 %v3311, %v3471
      %v3473 = vpop.f32.mrb[0].mxu0
      %v3474 = vpop.f32.mrb[0].mxu0
      %v3475 = vadd.f32 %v3314, %v3474
      %v3476 = vpop.f32.mrb[0].mxu0
      %3477 = vmatprep.mubr.bf16.mxu0 0
      %3478 = vmatmul.mubr.bf16.gmra.mrb[0].mxu0 %v1953
      %v3479 = vpop.f32.mrb[0].mxu0
      %v3480 = vadd.f32 %v3319, %v3479
      %v3481 = vpop.f32.mrb[0].mxu0
      %v3482 = vpop.f32.mrb[0].mxu0
      %v3483 = vadd.f32 %v3322, %v3482
      %v3484 = vpop.f32.mrb[0].mxu0
      %3485 = vmatprep.mubr.bf16.mxu0 0
      %3486 = vmatmul.mubr.bf16.gmra.mrb[0].mxu0 %v1956
      %v3487 = vpop.f32.mrb[0].mxu0
      %v3488 = vadd.f32 %v3327, %v3487
      %v3489 = vpop.f32.mrb[0].mxu0
      %v3490 = vpop.f32.mrb[0].mxu0
      %v3491 = vadd.f32 %v3330, %v3490
      %v3492 = vpop.f32.mrb[0].mxu0
      %3493 = vmatprep.mubr.bf16.mxu0 0
      %3494 = vmatmul.mubr.bf16.gmra.mrb[0].mxu0 %v1959
      %v3495 = vpop.f32.mrb[0].mxu0
      %v3496 = vadd.f32 %v3335, %v3495
      %v3497 = vpop.f32.mrb[0].mxu0
      %v3498 = vpop.f32.mrb[0].mxu0
      %v3499 = vadd.f32 %v3338, %v3498
      %v3500 = vpop.f32.mrb[0].mxu0
      %3501 = vmatprep.mubr.bf16.mxu0 0
      %3502 = vmatmul.mubr.bf16.gmra.mrb[0].mxu0 %v1962
      %v3503 = vpop.f32.mrb[0].mxu0
      %v3504 = vadd.f32 %v3343, %v3503
      %v3505 = vpop.f32.mrb[0].mxu0
      %v3506 = vpop.f32.mrb[0].mxu0
      %v3507 = vadd.f32 %v3346, %v3506
      %v3508 = vpop.f32.mrb[0].mxu0
      %3509 = vmatprep.mubr.bf16.mxu0 0
      %3510 = vmatmul.mubr.bf16.gmra.mrb[0].mxu0 %v1965
      %v3511 = vpop.f32.mrb[0].mxu0
      %v3512 = vadd.f32 %v3351, %v3511
      %v3513 = vpop.f32.mrb[0].mxu0
      %v3514 = vpop.f32.mrb[0].mxu0
      %v3515 = vadd.f32 %v3354, %v3514
      %v3516 = vpop.f32.mrb[0].mxu0
      %3517 = vmatprep.mubr.bf16.mxu0 0
      %3518 = vmatmul.mubr.bf16.gmra.mrb[0].mxu0 %v1968
      %v3519 = vpop.f32.mrb[0].mxu0
      %v3520 = vadd.f32 %v3359, %v3519
      %v3521 = vpop.f32.mrb[0].mxu0
      %v3522 = vpop.f32.mrb[0].mxu0
      %v3523 = vadd.f32 %v3362, %v3522
      %v3524 = vpop.f32.mrb[0].mxu0
      %3525 = vmatprep.mubr.bf16.mxu0 0
      %3526 = vmatmul.mubr.bf16.gmra.mrb[0].mxu0 %v1971
      %v3527 = vpop.f32.mrb[0].mxu0
      %v3528 = vadd.f32 %v3367, %v3527
      %v3529 = vpop.f32.mrb[0].mxu0
      %v3530 = vpop.f32.mrb[0].mxu0
      %v3531 = vadd.f32 %v3370, %v3530
      %v3532 = vpop.f32.mrb[0].mxu0
      %3533 = vdwg.mxu0
      %v3534 = vadd.f32 %v2893, %v3408
      %v3535 = vadd.f32 %v2896, %v3411
      %v3536 = vadd.f32 %v2901, %v3416
      %v3537 = vadd.f32 %v2904, %v3419
      %v3538 = vadd.f32 %v2909, %v3424
      %v3539 = vadd.f32 %v2912, %v3427
      %v3540 = vadd.f32 %v2917, %v3432
      %v3541 = vadd.f32 %v2920, %v3435
      %v3542 = vadd.f32 %v2925, %v3440
      %v3543 = vadd.f32 %v2928, %v3443
      %v3544 = vadd.f32 %v2933, %v3448
      %v3545 = vadd.f32 %v2936, %v3451
      %v3546 = vadd.f32 %v2941, %v3456
      %v3547 = vadd.f32 %v2944, %v3459
      %v3548 = vadd.f32 %v2949, %v3464
      %v3549 = vadd.f32 %v2952, %v3467
      %v3550 = vadd.f32 %v2957, %v3472
      %v3551 = vadd.f32 %v2960, %v3475
      %v3552 = vadd.f32 %v2965, %v3480
      %v3553 = vadd.f32 %v2968, %v3483
      %v3554 = vadd.f32 %v2973, %v3488
      %v3555 = vadd.f32 %v2976, %v3491
      %v3556 = vadd.f32 %v2981, %v3496
      %v3557 = vadd.f32 %v2984, %v3499
      %v3558 = vadd.f32 %v2989, %v3504
      %v3559 = vadd.f32 %v2992, %v3507
      %v3560 = vadd.f32 %v2997, %v3512
      %v3561 = vadd.f32 %v3000, %v3515
      %v3562 = vadd.f32 %v3005, %v3520
      %v3563 = vadd.f32 %v3008, %v3523
      %v3564 = vadd.f32 %v3013, %v3528
      %v3565 = vadd.f32 %v3016, %v3531
      %v3566 = vld [vmem:[%s4] sm:$0x1]
      %v3568 = vlaneseq
      %v3569 = vshrl.u32 %v3568, 7
      %v3570 = vsub.s32 0, %v3569
      %v3571 = vrot.slane %v3566, %v3570
      %v3573 = vadd.f32 %v3534, %v3571
      %v3574 = vadd.f32 %v3535, %v3571
      %v3575 = vadd.f32 %v3536, %v3571
      %v3576 = vadd.f32 %v3537, %v3571
      %v3577 = vadd.f32 %v3538, %v3571
      %v3578 = vadd.f32 %v3539, %v3571
      %v3579 = vadd.f32 %v3540, %v3571
      %v3580 = vadd.f32 %v3541, %v3571
      %v3581 = vadd.f32 %v3542, %v3571
      %v3582 = vadd.f32 %v3543, %v3571
      %v3583 = vadd.f32 %v3544, %v3571
      %v3584 = vadd.f32 %v3545, %v3571
      %v3585 = vadd.f32 %v3546, %v3571
      %v3586 = vadd.f32 %v3547, %v3571
      %v3587 = vadd.f32 %v3548, %v3571
      %v3588 = vadd.f32 %v3549, %v3571
      %v3589 = vadd.f32 %v3550, %v3571
      %v3590 = vadd.f32 %v3551, %v3571
      %v3591 = vadd.f32 %v3552, %v3571
      %v3592 = vadd.f32 %v3553, %v3571
      %v3593 = vadd.f32 %v3554, %v3571
      %v3594 = vadd.f32 %v3555, %v3571
      %v3595 = vadd.f32 %v3556, %v3571
      %v3596 = vadd.f32 %v3557, %v3571
      %v3597 = vadd.f32 %v3558, %v3571
      %v3598 = vadd.f32 %v3559, %v3571
      %v3599 = vadd.f32 %v3560, %v3571
      %v3600 = vadd.f32 %v3561, %v3571
      %v3601 = vadd.f32 %v3562, %v3571
      %v3602 = vadd.f32 %v3563, %v3571
      %v3603 = vadd.f32 %v3564, %v3571
      %v3604 = vadd.f32 %v3565, %v3571
      %v3605 = vmax.f32 %v3573, 0.0
      %v3606 = vmax.f32 %v3574, 0.0
      %v3607 = vmax.f32 %v3575, 0.0
      %v3608 = vmax.f32 %v3576, 0.0
      %v3609 = vmax.f32 %v3577, 0.0
      %v3610 = vmax.f32 %v3578, 0.0
      %v3611 = vmax.f32 %v3579, 0.0
      %v3612 = vmax.f32 %v3580, 0.0
      %v3613 = vmax.f32 %v3581, 0.0
      %v3614 = vmax.f32 %v3582, 0.0
      %v3615 = vmax.f32 %v3583, 0.0
      %v3616 = vmax.f32 %v3584, 0.0
      %v3617 = vmax.f32 %v3585, 0.0
      %v3618 = vmax.f32 %v3586, 0.0
      %v3619 = vmax.f32 %v3587, 0.0
      %v3620 = vmax.f32 %v3588, 0.0
      %v3621 = vmax.f32 %v3589, 0.0
      %v3622 = vmax.f32 %v3590, 0.0
      %v3623 = vmax.f32 %v3591, 0.0
      %v3624 = vmax.f32 %v3592, 0.0
      %v3625 = vmax.f32 %v3593, 0.0
      %v3626 = vmax.f32 %v3594, 0.0
      %v3627 = vmax.f32 %v3595, 0.0
      %v3628 = vmax.f32 %v3596, 0.0
      %v3629 = vmax.f32 %v3597, 0.0
      %v3630 = vmax.f32 %v3598, 0.0
      %v3631 = vmax.f32 %v3599, 0.0
      %v3632 = vmax.f32 %v3600, 0.0
      %v3633 = vmax.f32 %v3601, 0.0
      %v3634 = vmax.f32 %v3602, 0.0
      %v3635 = vmax.f32 %v3603, 0.0
      %v3636 = vmax.f32 %v3604, 0.0
      %v3637 = vpack.c.bf16 %v3606, %v3605
      %v3638 = vpack.c.bf16 %v3608, %v3607
      %v3639 = vpack.c.bf16 %v3610, %v3609
      %v3640 = vpack.c.bf16 %v3612, %v3611
      %v3641 = vpack.c.bf16 %v3614, %v3613
      %v3642 = vpack.c.bf16 %v3616, %v3615
      %v3643 = vpack.c.bf16 %v3618, %v3617
      %v3644 = vpack.c.bf16 %v3620, %v3619
      %v3645 = vpack.c.bf16 %v3622, %v3621
      %v3646 = vpack.c.bf16 %v3624, %v3623
      %v3647 = vpack.c.bf16 %v3626, %v3625
      %v3648 = vpack.c.bf16 %v3628, %v3627
      %v3649 = vpack.c.bf16 %v3630, %v3629
      %v3650 = vpack.c.bf16 %v3632, %v3631
      %v3651 = vpack.c.bf16 %v3634, %v3633
      %v3652 = vpack.c.bf16 %v3636, %v3635
      %v3653 = vld [vmem:[%s5] sm:$0xf]
      %v3654 = vld [vmem:[%s5 + $0x4] sm:$0xf]
      %v3655 = vld [vmem:[%s5 + $0x8] sm:$0xf]
      %v3656 = vld [vmem:[%s5 + $0xc] sm:$0xf]
      %v3657 = vld [vmem:[%s5 + $0x10] sm:$0xf]
      %v3658 = vld [vmem:[%s5 + $0x14] sm:$0xf]
      %v3659 = vld [vmem:[%s5 + $0x18] sm:$0xf]
      %v3660 = vld [vmem:[%s5 + $0x1c] sm:$0xf]
      %v3661 = vld [vmem:[%s5 + $0x20] sm:$0xf]
      %v3662 = vld [vmem:[%s5 + $0x24] sm:$0xf]
      %v3663 = vld [vmem:[%s5 + $0x28] sm:$0xf]
      %v3664 = vld [vmem:[%s5 + $0x2c] sm:$0xf]
      %v3665 = vld [vmem:[%s5 + $0x30] sm:$0xf]
      %v3666 = vld [vmem:[%s5 + $0x34] sm:$0xf]
      %v3667 = vld [vmem:[%s5 + $0x38] sm:$0xf]
      %v3668 = vld [vmem:[%s5 + $0x3c] sm:$0xf]
      %v3669 = vld [vmem:[%s6] sm:$0x1]
      %v3671 = vlaneseq
      %v3672 = vshrl.u32 %v3671, 7
      %v3673 = vsub.s32 0, %v3672
      %v3674 = vrot.slane %v3669, %v3673
      %v3692 = vunpack.c.l.b16 %v3653
      %v3693 = vunpack.c.l.b16 %v3654
      %v3694 = vunpack.c.l.b16 %v3655
      %v3695 = vunpack.c.l.b16 %v3656
      %v3696 = vunpack.c.l.b16 %v3657
      %v3697 = vunpack.c.l.b16 %v3658
      %v3698 = vunpack.c.l.b16 %v3659
      %v3699 = vunpack.c.l.b16 %v3660
      %v3700 = vunpack.c.l.b16 %v3661
      %v3701 = vunpack.c.l.b16 %v3662
      %v3702 = vunpack.c.l.b16 %v3663
      %v3703 = vunpack.c.l.b16 %v3664
      %v3704 = vunpack.c.l.b16 %v3665
      %v3705 = vunpack.c.l.b16 %v3666
      %v3706 = vunpack.c.l.b16 %v3667
      %v3707 = vunpack.c.l.b16 %v3668
      %v3708 = vpack.c.b16 %v3693, %v3692
      %v3709 = vpack.c.b16 %v3695, %v3694
      %v3710 = vpack.c.b16 %v3697, %v3696
      %v3711 = vpack.c.b16 %v3699, %v3698
      %v3712 = vpack.c.b16 %v3701, %v3700
      %v3713 = vpack.c.b16 %v3703, %v3702
      %v3714 = vpack.c.b16 %v3705, %v3704
      %v3715 = vpack.c.b16 %v3707, %v3706
      %3724 = vmatprep.subr.bf16.mxu0 0
      %3725 = vmatpush1.bf16.msra.mxu0 %v3708
      %3726 = vmatprep.subr.bf16.mxu0 0
      %3727 = vmatpush1.bf16.msra.mxu0 %v3709
      %3728 = vmatprep.subr.bf16.mxu0 0
      %3729 = vmatpush1.bf16.msra.mxu0 %v3710
      %3730 = vmatprep.subr.bf16.mxu0 0
      %3731 = vmatpush1.bf16.msra.mxu0 %v3711
      %3732 = vmatprep.subr.bf16.mxu0 0
      %3733 = vmatpush1.bf16.msra.mxu0 %v3712
      %3734 = vmatprep.subr.bf16.mxu0 0
      %3735 = vmatpush1.bf16.msra.mxu0 %v3713
      %3736 = vmatprep.subr.bf16.mxu0 0
      %3737 = vmatpush1.bf16.msra.mxu0 %v3714
      %3738 = vmatprep.subr.bf16.mxu0 0
      %3739 = vmatpush1.bf16.msra.mxu0 %v3715
      %3740 = vmatprep.subr.bf16.mxu0 0
      %3741 = vmatpush1.bf16.msra.mxu0 0
      %3742 = vmatprep.subr.bf16.mxu0 0
      %3743 = vmatpush1.bf16.msra.mxu0 0
      %3744 = vmatprep.subr.bf16.mxu0 0
      %3745 = vmatpush1.bf16.msra.mxu0 0
      %3746 = vmatprep.subr.bf16.mxu0 0
      %3747 = vmatpush1.bf16.msra.mxu0 0
      %3748 = vmatprep.subr.bf16.mxu0 0
      %3749 = vmatpush1.bf16.msra.mxu0 0
      %3750 = vmatprep.subr.bf16.mxu0 0
      %3751 = vmatpush1.bf16.msra.mxu0 0
      %3752 = vmatprep.subr.bf16.mxu0 0
      %3753 = vmatpush1.bf16.msra.mxu0 0
      %3754 = vmatprep.subr.bf16.mxu0 0
      %3755 = vmatpush1.bf16.msra.mxu0 0
      %3756 = vmatprep.mubr.bf16.mxu0 0
      %3757 = vmatmul.mubr.bf16.gmra.mrb[0].mxu0 %v3637
      %v3758 = vpop.f32.mrb[0].mxu0
      %v3759 = vadd.f32 %v3674, %v3758
      %v3760 = vpop.f32.mrb[0].mxu0
      %v3761 = vpop.f32.mrb[0].mxu0
      %v3762 = vadd.f32 %v3674, %v3761
      %v3763 = vpop.f32.mrb[0].mxu0
      %3764 = vmatprep.mubr.bf16.mxu0 0
      %3765 = vmatmul.mubr.bf16.gmra.mrb[0].mxu0 %v3638
      %v3766 = vpop.f32.mrb[0].mxu0
      %v3767 = vadd.f32 %v3674, %v3766
      %v3768 = vpop.f32.mrb[0].mxu0
      %v3769 = vpop.f32.mrb[0].mxu0
      %v3770 = vadd.f32 %v3674, %v3769
      %v3771 = vpop.f32.mrb[0].mxu0
      %3772 = vmatprep.mubr.bf16.mxu0 0
      %3773 = vmatmul.mubr.bf16.gmra.mrb[0].mxu0 %v3639
      %v3774 = vpop.f32.mrb[0].mxu0
      %v3775 = vadd.f32 %v3674, %v3774
      %v3776 = vpop.f32.mrb[0].mxu0
      %v3777 = vpop.f32.mrb[0].mxu0
      %v3778 = vadd.f32 %v3674, %v3777
      %v3779 = vpop.f32.mrb[0].mxu0
      %3780 = vmatprep.mubr.bf16.mxu0 0
      %3781 = vmatmul.mubr.bf16.gmra.mrb[0].mxu0 %v3640
      %v3782 = vpop.f32.mrb[0].mxu0
      %v3783 = vadd.f32 %v3674, %v3782
      %v3784 = vpop.f32.mrb[0].mxu0
      %v3785 = vpop.f32.mrb[0].mxu0
      %v3786 = vadd.f32 %v3674, %v3785
      %v3787 = vpop.f32.mrb[0].mxu0
      %3788 = vmatprep.mubr.bf16.mxu0 0
      %3789 = vmatmul.mubr.bf16.gmra.mrb[0].mxu0 %v3641
      %v3790 = vpop.f32.mrb[0].mxu0
      %v3791 = vadd.f32 %v3674, %v3790
      %v3792 = vpop.f32.mrb[0].mxu0
      %v3793 = vpop.f32.mrb[0].mxu0
      %v3794 = vadd.f32 %v3674, %v3793
      %v3795 = vpop.f32.mrb[0].mxu0
      %3796 = vmatprep.mubr.bf16.mxu0 0
      %3797 = vmatmul.mubr.bf16.gmra.mrb[0].mxu0 %v3642
      %v3798 = vpop.f32.mrb[0].mxu0
      %v3799 = vadd.f32 %v3674, %v3798
      %v3800 = vpop.f32.mrb[0].mxu0
      %v3801 = vpop.f32.mrb[0].mxu0
      %v3802 = vadd.f32 %v3674, %v3801
      %v3803 = vpop.f32.mrb[0].mxu0
      %3804 = vmatprep.mubr.bf16.mxu0 0
      %3805 = vmatmul.mubr.bf16.gmra.mrb[0].mxu0 %v3643
      %v3806 = vpop.f32.mrb[0].mxu0
      %v3807 = vadd.f32 %v3674, %v3806
      %v3808 = vpop.f32.mrb[0].mxu0
      %v3809 = vpop.f32.mrb[0].mxu0
      %v3810 = vadd.f32 %v3674, %v3809
      %v3811 = vpop.f32.mrb[0].mxu0
      %3812 = vmatprep.mubr.bf16.mxu0 0
      %3813 = vmatmul.mubr.bf16.gmra.mrb[0].mxu0 %v3644
      %v3814 = vpop.f32.mrb[0].mxu0
      %v3815 = vadd.f32 %v3674, %v3814
      %v3816 = vpop.f32.mrb[0].mxu0
      %v3817 = vpop.f32.mrb[0].mxu0
      %v3818 = vadd.f32 %v3674, %v3817
      %v3819 = vpop.f32.mrb[0].mxu0
      %3820 = vmatprep.mubr.bf16.mxu0 0
      %3821 = vmatmul.mubr.bf16.gmra.mrb[0].mxu0 %v3645
      %v3822 = vpop.f32.mrb[0].mxu0
      %v3823 = vadd.f32 %v3674, %v3822
      %v3824 = vpop.f32.mrb[0].mxu0
      %v3825 = vpop.f32.mrb[0].mxu0
      %v3826 = vadd.f32 %v3674, %v3825
      %v3827 = vpop.f32.mrb[0].mxu0
      %3828 = vmatprep.mubr.bf16.mxu0 0
      %3829 = vmatmul.mubr.bf16.gmra.mrb[0].mxu0 %v3646
      %v3830 = vpop.f32.mrb[0].mxu0
      %v3831 = vadd.f32 %v3674, %v3830
      %v3832 = vpop.f32.mrb[0].mxu0
      %v3833 = vpop.f32.mrb[0].mxu0
      %v3834 = vadd.f32 %v3674, %v3833
      %v3835 = vpop.f32.mrb[0].mxu0
      %3836 = vmatprep.mubr.bf16.mxu0 0
      %3837 = vmatmul.mubr.bf16.gmra.mrb[0].mxu0 %v3647
      %v3838 = vpop.f32.mrb[0].mxu0
      %v3839 = vadd.f32 %v3674, %v3838
      %v3840 = vpop.f32.mrb[0].mxu0
      %v3841 = vpop.f32.mrb[0].mxu0
      %v3842 = vadd.f32 %v3674, %v3841
      %v3843 = vpop.f32.mrb[0].mxu0
      %3844 = vmatprep.mubr.bf16.mxu0 0
      %3845 = vmatmul.mubr.bf16.gmra.mrb[0].mxu0 %v3648
      %v3846 = vpop.f32.mrb[0].mxu0
      %v3847 = vadd.f32 %v3674, %v3846
      %v3848 = vpop.f32.mrb[0].mxu0
      %v3849 = vpop.f32.mrb[0].mxu0
      %v3850 = vadd.f32 %v3674, %v3849
      %v3851 = vpop.f32.mrb[0].mxu0
      %3852 = vmatprep.mubr.bf16.mxu0 0
      %3853 = vmatmul.mubr.bf16.gmra.mrb[0].mxu0 %v3649
      %v3854 = vpop.f32.mrb[0].mxu0
      %v3855 = vadd.f32 %v3674, %v3854
      %v3856 = vpop.f32.mrb[0].mxu0
      %v3857 = vpop.f32.mrb[0].mxu0
      %v3858 = vadd.f32 %v3674, %v3857
      %v3859 = vpop.f32.mrb[0].mxu0
      %3860 = vmatprep.mubr.bf16.mxu0 0
      %3861 = vmatmul.mubr.bf16.gmra.mrb[0].mxu0 %v3650
      %v3862 = vpop.f32.mrb[0].mxu0
      %v3863 = vadd.f32 %v3674, %v3862
      %v3864 = vpop.f32.mrb[0].mxu0
      %v3865 = vpop.f32.mrb[0].mxu0
      %v3866 = vadd.f32 %v3674, %v3865
      %v3867 = vpop.f32.mrb[0].mxu0
      %3868 = vmatprep.mubr.bf16.mxu0 0
      %3869 = vmatmul.mubr.bf16.gmra.mrb[0].mxu0 %v3651
      %v3870 = vpop.f32.mrb[0].mxu0
      %v3871 = vadd.f32 %v3674, %v3870
      %v3872 = vpop.f32.mrb[0].mxu0
      %v3873 = vpop.f32.mrb[0].mxu0
      %v3874 = vadd.f32 %v3674, %v3873
      %v3875 = vpop.f32.mrb[0].mxu0
      %3876 = vmatprep.mubr.bf16.mxu0 0
      %3877 = vmatmul.mubr.bf16.gmra.mrb[0].mxu0 %v3652
      %v3878 = vpop.f32.mrb[0].mxu0
      %v3879 = vadd.f32 %v3674, %v3878
      %v3880 = vpop.f32.mrb[0].mxu0
      %v3881 = vpop.f32.mrb[0].mxu0
      %v3882 = vadd.f32 %v3674, %v3881
      %v3883 = vpop.f32.mrb[0].mxu0
      %3884 = vdwg.mxu0
      %v3885 = vld [vmem:[%s357] sm:$0xf]
      %v3886 = vld [vmem:[%s357 + $0x4] sm:$0xf]
      %v3887 = vld [vmem:[%s357 + $0x8] sm:$0xf]
      %v3888 = vld [vmem:[%s357 + $0xc] sm:$0xf]
      %v3889 = vld [vmem:[%s357 + $0x10] sm:$0xf]
      %v3890 = vld [vmem:[%s357 + $0x14] sm:$0xf]
      %v3891 = vld [vmem:[%s357 + $0x18] sm:$0xf]
      %v3892 = vld [vmem:[%s357 + $0x1c] sm:$0xf]
      %v3893 = vld [vmem:[%s357 + $0x20] sm:$0xf]
      %v3894 = vld [vmem:[%s357 + $0x24] sm:$0xf]
      %v3895 = vld [vmem:[%s357 + $0x28] sm:$0xf]
      %v3896 = vld [vmem:[%s357 + $0x2c] sm:$0xf]
      %v3897 = vld [vmem:[%s357 + $0x30] sm:$0xf]
      %v3898 = vld [vmem:[%s357 + $0x34] sm:$0xf]
      %v3899 = vld [vmem:[%s357 + $0x38] sm:$0xf]
      %v3900 = vld [vmem:[%s357 + $0x3c] sm:$0xf]
      %v3901 = vld [vmem:[%s357 + $0x40] sm:$0xf]
      %v3902 = vld [vmem:[%s357 + $0x44] sm:$0xf]
      %v3903 = vld [vmem:[%s357 + $0x48] sm:$0xf]
      %v3904 = vld [vmem:[%s357 + $0x4c] sm:$0xf]
      %v3905 = vld [vmem:[%s357 + $0x50] sm:$0xf]
      %v3906 = vld [vmem:[%s357 + $0x54] sm:$0xf]
      %v3907 = vld [vmem:[%s357 + $0x58] sm:$0xf]
      %v3908 = vld [vmem:[%s357 + $0x5c] sm:$0xf]
      %v3909 = vld [vmem:[%s357 + $0x60] sm:$0xf]
      %v3910 = vld [vmem:[%s357 + $0x64] sm:$0xf]
      %v3911 = vld [vmem:[%s357 + $0x68] sm:$0xf]
      %v3912 = vld [vmem:[%s357 + $0x6c] sm:$0xf]
      %v3913 = vld [vmem:[%s357 + $0x70] sm:$0xf]
      %v3914 = vld [vmem:[%s357 + $0x74] sm:$0xf]
      %v3915 = vld [vmem:[%s357 + $0x78] sm:$0xf]
      %v3916 = vld [vmem:[%s357 + $0x7c] sm:$0xf]
      %v3917 = vunpack.c.l.bf16 %v3885
      %v3918 = vunpack.c.l.bf16 %v3886
      %v3919 = vunpack.c.l.bf16 %v3887
      %v3920 = vunpack.c.l.bf16 %v3888
      %v3921 = vunpack.c.l.bf16 %v3889
      %v3922 = vunpack.c.l.bf16 %v3890
      %v3923 = vunpack.c.l.bf16 %v3891
      %v3924 = vunpack.c.l.bf16 %v3892
      %v3925 = vunpack.c.l.bf16 %v3893
      %v3926 = vunpack.c.l.bf16 %v3894
      %v3927 = vunpack.c.l.bf16 %v3895
      %v3928 = vunpack.c.l.bf16 %v3896
      %v3929 = vunpack.c.l.bf16 %v3897
      %v3930 = vunpack.c.l.bf16 %v3898
      %v3931 = vunpack.c.l.bf16 %v3899
      %v3932 = vunpack.c.l.bf16 %v3900
      %v3933 = vunpack.c.l.bf16 %v3901
      %v3934 = vunpack.c.l.bf16 %v3902
      %v3935 = vunpack.c.l.bf16 %v3903
      %v3936 = vunpack.c.l.bf16 %v3904
      %v3937 = vunpack.c.l.bf16 %v3905
      %v3938 = vunpack.c.l.bf16 %v3906
      %v3939 = vunpack.c.l.bf16 %v3907
      %v3940 = vunpack.c.l.bf16 %v3908
      %v3941 = vunpack.c.l.bf16 %v3909
      %v3942 = vunpack.c.l.bf16 %v3910
      %v3943 = vunpack.c.l.bf16 %v3911
      %v3944 = vunpack.c.l.bf16 %v3912
      %v3945 = vunpack.c.l.bf16 %v3913
      %v3946 = vunpack.c.l.bf16 %v3914
      %v3947 = vunpack.c.l.bf16 %v3915
      %v3948 = vunpack.c.l.bf16 %v3916
      %v3949 = vadd.f32 %v3759, %v3917
      %v3950 = vadd.f32 %v3762, %v3918
      %v3951 = vadd.f32 %v3767, %v3919
      %v3952 = vadd.f32 %v3770, %v3920
      %v3953 = vadd.f32 %v3775, %v3921
      %v3954 = vadd.f32 %v3778, %v3922
      %v3955 = vadd.f32 %v3783, %v3923
      %v3956 = vadd.f32 %v3786, %v3924
      %v3957 = vadd.f32 %v3791, %v3925
      %v3958 = vadd.f32 %v3794, %v3926
      %v3959 = vadd.f32 %v3799, %v3927
      %v3960 = vadd.f32 %v3802, %v3928
      %v3961 = vadd.f32 %v3807, %v3929
      %v3962 = vadd.f32 %v3810, %v3930
      %v3963 = vadd.f32 %v3815, %v3931
      %v3964 = vadd.f32 %v3818, %v3932
      %v3965 = vadd.f32 %v3823, %v3933
      %v3966 = vadd.f32 %v3826, %v3934
      %v3967 = vadd.f32 %v3831, %v3935
      %v3968 = vadd.f32 %v3834, %v3936
      %v3969 = vadd.f32 %v3839, %v3937
      %v3970 = vadd.f32 %v3842, %v3938
      %v3971 = vadd.f32 %v3847, %v3939
      %v3972 = vadd.f32 %v3850, %v3940
      %v3973 = vadd.f32 %v3855, %v3941
      %v3974 = vadd.f32 %v3858, %v3942
      %v3975 = vadd.f32 %v3863, %v3943
      %v3976 = vadd.f32 %v3866, %v3944
      %v3977 = vadd.f32 %v3871, %v3945
      %v3978 = vadd.f32 %v3874, %v3946
      %v3979 = vadd.f32 %v3879, %v3947
      %v3980 = vadd.f32 %v3882, %v3948
      %v3981 = vmax.f32 %v3949, 0.0
      %v3982 = vmax.f32 %v3950, 0.0
      %v3983 = vmax.f32 %v3951, 0.0
      %v3984 = vmax.f32 %v3952, 0.0
      %v3985 = vmax.f32 %v3953, 0.0
      %v3986 = vmax.f32 %v3954, 0.0
      %v3987 = vmax.f32 %v3955, 0.0
      %v3988 = vmax.f32 %v3956, 0.0
      %v3989 = vmax.f32 %v3957, 0.0
      %v3990 = vmax.f32 %v3958, 0.0
      %v3991 = vmax.f32 %v3959, 0.0
      %v3992 = vmax.f32 %v3960, 0.0
      %v3993 = vmax.f32 %v3961, 0.0
      %v3994 = vmax.f32 %v3962, 0.0
      %v3995 = vmax.f32 %v3963, 0.0
      %v3996 = vmax.f32 %v3964, 0.0
      %v3997 = vmax.f32 %v3965, 0.0
      %v3998 = vmax.f32 %v3966, 0.0
      %v3999 = vmax.f32 %v3967, 0.0
      %v4000 = vmax.f32 %v3968, 0.0
      %v4001 = vmax.f32 %v3969, 0.0
      %v4002 = vmax.f32 %v3970, 0.0
      %v4003 = vmax.f32 %v3971, 0.0
      %v4004 = vmax.f32 %v3972, 0.0
      %v4005 = vmax.f32 %v3973, 0.0
      %v4006 = vmax.f32 %v3974, 0.0
      %v4007 = vmax.f32 %v3975, 0.0
      %v4008 = vmax.f32 %v3976, 0.0
      %v4009 = vmax.f32 %v3977, 0.0
      %v4010 = vmax.f32 %v3978, 0.0
      %v4011 = vmax.f32 %v3979, 0.0
      %v4012 = vmax.f32 %v3980, 0.0
      %v4013 = vpack.c.bf16 %v3982, %v3981
      %v4014 = vpack.c.bf16 %v3984, %v3983
      %v4015 = vpack.c.bf16 %v3986, %v3985
      %v4016 = vpack.c.bf16 %v3988, %v3987
      %v4017 = vpack.c.bf16 %v3990, %v3989
      %v4018 = vpack.c.bf16 %v3992, %v3991
      %v4019 = vpack.c.bf16 %v3994, %v3993
      %v4020 = vpack.c.bf16 %v3996, %v3995
      %v4021 = vpack.c.bf16 %v3998, %v3997
      %v4022 = vpack.c.bf16 %v4000, %v3999
      %v4023 = vpack.c.bf16 %v4002, %v4001
      %v4024 = vpack.c.bf16 %v4004, %v4003
      %v4025 = vpack.c.bf16 %v4006, %v4005
      %v4026 = vpack.c.bf16 %v4008, %v4007
      %v4027 = vpack.c.bf16 %v4010, %v4009
      %v4028 = vpack.c.bf16 %v4012, %v4011
      %v4045 = vunpack.c.l.b16 %v4013
      %v4046 = vunpack.c.h.b16 %v4013
      %v4047 = vunpack.c.l.b16 %v4014
      %v4048 = vunpack.c.h.b16 %v4014
      %v4049 = vunpack.c.l.b16 %v4015
      %v4050 = vunpack.c.h.b16 %v4015
      %v4051 = vunpack.c.l.b16 %v4016
      %v4052 = vunpack.c.h.b16 %v4016
      %v4053 = vunpack.c.l.b16 %v4017
      %v4054 = vunpack.c.h.b16 %v4017
      %v4055 = vunpack.c.l.b16 %v4018
      %v4056 = vunpack.c.h.b16 %v4018
      %v4057 = vunpack.c.l.b16 %v4019
      %v4058 = vunpack.c.h.b16 %v4019
      %v4059 = vunpack.c.l.b16 %v4020
      %v4060 = vunpack.c.h.b16 %v4020
      %v4061 = vunpack.c.l.b16 %v4021
      %v4062 = vunpack.c.h.b16 %v4021
      %v4063 = vunpack.c.l.b16 %v4022
      %v4064 = vunpack.c.h.b16 %v4022
      %v4065 = vunpack.c.l.b16 %v4023
      %v4066 = vunpack.c.h.b16 %v4023
      %v4067 = vunpack.c.l.b16 %v4024
      %v4068 = vunpack.c.h.b16 %v4024
      %v4069 = vunpack.c.l.b16 %v4025
      %v4070 = vunpack.c.h.b16 %v4025
      %v4071 = vunpack.c.l.b16 %v4026
      %v4072 = vunpack.c.h.b16 %v4026
      %v4073 = vunpack.c.l.b16 %v4027
      %v4074 = vunpack.c.h.b16 %v4027
      %v4075 = vunpack.c.l.b16 %v4028
      %v4076 = vunpack.c.h.b16 %v4028
      %v4077 = vpack.c.b16 %v4045, %v4045
      %v4078 = vpack.c.b16 %v4046, %v4046
      %v4079 = vpack.c.b16 %v4047, %v4047
      %v4080 = vpack.c.b16 %v4048, %v4048
      %v4081 = vpack.c.b16 %v4049, %v4049
      %v4082 = vpack.c.b16 %v4050, %v4050
      %v4083 = vpack.c.b16 %v4051, %v4051
      %v4084 = vpack.c.b16 %v4052, %v4052
      %v4085 = vpack.c.b16 %v4053, %v4053
      %v4086 = vpack.c.b16 %v4054, %v4054
      %v4087 = vpack.c.b16 %v4055, %v4055
      %v4088 = vpack.c.b16 %v4056, %v4056
      %v4089 = vpack.c.b16 %v4057, %v4057
      %v4090 = vpack.c.b16 %v4058, %v4058
      %v4091 = vpack.c.b16 %v4059, %v4059
      %v4092 = vpack.c.b16 %v4060, %v4060
      %v4093 = vpack.c.b16 %v4061, %v4061
      %v4094 = vpack.c.b16 %v4062, %v4062
      %v4095 = vpack.c.b16 %v4063, %v4063
      %v4096 = vpack.c.b16 %v4064, %v4064
      %v4097 = vpack.c.b16 %v4065, %v4065
      %v4098 = vpack.c.b16 %v4066, %v4066
      %v4099 = vpack.c.b16 %v4067, %v4067
      %v4100 = vpack.c.b16 %v4068, %v4068
      %v4101 = vpack.c.b16 %v4069, %v4069
      %v4102 = vpack.c.b16 %v4070, %v4070
      %v4103 = vpack.c.b16 %v4071, %v4071
      %v4104 = vpack.c.b16 %v4072, %v4072
      %v4105 = vpack.c.b16 %v4073, %v4073
      %v4106 = vpack.c.b16 %v4074, %v4074
      %v4107 = vpack.c.b16 %v4075, %v4075
      %v4108 = vpack.c.b16 %v4076, %v4076
      %vm4141 = vcmask 60416
      %4142 = vst.msk [vmem:[%s368] sm:$0xf] %vm4141, %v4077
      %4143 = vst.msk [vmem:[%s368 + $0x4] sm:$0xf] %vm4141, %v4078
      %4144 = vst.msk [vmem:[%s368 + $0x8] sm:$0xf] %vm4141, %v4079
      %4145 = vst.msk [vmem:[%s368 + $0xc] sm:$0xf] %vm4141, %v4080
      %4146 = vst.msk [vmem:[%s368 + $0x10] sm:$0xf] %vm4141, %v4081
      %4147 = vst.msk [vmem:[%s368 + $0x14] sm:$0xf] %vm4141, %v4082
      %4148 = vst.msk [vmem:[%s368 + $0x18] sm:$0xf] %vm4141, %v4083
      %4149 = vst.msk [vmem:[%s368 + $0x1c] sm:$0xf] %vm4141, %v4084
      %4150 = vst.msk [vmem:[%s368 + $0x20] sm:$0xf] %vm4141, %v4085
      %4151 = vst.msk [vmem:[%s368 + $0x24] sm:$0xf] %vm4141, %v4086
      %4152 = vst.msk [vmem:[%s368 + $0x28] sm:$0xf] %vm4141, %v4087
      %4153 = vst.msk [vmem:[%s368 + $0x2c] sm:$0xf] %vm4141, %v4088
      %4154 = vst.msk [vmem:[%s368 + $0x30] sm:$0xf] %vm4141, %v4089
      %4155 = vst.msk [vmem:[%s368 + $0x34] sm:$0xf] %vm4141, %v4090
      %4156 = vst.msk [vmem:[%s368 + $0x38] sm:$0xf] %vm4141, %v4091
      %4157 = vst.msk [vmem:[%s368 + $0x3c] sm:$0xf] %vm4141, %v4092
      %4158 = vst.msk [vmem:[%s368 + $0x40] sm:$0xf] %vm4141, %v4093
      %4159 = vst.msk [vmem:[%s368 + $0x44] sm:$0xf] %vm4141, %v4094
      %4160 = vst.msk [vmem:[%s368 + $0x48] sm:$0xf] %vm4141, %v4095
      %4161 = vst.msk [vmem:[%s368 + $0x4c] sm:$0xf] %vm4141, %v4096
      %4162 = vst.msk [vmem:[%s368 + $0x50] sm:$0xf] %vm4141, %v4097
      %4163 = vst.msk [vmem:[%s368 + $0x54] sm:$0xf] %vm4141, %v4098
      %4164 = vst.msk [vmem:[%s368 + $0x58] sm:$0xf] %vm4141, %v4099
      %4165 = vst.msk [vmem:[%s368 + $0x5c] sm:$0xf] %vm4141, %v4100
      %4166 = vst.msk [vmem:[%s368 + $0x60] sm:$0xf] %vm4141, %v4101
      %4167 = vst.msk [vmem:[%s368 + $0x64] sm:$0xf] %vm4141, %v4102
      %4168 = vst.msk [vmem:[%s368 + $0x68] sm:$0xf] %vm4141, %v4103
      %4169 = vst.msk [vmem:[%s368 + $0x6c] sm:$0xf] %vm4141, %v4104
      %4170 = vst.msk [vmem:[%s368 + $0x70] sm:$0xf] %vm4141, %v4105
      %4171 = vst.msk [vmem:[%s368 + $0x74] sm:$0xf] %vm4141, %v4106
      %4172 = vst.msk [vmem:[%s368 + $0x78] sm:$0xf] %vm4141, %v4107
      %4173 = vst.msk [vmem:[%s368 + $0x7c] sm:$0xf] %vm4141, %v4108
      %s4174 = smul.u32 16, %s24
      %p4175 = scmp.lt.s32.totalorder %s23, 1
      %s4176 = scalar_select %p4175, %s23, 1
      %p4177 = scmp.lt.s32.totalorder %s4174, 15
      %s4178 = scalar_select %p4177, %s4174, 15
      %s4179 = smul.addr %s4178, 2
      %s4180 = smul.addr %s4176, 32
      %s4181 = sadd.s32 %s4179, %s4180
      %s4182 = smul.addr %s4181, 4
      %s4183 = scalar_lea.vmem %s8, %s4182
      // Predicated region
      $region57: #{bottleneck_forward.1} parent=51 // pred_check
        %p4184 = pneg %p231
      $region58: #{bottleneck_forward.1} parent=51 // pred_check_branch
        %4186 = sbr.rel (%p4184) target = $region60
      $region59: #{bottleneck_forward.1} parent=51 // pred_region
        %s4187 = smul.u32 16, %s24
      $region60: #{bottleneck_forward.1} parent=51 // pred_fallthru
        _
    $region52: #{bottleneck_forward.1} parent=5 // pred_fallthru
      _
    %p4188 = scmp.le.s32.totalorder 2, %s14
    // Predicated region
    $region61: #{bottleneck_forward.1} parent=5 // pred_check
      %p4189 = pneg %p4188
    $region62: #{bottleneck_forward.1} parent=5 // pred_check_branch
      %4191 = sbr.rel (%p4189) target = $region64
    $region63: #{bottleneck_forward.1} parent=5 // pred_region
      %s4192 = ssub.s32 %s14, 2
      // Predicated region
      $region65: #{bottleneck_forward.1} parent=63 // pred_check
        %p4193 = pneg %p237
      $region66: #{bottleneck_forward.1} parent=63 // pred_check_branch
        %4195 = sbr.rel (%p4193) target = $region68
      $region67: #{bottleneck_forward.1} parent=63 // pred_region
        %s4196 = smul.u32 16, %s26
        %p4197 = scmp.lt.s32.totalorder %s25, 1
        %s4198 = scalar_select %p4197, %s25, 1
        %p4199 = scmp.lt.s32.totalorder %s4196, 15
        %s4200 = scalar_select %p4199, %s4196, 15
        %s4201 = smul.addr %s4200, 2
        %s4202 = smul.addr %s4198, 32
        %s4203 = sadd.s32 %s4201, %s4202
        %s4204 = smul.addr %s4203, 4
        %s4205 = scalar_lea.vmem %s8, %s4204
      $region68: #{bottleneck_forward.1} parent=63 // pred_fallthru
        _
    $region64: #{bottleneck_forward.1} parent=5 // pred_fallthru
      _
  $region6: #{bottleneck_forward.1} parent=0 // loop_footer
    %s18 = sadd.s32 1, %s14
  $region7: #{bottleneck_forward.1} parent=0 // loop_footer_branch
    %13 = sbr.rel target = $region3
  $region8: #{bottleneck_forward.1} parent=0 // loop_exit
    _

</llo_original>
